<compile_context>
chip_gen: v7x
topology: tpu7x:2x2x1
jax: 0.10.0
libtpu: 0.0.40
codegen_flags: <defaults>
</compile_context>

<pallas_src>
import jax
import jax.numpy as jnp
from jax.experimental import pallas as pl
from jax.experimental.pallas import tpu as pltpu

LEAKY_SLOPE = 0.01
BN_EPS = 1e-5
VMEM_LIMIT = 32 * 1024 * 1024      # safe scoped-VMEM budget on v5e/v6e/v7x
MAX_ROW_TILE = 512                 # ~85% of HBM roofline per tile-size sweep


def _round_up(x, m):
    return ((x + m - 1) // m) * m


def _choose_row_tile(m, max_tile=MAX_ROW_TILE):
    # tile must be a multiple of 16 (bf16 sublane packing); mpad % tm == 0
    mp = _round_up(m, 16)
    tm = min(max_tile, mp)
    return tm, _round_up(m, tm)


def _pad2d(a, rows, cols):
    r, c = a.shape
    if r == rows and c == cols:
        return a
    return jnp.pad(a, ((0, rows - r), (0, cols - c)))


# ------------------------------ Pallas kernels ------------------------------

def _make_matmul_stats_kernel(m_valid, tm, need_mask):
    """Pass 1: y = A @ W + b (bf16 operands, f32 accum) + per-column sum/sumsq.

    The stats outputs use a constant block index across the (arbitrary) M grid
    axis, so they live in VMEM for the whole call and act as accumulators."""
    def kernel(a_ref, w_ref, b_ref, y_ref, s1_ref, s2_ref):
        i = pl.program_id(0)
        y = jnp.dot(a_ref[...], w_ref[...],
                    preferred_element_type=jnp.float32) + b_ref[...]
        y_ref[...] = y

        @pl.when(i == 0)
        def _init():
            s1_ref[...] = jnp.zeros_like(s1_ref)
            s2_ref[...] = jnp.zeros_like(s2_ref)

        if need_mask:  # exclude zero-padded rows from the BatchNorm statistics
            rows = jax.lax.broadcasted_iota(jnp.int32, y.shape, 0) + i * tm
            y = jnp.where(rows < m_valid, y, 0.0)
        s1_ref[...] += jnp.sum(y, axis=0, keepdims=True)
        s2_ref[...] += jnp.sum(y * y, axis=0, keepdims=True)

    return kernel


def _bn_lrelu_kernel(y_ref, scale_ref, shift_ref, o_ref):
    """Pass 2: y * scale + shift followed by LeakyReLU; bf16 store."""
    yn = y_ref[...] * scale_ref[...] + shift_ref[...]
    o_ref[...] = jnp.where(yn >= 0.0, yn, LEAKY_SLOPE * yn).astype(o_ref.dtype)


def _matmul_bias_kernel(a_ref, w_ref, b_ref, o_ref):
    o_ref[...] = (jnp.dot(a_ref[...], w_ref[...],
                          preferred_element_type=jnp.float32)
                  + b_ref[...]).astype(o_ref.dtype)


def _make_mse_kernel(inv_n):
    def kernel(x_ref, y_ref, o_ref, acc_ref):
        @pl.when(pl.program_id(0) == 0)
        def _init():
            acc_ref[0] = jnp.float32(0.0)

        d = x_ref[...] - y_ref[...]
        acc_ref[0] += jnp.sum(d * d)
        o_ref[0] = acc_ref[0] * inv_n   # last grid step's write wins

    return kernel


# ------------------------------ pallas_call wrappers ------------------------------

def matmul_bias_stats(a, w, b):
    """Row-tiled matmul+bias; returns padded y (f32) and per-column sum / sumsq."""
    m, k = a.shape
    n = w.shape[1]
    npad = _round_up(n, 128)
    tm, mpad = _choose_row_tile(m)
    grid = (mpad // tm,)
    a_p = _pad2d(a.astype(jnp.bfloat16), mpad, k)
    w_p = _pad2d(w.astype(jnp.bfloat16), k, npad)
    b_p = _pad2d(b.astype(jnp.float32).reshape(1, -1), 1, npad)
    cost = pl.CostEstimate(flops=2 * mpad * k * npad, transcendentals=0,
                           bytes_accessed=a_p.size * 2 + w_p.size * 2 + mpad * npad * 4)
    y, s1, s2 = pl.pallas_call(
        _make_matmul_stats_kernel(m, tm, mpad != m),
        grid=grid,
        out_shape=(jax.ShapeDtypeStruct((mpad, npad), jnp.float32),
                   jax.ShapeDtypeStruct((1, npad), jnp.float32),
                   jax.ShapeDtypeStruct((1, npad), jnp.float32)),
        in_specs=[pl.BlockSpec((tm, k), lambda i: (i, 0)),
                  pl.BlockSpec((k, npad), lambda i: (0, 0)),
                  pl.BlockSpec((1, npad), lambda i: (0, 0))],
        out_specs=(pl.BlockSpec((tm, npad), lambda i: (i, 0)),
                   pl.BlockSpec((1, npad), lambda i: (0, 0)),
                   pl.BlockSpec((1, npad), lambda i: (0, 0))),
        compiler_params=pltpu.CompilerParams(
            dimension_semantics=("arbitrary",),   # stats accumulate across row tiles
            vmem_limit_bytes=VMEM_LIMIT),
        cost_estimate=cost,
    )(a_p, w_p, b_p)
    return y, s1, s2, tm, npad


def bn_lrelu_apply(y, scale, shift, tm, out_dtype=jnp.bfloat16):
    mpad, npad = y.shape
    grid = (mpad // tm,)
    scale_p = _pad2d(scale.astype(jnp.float32).reshape(1, -1), 1, npad)
    shift_p = _pad2d(shift.astype(jnp.float32).reshape(1, -1), 1, npad)
    return pl.pallas_call(
        _bn_lrelu_kernel,
        grid=grid,
        out_shape=jax.ShapeDtypeStruct((mpad, npad), out_dtype),
        in_specs=[pl.BlockSpec((tm, npad), lambda i: (i, 0)),
                  pl.BlockSpec((1, npad), lambda i: (0, 0)),
                  pl.BlockSpec((1, npad), lambda i: (0, 0))],
        out_specs=pl.BlockSpec((tm, npad), lambda i: (i, 0)),
        compiler_params=pltpu.CompilerParams(
            dimension_semantics=("parallel",),
            vmem_limit_bytes=VMEM_LIMIT),
    )(y, scale_p, shift_p)


def pallas_matmul_bias(a, w, b, out_dtype=jnp.float32):
    """Row-tiled y = A @ W + b (bf16 operands, f32 accumulation)."""
    m, k = a.shape
    n = w.shape[1]
    npad = _round_up(n, 128)
    tm, mpad = _choose_row_tile(m)
    grid = (mpad // tm,)
    a_p = _pad2d(a.astype(jnp.bfloat16), mpad, k)
    w_p = _pad2d(w.astype(jnp.bfloat16), k, npad)
    b_p = _pad2d(b.astype(jnp.float32).reshape(1, -1), 1, npad)
    cost = pl.CostEstimate(flops=2 * mpad * k * npad, transcendentals=0,
                           bytes_accessed=a_p.size * 2 + w_p.size * 2 + mpad * npad * 4)
    out = pl.pallas_call(
        _matmul_bias_kernel,
        grid=grid,
        out_shape=jax.ShapeDtypeStruct((mpad, npad), out_dtype),
        in_specs=[pl.BlockSpec((tm, k), lambda i: (i, 0)),
                  pl.BlockSpec((k, npad), lambda i: (0, 0)),
                  pl.BlockSpec((1, npad), lambda i: (0, 0))],
        out_specs=pl.BlockSpec((tm, npad), lambda i: (i, 0)),
        compiler_params=pltpu.CompilerParams(
            dimension_semantics=("parallel",),
            vmem_limit_bytes=VMEM_LIMIT),
        cost_estimate=cost,
    )(a_p, w_p, b_p)
    return out[:m, :n]


def pallas_mse(x, y):
    """mean((x - y)^2) over all elements, row-tiled with SMEM scalar accumulation."""
    n_elems = x.size
    xf = x.reshape(x.shape[0], -1).astype(jnp.float32)
    yf = y.reshape(y.shape[0], -1).astype(jnp.float32)
    m, k = xf.shape
    kpad = _round_up(k, 128)
    tm = min(256, _round_up(m, 8))
    mpad = _round_up(m, tm)
    grid = (mpad // tm,)
    out = pl.pallas_call(
        _make_mse_kernel(1.0 / float(n_elems)),
        grid=grid,
        out_shape=jax.ShapeDtypeStruct((1,), jnp.float32),
        in_specs=[pl.BlockSpec((tm, kpad), lambda i: (i, 0)),
                  pl.BlockSpec((tm, kpad), lambda i: (i, 0))],
        out_specs=pl.BlockSpec(memory_space=pltpu.SMEM),
        scratch_shapes=[pltpu.SMEM((1,), jnp.float32)],
        compiler_params=pltpu.CompilerParams(
            dimension_semantics=("arbitrary",),
            vmem_limit_bytes=VMEM_LIMIT),
    )(_pad2d(xf, mpad, kpad), _pad2d(yf, mpad, kpad))
    return out[0]


# ------------------------------ conv glue (layout plumbing in XLA) ------------------------------

def _im2col_3x3(xp, stride):
    # xp: (N, Hp, Wp, C).  Column order: (kh, kw) major, C minor.
    n, hp, wp, c = xp.shape
    oh = (hp - 3) // stride + 1
    ow = (wp - 3) // stride + 1
    cols = []
    for kh in range(3):
        for kw in range(3):
            cols.append(xp[:, kh:kh + stride * (oh - 1) + 1:stride,
                           kw:kw + stride * (ow - 1) + 1:stride, :])
    patches = jnp.stack(cols, axis=3)            # (N, OH, OW, 9, C)
    return patches.reshape(n * oh * ow, 9 * c), oh, ow


def conv2d_bn_lrelu(x, layer):
    """3x3 stride-2 conv + BatchNorm(batch stats) + LeakyReLU.  x: NHWC bf16."""
    n = x.shape[0]
    cout = layer["gamma"].shape[0]
    xp = jnp.pad(x, ((0, 0), (1, 1), (1, 1), (0, 0)))
    a, oh, ow = _im2col_3x3(xp, stride=2)        # stride-2 im2col is only 2.25x data
    m = a.shape[0]
    y, s1, s2, tm, _ = matmul_bias_stats(a, layer["wm"], layer["b"])
    inv_cnt = 1.0 / float(m)
    mean = s1[0, :cout] * inv_cnt
    var = jnp.maximum(s2[0, :cout] * inv_cnt - mean * mean, 0.0)
    scale = layer["gamma"] * jax.lax.rsqrt(var + BN_EPS)
    shift = layer["beta"] - mean * scale
    o = bn_lrelu_apply(y, scale, shift, tm, jnp.bfloat16)
    return o[:m, :cout].reshape(n, oh, ow, cout)


def convtranspose2d_bn_lrelu(x, layer):
    """ConvTranspose2d(3, stride=2, pad=1, output_pad=1) + BN + LeakyReLU via a
    sub-pixel decomposition: one matmul over a 2x2 im2col produces all four
    output parity phases at once (no zero-dilated input, ~4x less MXU work)."""
    n, h, w, cin = x.shape
    cout = layer["gamma"].shape[0]
    xp = jnp.pad(x, ((0, 0), (0, 1), (0, 1), (0, 0)))
    taps = [xp[:, :h, :w, :], xp[:, :h, 1:, :],
            xp[:, 1:, :w, :], xp[:, 1:, 1:, :]]
    a = jnp.concatenate(taps, axis=-1).reshape(n * h * w, 4 * cin)
    m = a.shape[0]
    y, s1, s2, tm, _ = matmul_bias_stats(a, layer["wm4"], layer["b4"])
    # BN stats per channel: reduce over rows and over the 4 phase column groups.
    inv_cnt = 1.0 / float(4 * m)
    s1c = jnp.sum(s1[0, :4 * cout].reshape(4, cout), axis=0)
    s2c = jnp.sum(s2[0, :4 * cout].reshape(4, cout), axis=0)
    mean = s1c * inv_cnt
    var = jnp.maximum(s2c * inv_cnt - mean * mean, 0.0)
    scale = layer["gamma"] * jax.lax.rsqrt(var + BN_EPS)
    shift = layer["beta"] - mean * scale
    o = bn_lrelu_apply(y, jnp.tile(scale, 4), jnp.tile(shift, 4), tm, jnp.bfloat16)
    o = o[:m, :4 * cout].reshape(n, h, w, 2, 2, cout)       # (b, m, n, py, px, c)
    o = jnp.transpose(o, (0, 1, 3, 2, 4, 5)).reshape(n, 2 * h, 2 * w, cout)
    return o


def conv2d_output(x, wm, bias, cout):
    """Plain 3x3 stride-1 conv (final output layer), f32 result."""
    n = x.shape[0]
    xp = jnp.pad(x, ((0, 0), (1, 1), (1, 1), (0, 0)))
    a, oh, ow = _im2col_3x3(xp, stride=1)
    y = pallas_matmul_bias(a, wm, bias, out_dtype=jnp.float32)
    return y.reshape(n, oh, ow, cout)


# ------------------------------ DCAE model ------------------------------

def divisible_by_two(k, lower_bound=0):
    i = 0
    while k % 2 == 0 and k > lower_bound:
        k //= 2
        i += 1
    return i, int(k)


def _conv_weight_matrix(w):
    # (Cout, Cin, 3, 3) torch layout -> (9*Cin, Cout); row order (kh, kw, cin).
    return jnp.transpose(w, (2, 3, 1, 0)).reshape(-1, w.shape[0])


def _convT_weight_matrix(w):
    # (Cin, Cout, 3, 3) torch layout -> (4*Cin, 4*Cout) sub-pixel matrix.
    # Row order: 2x2 im2col taps (dm, dn, cin); col order: phases (py, px, cout).
    # out[2m+py, 2n+px] += x[m+dm, n+dn] @ w[:, :, 1-2*dm+py, 1-2*dn+px].
    cin, cout = w.shape[0], w.shape[1]
    w4 = jnp.zeros((2, 2, cin, 2, 2, cout), jnp.float32)
    for dm in (0, 1):
        for dn in (0, 1):
            for py in (0, 1):
                for px in (0, 1):
                    kh = 1 - 2 * dm + py
                    kw = 1 - 2 * dn + px
                    if 0 <= kh <= 2 and 0 <= kw <= 2:
                        w4 = w4.at[dm, dn, :, py, px, :].set(w[:, :, kh, kw])
    return w4.reshape(4 * cin, 4 * cout)


def init_dcae_params(key, image_shape, latent_dim):
    c, w, h = image_shape
    assert w == h, "Image must be square"
    n_layers, w_ = divisible_by_two(w, 4)
    assert n_layers >= 1, "Image size not divisible by two"
    keys = iter(jax.random.split(key, 64))

    def nrm(shape, scale=0.1):
        return scale * jax.random.normal(next(keys), shape, jnp.float32)

    params = {"n_layers": n_layers, "w_": w_, "c": c, "latent_dim": latent_dim}

    # weights are pre-laid-out as bf16 matmul matrices at init (no per-step transposes)
    enc, in_ch, out_ch = [], c, 32
    for i in range(n_layers):
        out_ch = 32 * 2 ** i
        wt = nrm((out_ch, in_ch, 3, 3))
        enc.append(dict(wm=_conv_weight_matrix(wt).astype(jnp.bfloat16),
                        b=nrm((out_ch,)),
                        gamma=1.0 + nrm((out_ch,)),
                        beta=nrm((out_ch,))))
        in_ch = out_ch
    params["encoder"] = enc

    mid = out_ch
    params["mid_channels"] = mid
    flat = mid * w_ * w_
    params["to_z_wm"] = jnp.transpose(nrm((latent_dim, flat), 0.02)).astype(jnp.bfloat16)
    params["to_z_b"] = nrm((latent_dim,))
    params["from_z_wm"] = jnp.transpose(nrm((flat, latent_dim), 0.02)).astype(jnp.bfloat16)
    params["from_z_b"] = nrm((flat,))

    dec, in_ch, out_ch = [], mid, mid
    for i in range(n_layers - 1):
        out_ch = mid // 2 ** (i + 1)
        wt = nrm((in_ch, out_ch, 3, 3))
        dec.append(dict(wm4=_convT_weight_matrix(wt).astype(jnp.bfloat16),
                        b4=jnp.tile(nrm((out_ch,)), 4),
                        gamma=1.0 + nrm((out_ch,)),
                        beta=nrm((out_ch,))))
        in_ch = out_ch
    wt = nrm((out_ch, out_ch, 3, 3))
    dec.append(dict(wm4=_convT_weight_matrix(wt).astype(jnp.bfloat16),
                    b4=jnp.tile(nrm((out_ch,)), 4),
                    gamma=1.0 + nrm((out_ch,)),
                    beta=nrm((out_ch,))))
    params["decoder"] = dec

    params["out_wm"] = _conv_weight_matrix(nrm((c, out_ch, 3, 3))).astype(jnp.bfloat16)
    params["out_b"] = nrm((c,))
    return params


def dcae_forward(params, x_nchw):
    """Returns F.mse_loss(x, reconstruct(x)) (scalar), matching DCAE.forward."""
    b = x_nchw.shape[0]
    x_nhwc = jnp.transpose(x_nchw, (0, 2, 3, 1))

    # ---- encode ----
    hcur = x_nhwc.astype(jnp.bfloat16)
    for layer in params["encoder"]:
        hcur = conv2d_bn_lrelu(hcur, layer)
    # PyTorch flattens NCHW -> (B, C*H*W); replicate that ordering exactly.
    h_flat = jnp.transpose(hcur, (0, 3, 1, 2)).reshape(b, -1)
    z = pallas_matmul_bias(h_flat, params["to_z_wm"], params["to_z_b"],
                           out_dtype=jnp.bfloat16)

    # ---- decode ----
    g = pallas_matmul_bias(z, params["from_z_wm"], params["from_z_b"],
                           out_dtype=jnp.bfloat16)
    mid, w_ = params["mid_channels"], params["w_"]
    d = jnp.transpose(g.reshape(b, mid, w_, w_), (0, 2, 3, 1))   # NCHW view -> NHWC
    for layer in params["decoder"]:
        d = convtranspose2d_bn_lrelu(d, layer)
    rx = conv2d_output(d, params["out_wm"], params["out_b"], params["c"])
    rx_nchw = jnp.transpose(rx, (0, 3, 1, 2))

    # ---- loss ----
    return pallas_mse(x_nchw.astype(jnp.float32), rx_nchw)


if __name__ == "__main__":
    key = jax.random.PRNGKey(0)
    kp, kx = jax.random.split(key)

    image_shape = (4, 16, 16)   # (C, W, H) -> n_layers=2, w_=4, mid_channels=64
    latent_dim = 32
    batch = 2

    params = init_dcae_params(kp, image_shape, latent_dim)
    x = jax.random.normal(kx, (batch,) + image_shape, jnp.float32)

    loss = jax.jit(lambda xx: dcae_forward(params, xx))(x)
    loss = jax.block_until_ready(loss)
    assert loss.shape == () and bool(jnp.isfinite(loss))
    print("KERNEL_OK")
</pallas_src>

<mosaic_0001>
module attributes {stable_mosaic.version = 11 : i64} {
  func.func @kernel(%arg0: i32, %arg1: memref<128x36xbf16, #tpu.memory_space<vmem>>, %arg2: memref<36x128xbf16, #tpu.memory_space<vmem>>, %arg3: memref<1x128xf32, #tpu.memory_space<vmem>>, %arg4: memref<128x128xf32, #tpu.memory_space<vmem>>, %arg5: memref<1x128xf32, #tpu.memory_space<vmem>>, %arg6: memref<1x128xf32, #tpu.memory_space<vmem>>) attributes {dimension_semantics = [#tpu.dimension_semantics<arbitrary>], iteration_bounds = array<i64: 1>, scalar_prefetch = 0 : i64, scratch_operands = 0 : i64, tpu.core_type = #tpu.core_type<tc>, window_params = [{transform_indices = @transform_0, window_bounds = array<i64: 128, 36>}, {pipeline_mode = #tpu.pipeline_mode<synchronous>, transform_indices = @transform_1, window_bounds = array<i64: 36, 128>}, {pipeline_mode = #tpu.pipeline_mode<synchronous>, transform_indices = @transform_2, window_bounds = array<i64: 1, 128>}, {transform_indices = @transform_3, window_bounds = array<i64: 128, 128>}, {pipeline_mode = #tpu.pipeline_mode<synchronous>, transform_indices = @transform_4, window_bounds = array<i64: 1, 128>}, {pipeline_mode = #tpu.pipeline_mode<synchronous>, transform_indices = @transform_5, window_bounds = array<i64: 1, 128>}]} {
    %c0 = arith.constant 0 : index
    %c0_0 = arith.constant 0 : index
    %0 = vector.load %arg1[%c0, %c0_0] : memref<128x36xbf16, #tpu.memory_space<vmem>>, vector<128x36xbf16>
    %c0_1 = arith.constant 0 : index
    %c0_2 = arith.constant 0 : index
    %1 = vector.load %arg2[%c0_1, %c0_2] : memref<36x128xbf16, #tpu.memory_space<vmem>>, vector<36x128xbf16>
    %cst = arith.constant dense<0.000000e+00> : vector<128x128xf32>
    %2 = tpu.matmul %0, %1, %cst {dimension_numbers = #tpu.dot_dimension_numbers<[1], [0], [0], [1], [0, 0, 1, 1], [], []>} : vector<128x36xbf16>, vector<36x128xbf16>, vector<128x128xf32> -> vector<128x128xf32>
    %c0_3 = arith.constant 0 : index
    %c0_4 = arith.constant 0 : index
    %3 = vector.load %arg3[%c0_3, %c0_4] : memref<1x128xf32, #tpu.memory_space<vmem>>, vector<1x128xf32>
    %4 = vector.broadcast %3 : vector<1x128xf32> to vector<128x128xf32>
    %5 = arith.addf %2, %4 : vector<128x128xf32>
    %c0_5 = arith.constant 0 : index
    %c0_6 = arith.constant 0 : index
    %6 = vector.load %arg4[%c0_5, %c0_6] : memref<128x128xf32, #tpu.memory_space<vmem>>, vector<128x128xf32>
    tpu.vector_store %arg4[%c0_5, %c0_6], %5 {strides = array<i32>} : memref<128x128xf32, #tpu.memory_space<vmem>>, vector<128x128xf32>,
    %c0_i32 = arith.constant 0 : i32
    %7 = arith.cmpi eq, %arg0, %c0_i32 : i32
    %8 = arith.extui %7 : i1 to i32
    %c0_i32_7 = arith.constant 0 : i32
    %9 = arith.cmpi ne, %8, %c0_i32_7 : i32
    scf.if %9 {
      %cst_18 = arith.constant 0.000000e+00 : f32
      %21 = vector.broadcast %cst_18 : f32 to vector<1x128xf32>
      %c0_19 = arith.constant 0 : index
      %c0_20 = arith.constant 0 : index
      %22 = vector.load %arg5[%c0_19, %c0_20] : memref<1x128xf32, #tpu.memory_space<vmem>>, vector<1x128xf32>
      tpu.vector_store %arg5[%c0_19, %c0_20], %21 {strides = array<i32>} : memref<1x128xf32, #tpu.memory_space<vmem>>, vector<1x128xf32>,
      %cst_21 = arith.constant 0.000000e+00 : f32
      %23 = vector.broadcast %cst_21 : f32 to vector<1x128xf32>
      %c0_22 = arith.constant 0 : index
      %c0_23 = arith.constant 0 : index
      %24 = vector.load %arg6[%c0_22, %c0_23] : memref<1x128xf32, #tpu.memory_space<vmem>>, vector<1x128xf32>
      tpu.vector_store %arg6[%c0_22, %c0_23], %23 {strides = array<i32>} : memref<1x128xf32, #tpu.memory_space<vmem>>, vector<1x128xf32>,
    } else {
    }
    %c0_8 = arith.constant 0 : index
    %c0_9 = arith.constant 0 : index
    %10 = vector.load %arg5[%c0_8, %c0_9] : memref<1x128xf32, #tpu.memory_space<vmem>>, vector<1x128xf32>
    %cst_10 = arith.constant dense<0.000000e+00> : vector<128xf32>
    %11 = vector.multi_reduction <add>, %5, %cst_10 [0] : vector<128x128xf32> to vector<128xf32>
    %12 = vector.shape_cast %11 : vector<128xf32> to vector<1x128xf32>
    %13 = arith.addf %10, %12 : vector<1x128xf32>
    %c0_11 = arith.constant 0 : index
    %c0_12 = arith.constant 0 : index
    %14 = vector.load %arg5[%c0_11, %c0_12] : memref<1x128xf32, #tpu.memory_space<vmem>>, vector<1x128xf32>
    tpu.vector_store %arg5[%c0_11, %c0_12], %13 {strides = array<i32>} : memref<1x128xf32, #tpu.memory_space<vmem>>, vector<1x128xf32>,
    %c0_13 = arith.constant 0 : index
    %c0_14 = arith.constant 0 : index
    %15 = vector.load %arg6[%c0_13, %c0_14] : memref<1x128xf32, #tpu.memory_space<vmem>>, vector<1x128xf32>
    %16 = arith.mulf %5, %5 : vector<128x128xf32>
    %cst_15 = arith.constant dense<0.000000e+00> : vector<128xf32>
    %17 = vector.multi_reduction <add>, %16, %cst_15 [0] : vector<128x128xf32> to vector<128xf32>
    %18 = vector.shape_cast %17 : vector<128xf32> to vector<1x128xf32>
    %19 = arith.addf %15, %18 : vector<1x128xf32>
    %c0_16 = arith.constant 0 : index
    %c0_17 = arith.constant 0 : index
    %20 = vector.load %arg6[%c0_16, %c0_17] : memref<1x128xf32, #tpu.memory_space<vmem>>, vector<1x128xf32>
    tpu.vector_store %arg6[%c0_16, %c0_17], %19 {strides = array<i32>} : memref<1x128xf32, #tpu.memory_space<vmem>>, vector<1x128xf32>,
    return
  }
  func.func @transform_0(%arg0: i32) -> (i32, i32) {
    %c0_i32 = arith.constant 0 : i32
    %c0_i32_0 = arith.constant 0 : i32
    return %arg0, %c0_i32 : i32, i32
  }
  func.func @transform_1(%arg0: i32) -> (i32, i32) {
    %c0_i32 = arith.constant 0 : i32
    %c0_i32_0 = arith.constant 0 : i32
    %c0_i32_1 = arith.constant 0 : i32
    return %c0_i32, %c0_i32_0 : i32, i32
  }
  func.func @transform_2(%arg0: i32) -> (i32, i32) {
    %c0_i32 = arith.constant 0 : i32
    %c0_i32_0 = arith.constant 0 : i32
    %c0_i32_1 = arith.constant 0 : i32
    return %c0_i32, %c0_i32_0 : i32, i32
  }
  func.func @transform_3(%arg0: i32) -> (i32, i32) {
    %c0_i32 = arith.constant 0 : i32
    %c0_i32_0 = arith.constant 0 : i32
    return %arg0, %c0_i32 : i32, i32
  }
  func.func @transform_4(%arg0: i32) -> (i32, i32) {
    %c0_i32 = arith.constant 0 : i32
    %c0_i32_0 = arith.constant 0 : i32
    %c0_i32_1 = arith.constant 0 : i32
    return %c0_i32, %c0_i32_0 : i32, i32
  }
  func.func @transform_5(%arg0: i32) -> (i32, i32) {
    %c0_i32 = arith.constant 0 : i32
    %c0_i32_0 = arith.constant 0 : i32
    %c0_i32_1 = arith.constant 0 : i32
    return %c0_i32, %c0_i32_0 : i32, i32
  }
}

module attributes {stable_mosaic.version = 11 : i64} {
  func.func @_bn_lrelu_kernel(%arg0: i32, %arg1: memref<128x128xf32, #tpu.memory_space<vmem>>, %arg2: memref<1x128xf32, #tpu.memory_space<vmem>>, %arg3: memref<1x128xf32, #tpu.memory_space<vmem>>, %arg4: memref<128x128xbf16, #tpu.memory_space<vmem>>) attributes {dimension_semantics = [#tpu.dimension_semantics<parallel>], iteration_bounds = array<i64: 1>, scalar_prefetch = 0 : i64, scratch_operands = 0 : i64, tpu.core_type = #tpu.core_type<tc>, window_params = [{transform_indices = @transform_0, window_bounds = array<i64: 128, 128>}, {pipeline_mode = #tpu.pipeline_mode<synchronous>, transform_indices = @transform_1, window_bounds = array<i64: 1, 128>}, {pipeline_mode = #tpu.pipeline_mode<synchronous>, transform_indices = @transform_2, window_bounds = array<i64: 1, 128>}, {transform_indices = @transform_3, window_bounds = array<i64: 128, 128>}]} {
    %c0 = arith.constant 0 : index
    %c0_0 = arith.constant 0 : index
    %0 = vector.load %arg1[%c0, %c0_0] : memref<128x128xf32, #tpu.memory_space<vmem>>, vector<128x128xf32>
    %c0_1 = arith.constant 0 : index
    %c0_2 = arith.constant 0 : index
    %1 = vector.load %arg2[%c0_1, %c0_2] : memref<1x128xf32, #tpu.memory_space<vmem>>, vector<1x128xf32>
    %2 = vector.broadcast %1 : vector<1x128xf32> to vector<128x128xf32>
    %3 = arith.mulf %0, %2 : vector<128x128xf32>
    %c0_3 = arith.constant 0 : index
    %c0_4 = arith.constant 0 : index
    %4 = vector.load %arg3[%c0_3, %c0_4] : memref<1x128xf32, #tpu.memory_space<vmem>>, vector<1x128xf32>
    %5 = vector.broadcast %4 : vector<1x128xf32> to vector<128x128xf32>
    %6 = arith.addf %3, %5 : vector<128x128xf32>
    %cst = arith.constant 0.000000e+00 : f32
    %7 = vector.broadcast %cst : f32 to vector<128x128xf32>
    %8 = arith.cmpf oge, %6, %7 : vector<128x128xf32>
    %cst_5 = arith.constant 0.00999999977 : f32
    %9 = vector.broadcast %cst_5 : f32 to vector<128x128xf32>
    %10 = arith.mulf %9, %6 : vector<128x128xf32>
    %11 = arith.select %8, %6, %10 : vector<128x128xi1>, vector<128x128xf32>
    %12 = arith.truncf %11 : vector<128x128xf32> to vector<128x128xbf16>
    %c0_6 = arith.constant 0 : index
    %c0_7 = arith.constant 0 : index
    %13 = vector.load %arg4[%c0_6, %c0_7] : memref<128x128xbf16, #tpu.memory_space<vmem>>, vector<128x128xbf16>
    tpu.vector_store %arg4[%c0_6, %c0_7], %12 {strides = array<i32>} : memref<128x128xbf16, #tpu.memory_space<vmem>>, vector<128x128xbf16>,
    return
  }
  func.func @transform_0(%arg0: i32) -> (i32, i32) {
    %c0_i32 = arith.constant 0 : i32
    %c0_i32_0 = arith.constant 0 : i32
    return %arg0, %c0_i32 : i32, i32
  }
  func.func @transform_1(%arg0: i32) -> (i32, i32) {
    %c0_i32 = arith.constant 0 : i32
    %c0_i32_0 = arith.constant 0 : i32
    %c0_i32_1 = arith.constant 0 : i32
    return %c0_i32, %c0_i32_0 : i32, i32
  }
  func.func @transform_2(%arg0: i32) -> (i32, i32) {
    %c0_i32 = arith.constant 0 : i32
    %c0_i32_0 = arith.constant 0 : i32
    %c0_i32_1 = arith.constant 0 : i32
    return %c0_i32, %c0_i32_0 : i32, i32
  }
  func.func @transform_3(%arg0: i32) -> (i32, i32) {
    %c0_i32 = arith.constant 0 : i32
    %c0_i32_0 = arith.constant 0 : i32
    return %arg0, %c0_i32 : i32, i32
  }
}

module attributes {stable_mosaic.version = 11 : i64} {
  func.func @kernel(%arg0: i32, %arg1: memref<32x288xbf16, #tpu.memory_space<vmem>>, %arg2: memref<288x128xbf16, #tpu.memory_space<vmem>>, %arg3: memref<1x128xf32, #tpu.memory_space<vmem>>, %arg4: memref<32x128xf32, #tpu.memory_space<vmem>>, %arg5: memref<1x128xf32, #tpu.memory_space<vmem>>, %arg6: memref<1x128xf32, #tpu.memory_space<vmem>>) attributes {dimension_semantics = [#tpu.dimension_semantics<arbitrary>], iteration_bounds = array<i64: 1>, scalar_prefetch = 0 : i64, scratch_operands = 0 : i64, tpu.core_type = #tpu.core_type<tc>, window_params = [{transform_indices = @transform_0, window_bounds = array<i64: 32, 288>}, {pipeline_mode = #tpu.pipeline_mode<synchronous>, transform_indices = @transform_1, window_bounds = array<i64: 288, 128>}, {pipeline_mode = #tpu.pipeline_mode<synchronous>, transform_indices = @transform_2, window_bounds = array<i64: 1, 128>}, {transform_indices = @transform_3, window_bounds = array<i64: 32, 128>}, {pipeline_mode = #tpu.pipeline_mode<synchronous>, transform_indices = @transform_4, window_bounds = array<i64: 1, 128>}, {pipeline_mode = #tpu.pipeline_mode<synchronous>, transform_indices = @transform_5, window_bounds = array<i64: 1, 128>}]} {
    %c0 = arith.constant 0 : index
    %c0_0 = arith.constant 0 : index
    %0 = vector.load %arg1[%c0, %c0_0] : memref<32x288xbf16, #tpu.memory_space<vmem>>, vector<32x288xbf16>
    %c0_1 = arith.constant 0 : index
    %c0_2 = arith.constant 0 : index
    %1 = vector.load %arg2[%c0_1, %c0_2] : memref<288x128xbf16, #tpu.memory_space<vmem>>, vector<288x128xbf16>
    %cst = arith.constant dense<0.000000e+00> : vector<32x128xf32>
    %2 = tpu.matmul %0, %1, %cst {dimension_numbers = #tpu.dot_dimension_numbers<[1], [0], [0], [1], [0, 0, 1, 1], [], []>} : vector<32x288xbf16>, vector<288x128xbf16>, vector<32x128xf32> -> vector<32x128xf32>
    %c0_3 = arith.constant 0 : index
    %c0_4 = arith.constant 0 : index
    %3 = vector.load %arg3[%c0_3, %c0_4] : memref<1x128xf32, #tpu.memory_space<vmem>>, vector<1x128xf32>
    %4 = vector.broadcast %3 : vector<1x128xf32> to vector<32x128xf32>
    %5 = arith.addf %2, %4 : vector<32x128xf32>
    %c0_5 = arith.constant 0 : index
    %c0_6 = arith.constant 0 : index
    %6 = vector.load %arg4[%c0_5, %c0_6] : memref<32x128xf32, #tpu.memory_space<vmem>>, vector<32x128xf32>
    tpu.vector_store %arg4[%c0_5, %c0_6], %5 {strides = array<i32>} : memref<32x128xf32, #tpu.memory_space<vmem>>, vector<32x128xf32>,
    %c0_i32 = arith.constant 0 : i32
    %7 = arith.cmpi eq, %arg0, %c0_i32 : i32
    %8 = arith.extui %7 : i1 to i32
    %c0_i32_7 = arith.constant 0 : i32
    %9 = arith.cmpi ne, %8, %c0_i32_7 : i32
    scf.if %9 {
      %cst_18 = arith.constant 0.000000e+00 : f32
      %21 = vector.broadcast %cst_18 : f32 to vector<1x128xf32>
      %c0_19 = arith.constant 0 : index
      %c0_20 = arith.constant 0 : index
      %22 = vector.load %arg5[%c0_19, %c0_20] : memref<1x128xf32, #tpu.memory_space<vmem>>, vector<1x128xf32>
      tpu.vector_store %arg5[%c0_19, %c0_20], %21 {strides = array<i32>} : memref<1x128xf32, #tpu.memory_space<vmem>>, vector<1x128xf32>,
      %cst_21 = arith.constant 0.000000e+00 : f32
      %23 = vector.broadcast %cst_21 : f32 to vector<1x128xf32>
      %c0_22 = arith.constant 0 : index
      %c0_23 = arith.constant 0 : index
      %24 = vector.load %arg6[%c0_22, %c0_23] : memref<1x128xf32, #tpu.memory_space<vmem>>, vector<1x128xf32>
      tpu.vector_store %arg6[%c0_22, %c0_23], %23 {strides = array<i32>} : memref<1x128xf32, #tpu.memory_space<vmem>>, vector<1x128xf32>,
    } else {
    }
    %c0_8 = arith.constant 0 : index
    %c0_9 = arith.constant 0 : index
    %10 = vector.load %arg5[%c0_8, %c0_9] : memref<1x128xf32, #tpu.memory_space<vmem>>, vector<1x128xf32>
    %cst_10 = arith.constant dense<0.000000e+00> : vector<128xf32>
    %11 = vector.multi_reduction <add>, %5, %cst_10 [0] : vector<32x128xf32> to vector<128xf32>
    %12 = vector.shape_cast %11 : vector<128xf32> to vector<1x128xf32>
    %13 = arith.addf %10, %12 : vector<1x128xf32>
    %c0_11 = arith.constant 0 : index
    %c0_12 = arith.constant 0 : index
    %14 = vector.load %arg5[%c0_11, %c0_12] : memref<1x128xf32, #tpu.memory_space<vmem>>, vector<1x128xf32>
    tpu.vector_store %arg5[%c0_11, %c0_12], %13 {strides = array<i32>} : memref<1x128xf32, #tpu.memory_space<vmem>>, vector<1x128xf32>,
    %c0_13 = arith.constant 0 : index
    %c0_14 = arith.constant 0 : index
    %15 = vector.load %arg6[%c0_13, %c0_14] : memref<1x128xf32, #tpu.memory_space<vmem>>, vector<1x128xf32>
    %16 = arith.mulf %5, %5 : vector<32x128xf32>
    %cst_15 = arith.constant dense<0.000000e+00> : vector<128xf32>
    %17 = vector.multi_reduction <add>, %16, %cst_15 [0] : vector<32x128xf32> to vector<128xf32>
    %18 = vector.shape_cast %17 : vector<128xf32> to vector<1x128xf32>
    %19 = arith.addf %15, %18 : vector<1x128xf32>
    %c0_16 = arith.constant 0 : index
    %c0_17 = arith.constant 0 : index
    %20 = vector.load %arg6[%c0_16, %c0_17] : memref<1x128xf32, #tpu.memory_space<vmem>>, vector<1x128xf32>
    tpu.vector_store %arg6[%c0_16, %c0_17], %19 {strides = array<i32>} : memref<1x128xf32, #tpu.memory_space<vmem>>, vector<1x128xf32>,
    return
  }
  func.func @transform_0(%arg0: i32) -> (i32, i32) {
    %c0_i32 = arith.constant 0 : i32
    %c0_i32_0 = arith.constant 0 : i32
    return %arg0, %c0_i32 : i32, i32
  }
  func.func @transform_1(%arg0: i32) -> (i32, i32) {
    %c0_i32 = arith.constant 0 : i32
    %c0_i32_0 = arith.constant 0 : i32
    %c0_i32_1 = arith.constant 0 : i32
    return %c0_i32, %c0_i32_0 : i32, i32
  }
  func.func @transform_2(%arg0: i32) -> (i32, i32) {
    %c0_i32 = arith.constant 0 : i32
    %c0_i32_0 = arith.constant 0 : i32
    %c0_i32_1 = arith.constant 0 : i32
    return %c0_i32, %c0_i32_0 : i32, i32
  }
  func.func @transform_3(%arg0: i32) -> (i32, i32) {
    %c0_i32 = arith.constant 0 : i32
    %c0_i32_0 = arith.constant 0 : i32
    return %arg0, %c0_i32 : i32, i32
  }
  func.func @transform_4(%arg0: i32) -> (i32, i32) {
    %c0_i32 = arith.constant 0 : i32
    %c0_i32_0 = arith.constant 0 : i32
    %c0_i32_1 = arith.constant 0 : i32
    return %c0_i32, %c0_i32_0 : i32, i32
  }
  func.func @transform_5(%arg0: i32) -> (i32, i32) {
    %c0_i32 = arith.constant 0 : i32
    %c0_i32_0 = arith.constant 0 : i32
    %c0_i32_1 = arith.constant 0 : i32
    return %c0_i32, %c0_i32_0 : i32, i32
  }
}

module attributes {stable_mosaic.version = 11 : i64} {
  func.func @_bn_lrelu_kernel(%arg0: i32, %arg1: memref<32x128xf32, #tpu.memory_space<vmem>>, %arg2: memref<1x128xf32, #tpu.memory_space<vmem>>, %arg3: memref<1x128xf32, #tpu.memory_space<vmem>>, %arg4: memref<32x128xbf16, #tpu.memory_space<vmem>>) attributes {dimension_semantics = [#tpu.dimension_semantics<parallel>], iteration_bounds = array<i64: 1>, scalar_prefetch = 0 : i64, scratch_operands = 0 : i64, tpu.core_type = #tpu.core_type<tc>, window_params = [{transform_indices = @transform_0, window_bounds = array<i64: 32, 128>}, {pipeline_mode = #tpu.pipeline_mode<synchronous>, transform_indices = @transform_1, window_bounds = array<i64: 1, 128>}, {pipeline_mode = #tpu.pipeline_mode<synchronous>, transform_indices = @transform_2, window_bounds = array<i64: 1, 128>}, {transform_indices = @transform_3, window_bounds = array<i64: 32, 128>}]} {
    %c0 = arith.constant 0 : index
    %c0_0 = arith.constant 0 : index
    %0 = vector.load %arg1[%c0, %c0_0] : memref<32x128xf32, #tpu.memory_space<vmem>>, vector<32x128xf32>
    %c0_1 = arith.constant 0 : index
    %c0_2 = arith.constant 0 : index
    %1 = vector.load %arg2[%c0_1, %c0_2] : memref<1x128xf32, #tpu.memory_space<vmem>>, vector<1x128xf32>
    %2 = vector.broadcast %1 : vector<1x128xf32> to vector<32x128xf32>
    %3 = arith.mulf %0, %2 : vector<32x128xf32>
    %c0_3 = arith.constant 0 : index
    %c0_4 = arith.constant 0 : index
    %4 = vector.load %arg3[%c0_3, %c0_4] : memref<1x128xf32, #tpu.memory_space<vmem>>, vector<1x128xf32>
    %5 = vector.broadcast %4 : vector<1x128xf32> to vector<32x128xf32>
    %6 = arith.addf %3, %5 : vector<32x128xf32>
    %cst = arith.constant 0.000000e+00 : f32
    %7 = vector.broadcast %cst : f32 to vector<32x128xf32>
    %8 = arith.cmpf oge, %6, %7 : vector<32x128xf32>
    %cst_5 = arith.constant 0.00999999977 : f32
    %9 = vector.broadcast %cst_5 : f32 to vector<32x128xf32>
    %10 = arith.mulf %9, %6 : vector<32x128xf32>
    %11 = arith.select %8, %6, %10 : vector<32x128xi1>, vector<32x128xf32>
    %12 = arith.truncf %11 : vector<32x128xf32> to vector<32x128xbf16>
    %c0_6 = arith.constant 0 : index
    %c0_7 = arith.constant 0 : index
    %13 = vector.load %arg4[%c0_6, %c0_7] : memref<32x128xbf16, #tpu.memory_space<vmem>>, vector<32x128xbf16>
    tpu.vector_store %arg4[%c0_6, %c0_7], %12 {strides = array<i32>} : memref<32x128xbf16, #tpu.memory_space<vmem>>, vector<32x128xbf16>,
    return
  }
  func.func @transform_0(%arg0: i32) -> (i32, i32) {
    %c0_i32 = arith.constant 0 : i32
    %c0_i32_0 = arith.constant 0 : i32
    return %arg0, %c0_i32 : i32, i32
  }
  func.func @transform_1(%arg0: i32) -> (i32, i32) {
    %c0_i32 = arith.constant 0 : i32
    %c0_i32_0 = arith.constant 0 : i32
    %c0_i32_1 = arith.constant 0 : i32
    return %c0_i32, %c0_i32_0 : i32, i32
  }
  func.func @transform_2(%arg0: i32) -> (i32, i32) {
    %c0_i32 = arith.constant 0 : i32
    %c0_i32_0 = arith.constant 0 : i32
    %c0_i32_1 = arith.constant 0 : i32
    return %c0_i32, %c0_i32_0 : i32, i32
  }
  func.func @transform_3(%arg0: i32) -> (i32, i32) {
    %c0_i32 = arith.constant 0 : i32
    %c0_i32_0 = arith.constant 0 : i32
    return %arg0, %c0_i32 : i32, i32
  }
}

module attributes {stable_mosaic.version = 11 : i64} {
  func.func @_matmul_bias_kernel(%arg0: i32, %arg1: memref<16x1024xbf16, #tpu.memory_space<vmem>>, %arg2: memref<1024x128xbf16, #tpu.memory_space<vmem>>, %arg3: memref<1x128xf32, #tpu.memory_space<vmem>>, %arg4: memref<16x128xbf16, #tpu.memory_space<vmem>>) attributes {dimension_semantics = [#tpu.dimension_semantics<parallel>], iteration_bounds = array<i64: 1>, scalar_prefetch = 0 : i64, scratch_operands = 0 : i64, tpu.core_type = #tpu.core_type<tc>, window_params = [{transform_indices = @transform_0, window_bounds = array<i64: 16, 1024>}, {pipeline_mode = #tpu.pipeline_mode<synchronous>, transform_indices = @transform_1, window_bounds = array<i64: 1024, 128>}, {pipeline_mode = #tpu.pipeline_mode<synchronous>, transform_indices = @transform_2, window_bounds = array<i64: 1, 128>}, {transform_indices = @transform_3, window_bounds = array<i64: 16, 128>}]} {
    %c0 = arith.constant 0 : index
    %c0_0 = arith.constant 0 : index
    %0 = vector.load %arg1[%c0, %c0_0] : memref<16x1024xbf16, #tpu.memory_space<vmem>>, vector<16x1024xbf16>
    %c0_1 = arith.constant 0 : index
    %c0_2 = arith.constant 0 : index
    %1 = vector.load %arg2[%c0_1, %c0_2] : memref<1024x128xbf16, #tpu.memory_space<vmem>>, vector<1024x128xbf16>
    %cst = arith.constant dense<0.000000e+00> : vector<16x128xf32>
    %2 = tpu.matmul %0, %1, %cst {dimension_numbers = #tpu.dot_dimension_numbers<[1], [0], [0], [1], [0, 0, 1, 1], [], []>} : vector<16x1024xbf16>, vector<1024x128xbf16>, vector<16x128xf32> -> vector<16x128xf32>
    %c0_3 = arith.constant 0 : index
    %c0_4 = arith.constant 0 : index
    %3 = vector.load %arg3[%c0_3, %c0_4] : memref<1x128xf32, #tpu.memory_space<vmem>>, vector<1x128xf32>
    %4 = vector.broadcast %3 : vector<1x128xf32> to vector<16x128xf32>
    %5 = arith.addf %2, %4 : vector<16x128xf32>
    %6 = arith.truncf %5 : vector<16x128xf32> to vector<16x128xbf16>
    %c0_5 = arith.constant 0 : index
    %c0_6 = arith.constant 0 : index
    %7 = vector.load %arg4[%c0_5, %c0_6] : memref<16x128xbf16, #tpu.memory_space<vmem>>, vector<16x128xbf16>
    tpu.vector_store %arg4[%c0_5, %c0_6], %6 {strides = array<i32>} : memref<16x128xbf16, #tpu.memory_space<vmem>>, vector<16x128xbf16>,
    return
  }
  func.func @transform_0(%arg0: i32) -> (i32, i32) {
    %c0_i32 = arith.constant 0 : i32
    %c0_i32_0 = arith.constant 0 : i32
    return %arg0, %c0_i32 : i32, i32
  }
  func.func @transform_1(%arg0: i32) -> (i32, i32) {
    %c0_i32 = arith.constant 0 : i32
    %c0_i32_0 = arith.constant 0 : i32
    %c0_i32_1 = arith.constant 0 : i32
    return %c0_i32, %c0_i32_0 : i32, i32
  }
  func.func @transform_2(%arg0: i32) -> (i32, i32) {
    %c0_i32 = arith.constant 0 : i32
    %c0_i32_0 = arith.constant 0 : i32
    %c0_i32_1 = arith.constant 0 : i32
    return %c0_i32, %c0_i32_0 : i32, i32
  }
  func.func @transform_3(%arg0: i32) -> (i32, i32) {
    %c0_i32 = arith.constant 0 : i32
    %c0_i32_0 = arith.constant 0 : i32
    return %arg0, %c0_i32 : i32, i32
  }
}

module attributes {stable_mosaic.version = 11 : i64} {
  func.func @_matmul_bias_kernel(%arg0: i32, %arg1: memref<16x32xbf16, #tpu.memory_space<vmem>>, %arg2: memref<32x1024xbf16, #tpu.memory_space<vmem>>, %arg3: memref<1x1024xf32, #tpu.memory_space<vmem>>, %arg4: memref<16x1024xbf16, #tpu.memory_space<vmem>>) attributes {dimension_semantics = [#tpu.dimension_semantics<parallel>], iteration_bounds = array<i64: 1>, scalar_prefetch = 0 : i64, scratch_operands = 0 : i64, tpu.core_type = #tpu.core_type<tc>, window_params = [{transform_indices = @transform_0, window_bounds = array<i64: 16, 32>}, {pipeline_mode = #tpu.pipeline_mode<synchronous>, transform_indices = @transform_1, window_bounds = array<i64: 32, 1024>}, {pipeline_mode = #tpu.pipeline_mode<synchronous>, transform_indices = @transform_2, window_bounds = array<i64: 1, 1024>}, {transform_indices = @transform_3, window_bounds = array<i64: 16, 1024>}]} {
    %c0 = arith.constant 0 : index
    %c0_0 = arith.constant 0 : index
    %0 = vector.load %arg1[%c0, %c0_0] : memref<16x32xbf16, #tpu.memory_space<vmem>>, vector<16x32xbf16>
    %c0_1 = arith.constant 0 : index
    %c0_2 = arith.constant 0 : index
    %1 = vector.load %arg2[%c0_1, %c0_2] : memref<32x1024xbf16, #tpu.memory_space<vmem>>, vector<32x1024xbf16>
    %cst = arith.constant dense<0.000000e+00> : vector<16x1024xf32>
    %2 = tpu.matmul %0, %1, %cst {dimension_numbers = #tpu.dot_dimension_numbers<[1], [0], [0], [1], [0, 0, 1, 1], [], []>} : vector<16x32xbf16>, vector<32x1024xbf16>, vector<16x1024xf32> -> vector<16x1024xf32>
    %c0_3 = arith.constant 0 : index
    %c0_4 = arith.constant 0 : index
    %3 = vector.load %arg3[%c0_3, %c0_4] : memref<1x1024xf32, #tpu.memory_space<vmem>>, vector<1x1024xf32>
    %4 = vector.broadcast %3 : vector<1x1024xf32> to vector<16x1024xf32>
    %5 = arith.addf %2, %4 : vector<16x1024xf32>
    %6 = arith.truncf %5 : vector<16x1024xf32> to vector<16x1024xbf16>
    %c0_5 = arith.constant 0 : index
    %c0_6 = arith.constant 0 : index
    %7 = vector.load %arg4[%c0_5, %c0_6] : memref<16x1024xbf16, #tpu.memory_space<vmem>>, vector<16x1024xbf16>
    tpu.vector_store %arg4[%c0_5, %c0_6], %6 {strides = array<i32>} : memref<16x1024xbf16, #tpu.memory_space<vmem>>, vector<16x1024xbf16>,
    return
  }
  func.func @transform_0(%arg0: i32) -> (i32, i32) {
    %c0_i32 = arith.constant 0 : i32
    %c0_i32_0 = arith.constant 0 : i32
    return %arg0, %c0_i32 : i32, i32
  }
  func.func @transform_1(%arg0: i32) -> (i32, i32) {
    %c0_i32 = arith.constant 0 : i32
    %c0_i32_0 = arith.constant 0 : i32
    %c0_i32_1 = arith.constant 0 : i32
    return %c0_i32, %c0_i32_0 : i32, i32
  }
  func.func @transform_2(%arg0: i32) -> (i32, i32) {
    %c0_i32 = arith.constant 0 : i32
    %c0_i32_0 = arith.constant 0 : i32
    %c0_i32_1 = arith.constant 0 : i32
    return %c0_i32, %c0_i32_0 : i32, i32
  }
  func.func @transform_3(%arg0: i32) -> (i32, i32) {
    %c0_i32 = arith.constant 0 : i32
    %c0_i32_0 = arith.constant 0 : i32
    return %arg0, %c0_i32 : i32, i32
  }
}

module attributes {stable_mosaic.version = 11 : i64} {
  func.func @kernel(%arg0: i32, %arg1: memref<32x256xbf16, #tpu.memory_space<vmem>>, %arg2: memref<256x128xbf16, #tpu.memory_space<vmem>>, %arg3: memref<1x128xf32, #tpu.memory_space<vmem>>, %arg4: memref<32x128xf32, #tpu.memory_space<vmem>>, %arg5: memref<1x128xf32, #tpu.memory_space<vmem>>, %arg6: memref<1x128xf32, #tpu.memory_space<vmem>>) attributes {dimension_semantics = [#tpu.dimension_semantics<arbitrary>], iteration_bounds = array<i64: 1>, scalar_prefetch = 0 : i64, scratch_operands = 0 : i64, tpu.core_type = #tpu.core_type<tc>, window_params = [{transform_indices = @transform_0, window_bounds = array<i64: 32, 256>}, {pipeline_mode = #tpu.pipeline_mode<synchronous>, transform_indices = @transform_1, window_bounds = array<i64: 256, 128>}, {pipeline_mode = #tpu.pipeline_mode<synchronous>, transform_indices = @transform_2, window_bounds = array<i64: 1, 128>}, {transform_indices = @transform_3, window_bounds = array<i64: 32, 128>}, {pipeline_mode = #tpu.pipeline_mode<synchronous>, transform_indices = @transform_4, window_bounds = array<i64: 1, 128>}, {pipeline_mode = #tpu.pipeline_mode<synchronous>, transform_indices = @transform_5, window_bounds = array<i64: 1, 128>}]} {
    %c0 = arith.constant 0 : index
    %c0_0 = arith.constant 0 : index
    %0 = vector.load %arg1[%c0, %c0_0] : memref<32x256xbf16, #tpu.memory_space<vmem>>, vector<32x256xbf16>
    %c0_1 = arith.constant 0 : index
    %c0_2 = arith.constant 0 : index
    %1 = vector.load %arg2[%c0_1, %c0_2] : memref<256x128xbf16, #tpu.memory_space<vmem>>, vector<256x128xbf16>
    %cst = arith.constant dense<0.000000e+00> : vector<32x128xf32>
    %2 = tpu.matmul %0, %1, %cst {dimension_numbers = #tpu.dot_dimension_numbers<[1], [0], [0], [1], [0, 0, 1, 1], [], []>} : vector<32x256xbf16>, vector<256x128xbf16>, vector<32x128xf32> -> vector<32x128xf32>
    %c0_3 = arith.constant 0 : index
    %c0_4 = arith.constant 0 : index
    %3 = vector.load %arg3[%c0_3, %c0_4] : memref<1x128xf32, #tpu.memory_space<vmem>>, vector<1x128xf32>
    %4 = vector.broadcast %3 : vector<1x128xf32> to vector<32x128xf32>
    %5 = arith.addf %2, %4 : vector<32x128xf32>
    %c0_5 = arith.constant 0 : index
    %c0_6 = arith.constant 0 : index
    %6 = vector.load %arg4[%c0_5, %c0_6] : memref<32x128xf32, #tpu.memory_space<vmem>>, vector<32x128xf32>
    tpu.vector_store %arg4[%c0_5, %c0_6], %5 {strides = array<i32>} : memref<32x128xf32, #tpu.memory_space<vmem>>, vector<32x128xf32>,
    %c0_i32 = arith.constant 0 : i32
    %7 = arith.cmpi eq, %arg0, %c0_i32 : i32
    %8 = arith.extui %7 : i1 to i32
    %c0_i32_7 = arith.constant 0 : i32
    %9 = arith.cmpi ne, %8, %c0_i32_7 : i32
    scf.if %9 {
      %cst_18 = arith.constant 0.000000e+00 : f32
      %21 = vector.broadcast %cst_18 : f32 to vector<1x128xf32>
      %c0_19 = arith.constant 0 : index
      %c0_20 = arith.constant 0 : index
      %22 = vector.load %arg5[%c0_19, %c0_20] : memref<1x128xf32, #tpu.memory_space<vmem>>, vector<1x128xf32>
      tpu.vector_store %arg5[%c0_19, %c0_20], %21 {strides = array<i32>} : memref<1x128xf32, #tpu.memory_space<vmem>>, vector<1x128xf32>,
      %cst_21 = arith.constant 0.000000e+00 : f32
      %23 = vector.broadcast %cst_21 : f32 to vector<1x128xf32>
      %c0_22 = arith.constant 0 : index
      %c0_23 = arith.constant 0 : index
      %24 = vector.load %arg6[%c0_22, %c0_23] : memref<1x128xf32, #tpu.memory_space<vmem>>, vector<1x128xf32>
      tpu.vector_store %arg6[%c0_22, %c0_23], %23 {strides = array<i32>} : memref<1x128xf32, #tpu.memory_space<vmem>>, vector<1x128xf32>,
    } else {
    }
    %c0_8 = arith.constant 0 : index
    %c0_9 = arith.constant 0 : index
    %10 = vector.load %arg5[%c0_8, %c0_9] : memref<1x128xf32, #tpu.memory_space<vmem>>, vector<1x128xf32>
    %cst_10 = arith.constant dense<0.000000e+00> : vector<128xf32>
    %11 = vector.multi_reduction <add>, %5, %cst_10 [0] : vector<32x128xf32> to vector<128xf32>
    %12 = vector.shape_cast %11 : vector<128xf32> to vector<1x128xf32>
    %13 = arith.addf %10, %12 : vector<1x128xf32>
    %c0_11 = arith.constant 0 : index
    %c0_12 = arith.constant 0 : index
    %14 = vector.load %arg5[%c0_11, %c0_12] : memref<1x128xf32, #tpu.memory_space<vmem>>, vector<1x128xf32>
    tpu.vector_store %arg5[%c0_11, %c0_12], %13 {strides = array<i32>} : memref<1x128xf32, #tpu.memory_space<vmem>>, vector<1x128xf32>,
    %c0_13 = arith.constant 0 : index
    %c0_14 = arith.constant 0 : index
    %15 = vector.load %arg6[%c0_13, %c0_14] : memref<1x128xf32, #tpu.memory_space<vmem>>, vector<1x128xf32>
    %16 = arith.mulf %5, %5 : vector<32x128xf32>
    %cst_15 = arith.constant dense<0.000000e+00> : vector<128xf32>
    %17 = vector.multi_reduction <add>, %16, %cst_15 [0] : vector<32x128xf32> to vector<128xf32>
    %18 = vector.shape_cast %17 : vector<128xf32> to vector<1x128xf32>
    %19 = arith.addf %15, %18 : vector<1x128xf32>
    %c0_16 = arith.constant 0 : index
    %c0_17 = arith.constant 0 : index
    %20 = vector.load %arg6[%c0_16, %c0_17] : memref<1x128xf32, #tpu.memory_space<vmem>>, vector<1x128xf32>
    tpu.vector_store %arg6[%c0_16, %c0_17], %19 {strides = array<i32>} : memref<1x128xf32, #tpu.memory_space<vmem>>, vector<1x128xf32>,
    return
  }
  func.func @transform_0(%arg0: i32) -> (i32, i32) {
    %c0_i32 = arith.constant 0 : i32
    %c0_i32_0 = arith.constant 0 : i32
    return %arg0, %c0_i32 : i32, i32
  }
  func.func @transform_1(%arg0: i32) -> (i32, i32) {
    %c0_i32 = arith.constant 0 : i32
    %c0_i32_0 = arith.constant 0 : i32
    %c0_i32_1 = arith.constant 0 : i32
    return %c0_i32, %c0_i32_0 : i32, i32
  }
  func.func @transform_2(%arg0: i32) -> (i32, i32) {
    %c0_i32 = arith.constant 0 : i32
    %c0_i32_0 = arith.constant 0 : i32
    %c0_i32_1 = arith.constant 0 : i32
    return %c0_i32, %c0_i32_0 : i32, i32
  }
  func.func @transform_3(%arg0: i32) -> (i32, i32) {
    %c0_i32 = arith.constant 0 : i32
    %c0_i32_0 = arith.constant 0 : i32
    return %arg0, %c0_i32 : i32, i32
  }
  func.func @transform_4(%arg0: i32) -> (i32, i32) {
    %c0_i32 = arith.constant 0 : i32
    %c0_i32_0 = arith.constant 0 : i32
    %c0_i32_1 = arith.constant 0 : i32
    return %c0_i32, %c0_i32_0 : i32, i32
  }
  func.func @transform_5(%arg0: i32) -> (i32, i32) {
    %c0_i32 = arith.constant 0 : i32
    %c0_i32_0 = arith.constant 0 : i32
    %c0_i32_1 = arith.constant 0 : i32
    return %c0_i32, %c0_i32_0 : i32, i32
  }
}

module attributes {stable_mosaic.version = 11 : i64} {
  func.func @kernel(%arg0: i32, %arg1: memref<128x128xbf16, #tpu.memory_space<vmem>>, %arg2: memref<128x128xbf16, #tpu.memory_space<vmem>>, %arg3: memref<1x128xf32, #tpu.memory_space<vmem>>, %arg4: memref<128x128xf32, #tpu.memory_space<vmem>>, %arg5: memref<1x128xf32, #tpu.memory_space<vmem>>, %arg6: memref<1x128xf32, #tpu.memory_space<vmem>>) attributes {dimension_semantics = [#tpu.dimension_semantics<arbitrary>], iteration_bounds = array<i64: 1>, scalar_prefetch = 0 : i64, scratch_operands = 0 : i64, tpu.core_type = #tpu.core_type<tc>, window_params = [{transform_indices = @transform_0, window_bounds = array<i64: 128, 128>}, {pipeline_mode = #tpu.pipeline_mode<synchronous>, transform_indices = @transform_1, window_bounds = array<i64: 128, 128>}, {pipeline_mode = #tpu.pipeline_mode<synchronous>, transform_indices = @transform_2, window_bounds = array<i64: 1, 128>}, {transform_indices = @transform_3, window_bounds = array<i64: 128, 128>}, {pipeline_mode = #tpu.pipeline_mode<synchronous>, transform_indices = @transform_4, window_bounds = array<i64: 1, 128>}, {pipeline_mode = #tpu.pipeline_mode<synchronous>, transform_indices = @transform_5, window_bounds = array<i64: 1, 128>}]} {
    %c0 = arith.constant 0 : index
    %c0_0 = arith.constant 0 : index
    %0 = vector.load %arg1[%c0, %c0_0] : memref<128x128xbf16, #tpu.memory_space<vmem>>, vector<128x128xbf16>
    %c0_1 = arith.constant 0 : index
    %c0_2 = arith.constant 0 : index
    %1 = vector.load %arg2[%c0_1, %c0_2] : memref<128x128xbf16, #tpu.memory_space<vmem>>, vector<128x128xbf16>
    %cst = arith.constant dense<0.000000e+00> : vector<128x128xf32>
    %2 = tpu.matmul %0, %1, %cst {dimension_numbers = #tpu.dot_dimension_numbers<[1], [0], [0], [1], [0, 0, 1, 1], [], []>} : vector<128x128xbf16>, vector<128x128xbf16>, vector<128x128xf32> -> vector<128x128xf32>
    %c0_3 = arith.constant 0 : index
    %c0_4 = arith.constant 0 : index
    %3 = vector.load %arg3[%c0_3, %c0_4] : memref<1x128xf32, #tpu.memory_space<vmem>>, vector<1x128xf32>
    %4 = vector.broadcast %3 : vector<1x128xf32> to vector<128x128xf32>
    %5 = arith.addf %2, %4 : vector<128x128xf32>
    %c0_5 = arith.constant 0 : index
    %c0_6 = arith.constant 0 : index
    %6 = vector.load %arg4[%c0_5, %c0_6] : memref<128x128xf32, #tpu.memory_space<vmem>>, vector<128x128xf32>
    tpu.vector_store %arg4[%c0_5, %c0_6], %5 {strides = array<i32>} : memref<128x128xf32, #tpu.memory_space<vmem>>, vector<128x128xf32>,
    %c0_i32 = arith.constant 0 : i32
    %7 = arith.cmpi eq, %arg0, %c0_i32 : i32
    %8 = arith.extui %7 : i1 to i32
    %c0_i32_7 = arith.constant 0 : i32
    %9 = arith.cmpi ne, %8, %c0_i32_7 : i32
    scf.if %9 {
      %cst_18 = arith.constant 0.000000e+00 : f32
      %21 = vector.broadcast %cst_18 : f32 to vector<1x128xf32>
      %c0_19 = arith.constant 0 : index
      %c0_20 = arith.constant 0 : index
      %22 = vector.load %arg5[%c0_19, %c0_20] : memref<1x128xf32, #tpu.memory_space<vmem>>, vector<1x128xf32>
      tpu.vector_store %arg5[%c0_19, %c0_20], %21 {strides = array<i32>} : memref<1x128xf32, #tpu.memory_space<vmem>>, vector<1x128xf32>,
      %cst_21 = arith.constant 0.000000e+00 : f32
      %23 = vector.broadcast %cst_21 : f32 to vector<1x128xf32>
      %c0_22 = arith.constant 0 : index
      %c0_23 = arith.constant 0 : index
      %24 = vector.load %arg6[%c0_22, %c0_23] : memref<1x128xf32, #tpu.memory_space<vmem>>, vector<1x128xf32>
      tpu.vector_store %arg6[%c0_22, %c0_23], %23 {strides = array<i32>} : memref<1x128xf32, #tpu.memory_space<vmem>>, vector<1x128xf32>,
    } else {
    }
    %c0_8 = arith.constant 0 : index
    %c0_9 = arith.constant 0 : index
    %10 = vector.load %arg5[%c0_8, %c0_9] : memref<1x128xf32, #tpu.memory_space<vmem>>, vector<1x128xf32>
    %cst_10 = arith.constant dense<0.000000e+00> : vector<128xf32>
    %11 = vector.multi_reduction <add>, %5, %cst_10 [0] : vector<128x128xf32> to vector<128xf32>
    %12 = vector.shape_cast %11 : vector<128xf32> to vector<1x128xf32>
    %13 = arith.addf %10, %12 : vector<1x128xf32>
    %c0_11 = arith.constant 0 : index
    %c0_12 = arith.constant 0 : index
    %14 = vector.load %arg5[%c0_11, %c0_12] : memref<1x128xf32, #tpu.memory_space<vmem>>, vector<1x128xf32>
    tpu.vector_store %arg5[%c0_11, %c0_12], %13 {strides = array<i32>} : memref<1x128xf32, #tpu.memory_space<vmem>>, vector<1x128xf32>,
    %c0_13 = arith.constant 0 : index
    %c0_14 = arith.constant 0 : index
    %15 = vector.load %arg6[%c0_13, %c0_14] : memref<1x128xf32, #tpu.memory_space<vmem>>, vector<1x128xf32>
    %16 = arith.mulf %5, %5 : vector<128x128xf32>
    %cst_15 = arith.constant dense<0.000000e+00> : vector<128xf32>
    %17 = vector.multi_reduction <add>, %16, %cst_15 [0] : vector<128x128xf32> to vector<128xf32>
    %18 = vector.shape_cast %17 : vector<128xf32> to vector<1x128xf32>
    %19 = arith.addf %15, %18 : vector<1x128xf32>
    %c0_16 = arith.constant 0 : index
    %c0_17 = arith.constant 0 : index
    %20 = vector.load %arg6[%c0_16, %c0_17] : memref<1x128xf32, #tpu.memory_space<vmem>>, vector<1x128xf32>
    tpu.vector_store %arg6[%c0_16, %c0_17], %19 {strides = array<i32>} : memref<1x128xf32, #tpu.memory_space<vmem>>, vector<1x128xf32>,
    return
  }
  func.func @transform_0(%arg0: i32) -> (i32, i32) {
    %c0_i32 = arith.constant 0 : i32
    %c0_i32_0 = arith.constant 0 : i32
    return %arg0, %c0_i32 : i32, i32
  }
  func.func @transform_1(%arg0: i32) -> (i32, i32) {
    %c0_i32 = arith.constant 0 : i32
    %c0_i32_0 = arith.constant 0 : i32
    %c0_i32_1 = arith.constant 0 : i32
    return %c0_i32, %c0_i32_0 : i32, i32
  }
  func.func @transform_2(%arg0: i32) -> (i32, i32) {
    %c0_i32 = arith.constant 0 : i32
    %c0_i32_0 = arith.constant 0 : i32
    %c0_i32_1 = arith.constant 0 : i32
    return %c0_i32, %c0_i32_0 : i32, i32
  }
  func.func @transform_3(%arg0: i32) -> (i32, i32) {
    %c0_i32 = arith.constant 0 : i32
    %c0_i32_0 = arith.constant 0 : i32
    return %arg0, %c0_i32 : i32, i32
  }
  func.func @transform_4(%arg0: i32) -> (i32, i32) {
    %c0_i32 = arith.constant 0 : i32
    %c0_i32_0 = arith.constant 0 : i32
    %c0_i32_1 = arith.constant 0 : i32
    return %c0_i32, %c0_i32_0 : i32, i32
  }
  func.func @transform_5(%arg0: i32) -> (i32, i32) {
    %c0_i32 = arith.constant 0 : i32
    %c0_i32_0 = arith.constant 0 : i32
    %c0_i32_1 = arith.constant 0 : i32
    return %c0_i32, %c0_i32_0 : i32, i32
  }
}

module attributes {stable_mosaic.version = 11 : i64} {
  func.func @_matmul_bias_kernel(%arg0: i32, %arg1: memref<512x288xbf16, #tpu.memory_space<vmem>>, %arg2: memref<288x128xbf16, #tpu.memory_space<vmem>>, %arg3: memref<1x128xf32, #tpu.memory_space<vmem>>, %arg4: memref<512x128xf32, #tpu.memory_space<vmem>>) attributes {dimension_semantics = [#tpu.dimension_semantics<parallel>], iteration_bounds = array<i64: 1>, scalar_prefetch = 0 : i64, scratch_operands = 0 : i64, tpu.core_type = #tpu.core_type<tc>, window_params = [{transform_indices = @transform_0, window_bounds = array<i64: 512, 288>}, {pipeline_mode = #tpu.pipeline_mode<synchronous>, transform_indices = @transform_1, window_bounds = array<i64: 288, 128>}, {pipeline_mode = #tpu.pipeline_mode<synchronous>, transform_indices = @transform_2, window_bounds = array<i64: 1, 128>}, {transform_indices = @transform_3, window_bounds = array<i64: 512, 128>}]} {
    %c0 = arith.constant 0 : index
    %c0_0 = arith.constant 0 : index
    %0 = vector.load %arg1[%c0, %c0_0] : memref<512x288xbf16, #tpu.memory_space<vmem>>, vector<512x288xbf16>
    %c0_1 = arith.constant 0 : index
    %c0_2 = arith.constant 0 : index
    %1 = vector.load %arg2[%c0_1, %c0_2] : memref<288x128xbf16, #tpu.memory_space<vmem>>, vector<288x128xbf16>
    %cst = arith.constant dense<0.000000e+00> : vector<512x128xf32>
    %2 = tpu.matmul %0, %1, %cst {dimension_numbers = #tpu.dot_dimension_numbers<[1], [0], [0], [1], [0, 0, 1, 1], [], []>} : vector<512x288xbf16>, vector<288x128xbf16>, vector<512x128xf32> -> vector<512x128xf32>
    %c0_3 = arith.constant 0 : index
    %c0_4 = arith.constant 0 : index
    %3 = vector.load %arg3[%c0_3, %c0_4] : memref<1x128xf32, #tpu.memory_space<vmem>>, vector<1x128xf32>
    %4 = vector.broadcast %3 : vector<1x128xf32> to vector<512x128xf32>
    %5 = arith.addf %2, %4 : vector<512x128xf32>
    %c0_5 = arith.constant 0 : index
    %c0_6 = arith.constant 0 : index
    %6 = vector.load %arg4[%c0_5, %c0_6] : memref<512x128xf32, #tpu.memory_space<vmem>>, vector<512x128xf32>
    tpu.vector_store %arg4[%c0_5, %c0_6], %5 {strides = array<i32>} : memref<512x128xf32, #tpu.memory_space<vmem>>, vector<512x128xf32>,
    return
  }
  func.func @transform_0(%arg0: i32) -> (i32, i32) {
    %c0_i32 = arith.constant 0 : i32
    %c0_i32_0 = arith.constant 0 : i32
    return %arg0, %c0_i32 : i32, i32
  }
  func.func @transform_1(%arg0: i32) -> (i32, i32) {
    %c0_i32 = arith.constant 0 : i32
    %c0_i32_0 = arith.constant 0 : i32
    %c0_i32_1 = arith.constant 0 : i32
    return %c0_i32, %c0_i32_0 : i32, i32
  }
  func.func @transform_2(%arg0: i32) -> (i32, i32) {
    %c0_i32 = arith.constant 0 : i32
    %c0_i32_0 = arith.constant 0 : i32
    %c0_i32_1 = arith.constant 0 : i32
    return %c0_i32, %c0_i32_0 : i32, i32
  }
  func.func @transform_3(%arg0: i32) -> (i32, i32) {
    %c0_i32 = arith.constant 0 : i32
    %c0_i32_0 = arith.constant 0 : i32
    return %arg0, %c0_i32 : i32, i32
  }
}

module attributes {stable_mosaic.version = 11 : i64} {
  func.func @kernel(%arg0: i32, %arg1: memref<8x1024xf32, #tpu.memory_space<vmem>>, %arg2: memref<8x1024xf32, #tpu.memory_space<vmem>>, %arg3: memref<1xf32, #tpu.memory_space<smem>>, %arg4: memref<1xf32, #tpu.memory_space<smem>>) attributes {dimension_semantics = [#tpu.dimension_semantics<arbitrary>], iteration_bounds = array<i64: 1>, scalar_prefetch = 0 : i64, scratch_operands = 1 : i64, tpu.core_type = #tpu.core_type<tc>, window_params = [{transform_indices = @transform_0, window_bounds = array<i64: 8, 1024>}, {transform_indices = @transform_1, window_bounds = array<i64: 8, 1024>}, {transform_indices = @transform_2, window_bounds = array<i64: 1>}]} {
    %c0_i32 = arith.constant 0 : i32
    %0 = arith.cmpi eq, %arg0, %c0_i32 : i32
    %1 = arith.extui %0 : i1 to i32
    %c0_i32_0 = arith.constant 0 : i32
    %2 = arith.cmpi ne, %1, %c0_i32_0 : i32
    scf.if %2 {
      %cst_9 = arith.constant 0.000000e+00 : f32
      %c0_10 = arith.constant 0 : index
      %17 = memref.load %arg4[%c0_10] : memref<1xf32, #tpu.memory_space<smem>>
      memref.store %cst_9, %arg4[%c0_10] : memref<1xf32, #tpu.memory_space<smem>>
    } else {
    }
    %c0 = arith.constant 0 : index
    %c0_1 = arith.constant 0 : index
    %3 = vector.load %arg1[%c0, %c0_1] : memref<8x1024xf32, #tpu.memory_space<vmem>>, vector<8x1024xf32>
    %c0_2 = arith.constant 0 : index
    %c0_3 = arith.constant 0 : index
    %4 = vector.load %arg2[%c0_2, %c0_3] : memref<8x1024xf32, #tpu.memory_space<vmem>>, vector<8x1024xf32>
    %5 = arith.subf %3, %4 : vector<8x1024xf32>
    %c0_4 = arith.constant 0 : index
    %6 = memref.load %arg4[%c0_4] : memref<1xf32, #tpu.memory_space<smem>>
    %7 = arith.mulf %5, %5 : vector<8x1024xf32>
    %8 = vector.shape_cast %7 : vector<8x1024xf32> to vector<1x8x1024xf32>
    %cst = arith.constant dense<0.000000e+00> : vector<1xf32>
    %9 = vector.multi_reduction <add>, %8, %cst [1, 2] : vector<1x8x1024xf32> to vector<1xf32>
    %10 = vector.shape_cast %9 : vector<1xf32> to vector<1x1x1xf32>
    %11 = vector.extract %10[0, 0, 0] : f32 from vector<1x1x1xf32>
    %12 = arith.addf %6, %11 : f32
    %c0_5 = arith.constant 0 : index
    %13 = memref.load %arg4[%c0_5] : memref<1xf32, #tpu.memory_space<smem>>
    memref.store %12, %arg4[%c0_5] : memref<1xf32, #tpu.memory_space<smem>>
    %c0_6 = arith.constant 0 : index
    %14 = memref.load %arg4[%c0_6] : memref<1xf32, #tpu.memory_space<smem>>
    %cst_7 = arith.constant 4.8828125E-4 : f32
    %15 = arith.mulf %14, %cst_7 : f32
    %c0_8 = arith.constant 0 : index
    %16 = memref.load %arg3[%c0_8] : memref<1xf32, #tpu.memory_space<smem>>
    memref.store %15, %arg3[%c0_8] : memref<1xf32, #tpu.memory_space<smem>>
    return
  }
  func.func @transform_0(%arg0: i32) -> (i32, i32) {
    %c0_i32 = arith.constant 0 : i32
    %c0_i32_0 = arith.constant 0 : i32
    return %arg0, %c0_i32 : i32, i32
  }
  func.func @transform_1(%arg0: i32) -> (i32, i32) {
    %c0_i32 = arith.constant 0 : i32
    %c0_i32_0 = arith.constant 0 : i32
    return %arg0, %c0_i32 : i32, i32
  }
  func.func @transform_2(%arg0: i32) -> i32 {
    %c0_i32 = arith.constant 0 : i32
    %c0_i32_0 = arith.constant 0 : i32
    return %c0_i32 : i32
  }
}

</mosaic_0001>

<llo_original>
// kernel: _lambda_.13
$region0: #{_lambda_.13}
  #allocation0 [shape = 'u32[]', space=smem, size = 0x4, offset = 0x4, fixed_abs, tag = 'smem constant byte address 0x4 - core index']
  #allocation1 [shape = 'u32[144,128]{1,0:T(1,128)}', space=vmem, size = 0x12000, scoped, tag = 'internal scratch']
  %s0 = inlined_call_operand.vmem [shape: f32[128,128], index: 0, kind: input, shape index: {}]
  %s1 = inlined_call_operand.vmem [shape: f32[1,128], index: 1, kind: input, shape index: {}]
  %s2 = inlined_call_operand.vmem [shape: f32[1,128], index: 2, kind: input, shape index: {}]
  %s3 = inlined_call_operand.vmem [shape: bf16[128,128], index: 3, kind: output, shape index: {}]
  %s4 = sld [smem:[#allocation0]]
  $region22: #{_lambda_.13} parent=0
    _
  %s6 = ssub.s32 1, %s4
  %s7 = scalar_select 0, %s6, %s4
  // Predicated region
  $region2: #{_lambda_.13} parent=0 // pred_check
    _
  $region3: #{_lambda_.13} parent=0 // pred_check_branch
    %9 = sbr.rel (0) target = $region5
  $region4: #{_lambda_.13} parent=0 // pred_region
    _
  $region5: #{_lambda_.13} parent=0 // pred_fallthru
    _
  // Predicated region
  $region6: #{_lambda_.13} parent=0 // pred_check
    _
  $region7: #{_lambda_.13} parent=0 // pred_check_branch
    %11 = sbr.rel (0) target = $region9
  $region8: #{_lambda_.13} parent=0 // pred_region
    _
  $region9: #{_lambda_.13} parent=0 // pred_fallthru
    _
  // Predicated region
  $region10: #{_lambda_.13} parent=0 // pred_check
    _
  $region11: #{_lambda_.13} parent=0 // pred_check_branch
    %13 = sbr.rel (0) target = $region13
  $region12: #{_lambda_.13} parent=0 // pred_region
    _
  $region13: #{_lambda_.13} parent=0 // pred_fallthru
    _
  %v14 = vld [vmem:[%s0] sm:$0xff]
  %v15 = vld [vmem:[%s0 + $0x8] sm:$0xff]
  %v16 = vld [vmem:[%s0 + $0x10] sm:$0xff]
  %v17 = vld [vmem:[%s0 + $0x18] sm:$0xff]
  %v18 = vld [vmem:[%s0 + $0x20] sm:$0xff]
  %v19 = vld [vmem:[%s0 + $0x28] sm:$0xff]
  %v20 = vld [vmem:[%s0 + $0x30] sm:$0xff]
  %v21 = vld [vmem:[%s0 + $0x38] sm:$0xff]
  %v22 = vld [vmem:[%s0 + $0x40] sm:$0xff]
  %v23 = vld [vmem:[%s0 + $0x48] sm:$0xff]
  %v24 = vld [vmem:[%s0 + $0x50] sm:$0xff]
  %v25 = vld [vmem:[%s0 + $0x58] sm:$0xff]
  %v26 = vld [vmem:[%s0 + $0x60] sm:$0xff]
  %v27 = vld [vmem:[%s0 + $0x68] sm:$0xff]
  %v28 = vld [vmem:[%s0 + $0x70] sm:$0xff]
  %v29 = vld [vmem:[%s0 + $0x78] sm:$0xff]
  %v30 = vld [vmem:[%s1] sm:$0x1]
  %v32 = vlaneseq
  %v33 = vshrl.u32 %v32, 7
  %v34 = vsub.s32 0, %v33
  %v35 = vrot.slane %v30, %v34
  %v37 = vmul.f32 %v14, %v35
  %v38 = vmul.f32 %v15, %v35
  %v39 = vmul.f32 %v16, %v35
  %v40 = vmul.f32 %v17, %v35
  %v41 = vmul.f32 %v18, %v35
  %v42 = vmul.f32 %v19, %v35
  %v43 = vmul.f32 %v20, %v35
  %v44 = vmul.f32 %v21, %v35
  %v45 = vmul.f32 %v22, %v35
  %v46 = vmul.f32 %v23, %v35
  %v47 = vmul.f32 %v24, %v35
  %v48 = vmul.f32 %v25, %v35
  %v49 = vmul.f32 %v26, %v35
  %v50 = vmul.f32 %v27, %v35
  %v51 = vmul.f32 %v28, %v35
  %v52 = vmul.f32 %v29, %v35
  %v53 = vld [vmem:[%s2] sm:$0x1]
  %v55 = vlaneseq
  %v56 = vshrl.u32 %v55, 7
  %v57 = vsub.s32 0, %v56
  %v58 = vrot.slane %v53, %v57
  %v60 = vadd.f32 %v37, %v58
  %v61 = vadd.f32 %v38, %v58
  %v62 = vadd.f32 %v39, %v58
  %v63 = vadd.f32 %v40, %v58
  %v64 = vadd.f32 %v41, %v58
  %v65 = vadd.f32 %v42, %v58
  %v66 = vadd.f32 %v43, %v58
  %v67 = vadd.f32 %v44, %v58
  %v68 = vadd.f32 %v45, %v58
  %v69 = vadd.f32 %v46, %v58
  %v70 = vadd.f32 %v47, %v58
  %v71 = vadd.f32 %v48, %v58
  %v72 = vadd.f32 %v49, %v58
  %v73 = vadd.f32 %v50, %v58
  %v74 = vadd.f32 %v51, %v58
  %v75 = vadd.f32 %v52, %v58
  %vm76 = vcmp.ge.f32.partialorder %v60, 0.0
  %vm77 = vcmp.ge.f32.partialorder %v61, 0.0
  %vm78 = vcmp.ge.f32.partialorder %v62, 0.0
  %vm79 = vcmp.ge.f32.partialorder %v63, 0.0
  %vm80 = vcmp.ge.f32.partialorder %v64, 0.0
  %vm81 = vcmp.ge.f32.partialorder %v65, 0.0
  %vm82 = vcmp.ge.f32.partialorder %v66, 0.0
  %vm83 = vcmp.ge.f32.partialorder %v67, 0.0
  %vm84 = vcmp.ge.f32.partialorder %v68, 0.0
  %vm85 = vcmp.ge.f32.partialorder %v69, 0.0
  %vm86 = vcmp.ge.f32.partialorder %v70, 0.0
  %vm87 = vcmp.ge.f32.partialorder %v71, 0.0
  %vm88 = vcmp.ge.f32.partialorder %v72, 0.0
  %vm89 = vcmp.ge.f32.partialorder %v73, 0.0
  %vm90 = vcmp.ge.f32.partialorder %v74, 0.0
  %vm91 = vcmp.ge.f32.partialorder %v75, 0.0
  %v92 = vmul.f32 %v60, 0.01
  %v93 = vmul.f32 %v61, 0.01
  %v94 = vmul.f32 %v62, 0.01
  %v95 = vmul.f32 %v63, 0.01
  %v96 = vmul.f32 %v64, 0.01
  %v97 = vmul.f32 %v65, 0.01
  %v98 = vmul.f32 %v66, 0.01
  %v99 = vmul.f32 %v67, 0.01
  %v100 = vmul.f32 %v68, 0.01
  %v101 = vmul.f32 %v69, 0.01
  %v102 = vmul.f32 %v70, 0.01
  %v103 = vmul.f32 %v71, 0.01
  %v104 = vmul.f32 %v72, 0.01
  %v105 = vmul.f32 %v73, 0.01
  %v106 = vmul.f32 %v74, 0.01
  %v107 = vmul.f32 %v75, 0.01
  %v108 = vsel %vm76, %v60, %v92
  %v109 = vsel %vm77, %v61, %v93
  %v110 = vsel %vm78, %v62, %v94
  %v111 = vsel %vm79, %v63, %v95
  %v112 = vsel %vm80, %v64, %v96
  %v113 = vsel %vm81, %v65, %v97
  %v114 = vsel %vm82, %v66, %v98
  %v115 = vsel %vm83, %v67, %v99
  %v116 = vsel %vm84, %v68, %v100
  %v117 = vsel %vm85, %v69, %v101
  %v118 = vsel %vm86, %v70, %v102
  %v119 = vsel %vm87, %v71, %v103
  %v120 = vsel %vm88, %v72, %v104
  %v121 = vsel %vm89, %v73, %v105
  %v122 = vsel %vm90, %v74, %v106
  %v123 = vsel %vm91, %v75, %v107
  %v124 = vpack.c.bf16 %v109, %v108
  %v125 = vpack.c.bf16 %v111, %v110
  %v126 = vpack.c.bf16 %v113, %v112
  %v127 = vpack.c.bf16 %v115, %v114
  %v128 = vpack.c.bf16 %v117, %v116
  %v129 = vpack.c.bf16 %v119, %v118
  %v130 = vpack.c.bf16 %v121, %v120
  %v131 = vpack.c.bf16 %v123, %v122
  %v140 = vunpack.c.l.b16 %v124
  %v141 = vunpack.c.h.b16 %v124
  %v142 = vunpack.c.l.b16 %v125
  %v143 = vunpack.c.h.b16 %v125
  %v144 = vunpack.c.l.b16 %v126
  %v145 = vunpack.c.h.b16 %v126
  %v146 = vunpack.c.l.b16 %v127
  %v147 = vunpack.c.h.b16 %v127
  %v148 = vunpack.c.l.b16 %v128
  %v149 = vunpack.c.h.b16 %v128
  %v150 = vunpack.c.l.b16 %v129
  %v151 = vunpack.c.h.b16 %v129
  %v152 = vunpack.c.l.b16 %v130
  %v153 = vunpack.c.h.b16 %v130
  %v154 = vunpack.c.l.b16 %v131
  %v155 = vunpack.c.h.b16 %v131
  %v156 = vpack.c.b16 %v140, %v140
  %v157 = vpack.c.b16 %v141, %v141
  %v158 = vpack.c.b16 %v142, %v142
  %v159 = vpack.c.b16 %v143, %v143
  %v160 = vpack.c.b16 %v144, %v144
  %v161 = vpack.c.b16 %v145, %v145
  %v162 = vpack.c.b16 %v146, %v146
  %v163 = vpack.c.b16 %v147, %v147
  %v164 = vpack.c.b16 %v148, %v148
  %v165 = vpack.c.b16 %v149, %v149
  %v166 = vpack.c.b16 %v150, %v150
  %v167 = vpack.c.b16 %v151, %v151
  %v168 = vpack.c.b16 %v152, %v152
  %v169 = vpack.c.b16 %v153, %v153
  %v170 = vpack.c.b16 %v154, %v154
  %v171 = vpack.c.b16 %v155, %v155
  %188 = vst [vmem:[%s3] sm:$0xf] %v156
  %189 = vst [vmem:[%s3 + $0x4] sm:$0xf] %v157
  %190 = vst [vmem:[%s3 + $0x8] sm:$0xf] %v158
  %191 = vst [vmem:[%s3 + $0xc] sm:$0xf] %v159
  %192 = vst [vmem:[%s3 + $0x10] sm:$0xf] %v160
  %193 = vst [vmem:[%s3 + $0x14] sm:$0xf] %v161
  %194 = vst [vmem:[%s3 + $0x18] sm:$0xf] %v162
  %195 = vst [vmem:[%s3 + $0x1c] sm:$0xf] %v163
  %196 = vst [vmem:[%s3 + $0x20] sm:$0xf] %v164
  %197 = vst [vmem:[%s3 + $0x24] sm:$0xf] %v165
  %198 = vst [vmem:[%s3 + $0x28] sm:$0xf] %v166
  %199 = vst [vmem:[%s3 + $0x2c] sm:$0xf] %v167
  %200 = vst [vmem:[%s3 + $0x30] sm:$0xf] %v168
  %201 = vst [vmem:[%s3 + $0x34] sm:$0xf] %v169
  %202 = vst [vmem:[%s3 + $0x38] sm:$0xf] %v170
  %203 = vst [vmem:[%s3 + $0x3c] sm:$0xf] %v171
  // Predicated region
  $region14: #{_lambda_.13} parent=0 // pred_check
    _
  $region15: #{_lambda_.13} parent=0 // pred_check_branch
    %205 = sbr.rel (0) target = $region17
  $region16: #{_lambda_.13} parent=0 // pred_region
    _
  $region17: #{_lambda_.13} parent=0 // pred_fallthru
    _
  // Predicated region
  $region18: #{_lambda_.13} parent=0 // pred_check
    _
  $region19: #{_lambda_.13} parent=0 // pred_check_branch
    %207 = sbr.rel (0) target = $region21
  $region20: #{_lambda_.13} parent=0 // pred_region
    _
  $region21: #{_lambda_.13} parent=0 // pred_fallthru
    _

// kernel: _lambda_.12
$region0: #{_lambda_.12}
  #allocation0 [shape = 'u32[]', space=smem, size = 0x4, offset = 0x4, fixed_abs, tag = 'smem constant byte address 0x4 - core index']
  #allocation1 [shape = 'u32[144,128]{1,0:T(1,128)}', space=vmem, size = 0x12000, scoped, tag = 'internal scratch']
  %s0 = inlined_call_operand.vmem [shape: bf16[128,36], index: 0, kind: input, shape index: {}]
  %s1 = inlined_call_operand.vmem [shape: bf16[36,128], index: 1, kind: input, shape index: {}]
  %s2 = inlined_call_operand.vmem [shape: f32[1,128], index: 2, kind: input, shape index: {}]
  %s3 = inlined_call_operand.vmem [shape: f32[128,128], index: 3, kind: output, shape index: {0}]
  %s4 = inlined_call_operand.vmem [shape: f32[1,128], index: 4, kind: output, shape index: {1}]
  %s5 = inlined_call_operand.vmem [shape: f32[1,128], index: 5, kind: output, shape index: {2}]
  %6 = xla_tuple %s3, %s4, %s5
  %s7 = sld [smem:[#allocation0]]
  $region42: #{_lambda_.12} parent=0
    _
  %s9 = ssub.s32 1, %s7
  %s10 = scalar_select 0, %s9, %s7
  // Predicated region
  $region2: #{_lambda_.12} parent=0 // pred_check
    _
  $region3: #{_lambda_.12} parent=0 // pred_check_branch
    %12 = sbr.rel (0) target = $region5
  $region4: #{_lambda_.12} parent=0 // pred_region
    _
  $region5: #{_lambda_.12} parent=0 // pred_fallthru
    _
  // Predicated region
  $region6: #{_lambda_.12} parent=0 // pred_check
    _
  $region7: #{_lambda_.12} parent=0 // pred_check_branch
    %14 = sbr.rel (0) target = $region9
  $region8: #{_lambda_.12} parent=0 // pred_region
    _
  $region9: #{_lambda_.12} parent=0 // pred_fallthru
    _
  // Predicated region
  $region10: #{_lambda_.12} parent=0 // pred_check
    _
  $region11: #{_lambda_.12} parent=0 // pred_check_branch
    %16 = sbr.rel (0) target = $region13
  $region12: #{_lambda_.12} parent=0 // pred_region
    _
  $region13: #{_lambda_.12} parent=0 // pred_fallthru
    _
  %v18 = vld [vmem:[%s0] sm:$0xf]
  %v19 = vld [vmem:[%s0 + $0x4] sm:$0xf]
  %v20 = vld [vmem:[%s0 + $0x8] sm:$0xf]
  %v21 = vld [vmem:[%s0 + $0xc] sm:$0xf]
  %v22 = vld [vmem:[%s0 + $0x10] sm:$0xf]
  %v23 = vld [vmem:[%s0 + $0x14] sm:$0xf]
  %v24 = vld [vmem:[%s0 + $0x18] sm:$0xf]
  %v25 = vld [vmem:[%s0 + $0x1c] sm:$0xf]
  %v26 = vld [vmem:[%s0 + $0x20] sm:$0xf]
  %v27 = vld [vmem:[%s0 + $0x24] sm:$0xf]
  %v28 = vld [vmem:[%s0 + $0x28] sm:$0xf]
  %v29 = vld [vmem:[%s0 + $0x2c] sm:$0xf]
  %v30 = vld [vmem:[%s0 + $0x30] sm:$0xf]
  %v31 = vld [vmem:[%s0 + $0x34] sm:$0xf]
  %v32 = vld [vmem:[%s0 + $0x38] sm:$0xf]
  %v33 = vld [vmem:[%s0 + $0x3c] sm:$0xf]
  %v34 = vld [vmem:[%s1] sm:$0xf]
  %v35 = vld [vmem:[%s1 + $0x4] sm:$0xf]
  %v36 = vld [vmem:[%s1 + $0x8] sm:$0xf]
  %v37 = vld [vmem:[%s1 + $0xc] sm:$0xf]
  %v38 = vld [vmem:[%s1 + $0x10] sm:$0x3]
  %v39 = vld [vmem:[%s2] sm:$0x1]
  %v41 = vlaneseq
  %v42 = vshrl.u32 %v41, 7
  %v43 = vsub.s32 0, %v42
  %v44 = vrot.slane %v39, %v43
  %v62 = vunpack.c.l.b16 %v18
  %v63 = vunpack.c.l.b16 %v19
  %v64 = vunpack.c.l.b16 %v20
  %v65 = vunpack.c.l.b16 %v21
  %v66 = vunpack.c.l.b16 %v22
  %v67 = vunpack.c.l.b16 %v23
  %v68 = vunpack.c.l.b16 %v24
  %v69 = vunpack.c.l.b16 %v25
  %v70 = vunpack.c.l.b16 %v26
  %v71 = vunpack.c.l.b16 %v27
  %v72 = vunpack.c.l.b16 %v28
  %v73 = vunpack.c.l.b16 %v29
  %v74 = vunpack.c.l.b16 %v30
  %v75 = vunpack.c.l.b16 %v31
  %v76 = vunpack.c.l.b16 %v32
  %v77 = vunpack.c.l.b16 %v33
  %v78 = vpack.c.b16 %v63, %v62
  %v79 = vpack.c.b16 %v65, %v64
  %v80 = vpack.c.b16 %v67, %v66
  %v81 = vpack.c.b16 %v69, %v68
  %v82 = vpack.c.b16 %v71, %v70
  %v83 = vpack.c.b16 %v73, %v72
  %v84 = vpack.c.b16 %v75, %v74
  %v85 = vpack.c.b16 %v77, %v76
  %v91 = vunpack.c.l.b16 %v34
  %v92 = vunpack.c.l.b16 %v35
  %v93 = vunpack.c.l.b16 %v36
  %v94 = vunpack.c.l.b16 %v37
  %v95 = vunpack.c.l.b16 %v38
  %v96 = vpack.c.b16 %v92, %v91
  %v97 = vpack.c.b16 %v94, %v93
  %v98 = vpack.c.b16 %v95, %v95
  %vm101 = vcmask 293888
  %v103 = vsel %vm101, %v78, 0
  %v106 = vsel %vm101, %v79, 0
  %v109 = vsel %vm101, %v80, 0
  %v112 = vsel %vm101, %v81, 0
  %v115 = vsel %vm101, %v82, 0
  %v118 = vsel %vm101, %v83, 0
  %v121 = vsel %vm101, %v84, 0
  %v124 = vsel %vm101, %v85, 0
  %vm126 = vcmask 1041408
  %v128 = vsel %vm126, %v98, 0
  %130 = vmatprep.subr.bf16.mxu0 0
  %131 = vmatpush1.bf16.msra.mxu0 %v96
  %132 = vmatprep.subr.bf16.mxu0 0
  %133 = vmatpush1.bf16.msra.mxu0 %v97
  %134 = vmatprep.subr.bf16.mxu0 0
  %135 = vmatpush1.bf16.msra.mxu0 %v128
  %136 = vmatprep.subr.bf16.mxu0 0
  %137 = vmatpush1.bf16.msra.mxu0 0
  %138 = vmatprep.subr.bf16.mxu0 0
  %139 = vmatpush1.bf16.msra.mxu0 0
  %140 = vmatprep.subr.bf16.mxu0 0
  %141 = vmatpush1.bf16.msra.mxu0 0
  %142 = vmatprep.subr.bf16.mxu0 0
  %143 = vmatpush1.bf16.msra.mxu0 0
  %144 = vmatprep.subr.bf16.mxu0 0
  %145 = vmatpush1.bf16.msra.mxu0 0
  %146 = vmatprep.subr.bf16.mxu0 0
  %147 = vmatpush1.bf16.msra.mxu0 0
  %148 = vmatprep.subr.bf16.mxu0 0
  %149 = vmatpush1.bf16.msra.mxu0 0
  %150 = vmatprep.subr.bf16.mxu0 0
  %151 = vmatpush1.bf16.msra.mxu0 0
  %152 = vmatprep.subr.bf16.mxu0 0
  %153 = vmatpush1.bf16.msra.mxu0 0
  %154 = vmatprep.subr.bf16.mxu0 0
  %155 = vmatpush1.bf16.msra.mxu0 0
  %156 = vmatprep.subr.bf16.mxu0 0
  %157 = vmatpush1.bf16.msra.mxu0 0
  %158 = vmatprep.subr.bf16.mxu0 0
  %159 = vmatpush1.bf16.msra.mxu0 0
  %160 = vmatprep.subr.bf16.mxu0 0
  %161 = vmatpush1.bf16.msra.mxu0 0
  %162 = vmatprep.mubr.bf16.mxu0 0
  %163 = vmatmul.mubr.bf16.gmra.mrb[0].mxu0 %v103
  %v164 = vpop.f32.mrb[0].mxu0
  %v165 = vadd.f32 %v44, %v164
  %v166 = vpop.f32.mrb[0].mxu0
  %v167 = vpop.f32.mrb[0].mxu0
  %v168 = vadd.f32 %v44, %v167
  %v169 = vpop.f32.mrb[0].mxu0
  %170 = vmatprep.mubr.bf16.mxu0 0
  %171 = vmatmul.mubr.bf16.gmra.mrb[0].mxu0 %v106
  %v172 = vpop.f32.mrb[0].mxu0
  %v173 = vadd.f32 %v44, %v172
  %v174 = vpop.f32.mrb[0].mxu0
  %v175 = vpop.f32.mrb[0].mxu0
  %v176 = vadd.f32 %v44, %v175
  %v177 = vpop.f32.mrb[0].mxu0
  %178 = vmatprep.mubr.bf16.mxu0 0
  %179 = vmatmul.mubr.bf16.gmra.mrb[0].mxu0 %v109
  %v180 = vpop.f32.mrb[0].mxu0
  %v181 = vadd.f32 %v44, %v180
  %v182 = vpop.f32.mrb[0].mxu0
  %v183 = vpop.f32.mrb[0].mxu0
  %v184 = vadd.f32 %v44, %v183
  %v185 = vpop.f32.mrb[0].mxu0
  %186 = vmatprep.mubr.bf16.mxu0 0
  %187 = vmatmul.mubr.bf16.gmra.mrb[0].mxu0 %v112
  %v188 = vpop.f32.mrb[0].mxu0
  %v189 = vadd.f32 %v44, %v188
  %v190 = vpop.f32.mrb[0].mxu0
  %v191 = vpop.f32.mrb[0].mxu0
  %v192 = vadd.f32 %v44, %v191
  %v193 = vpop.f32.mrb[0].mxu0
  %194 = vmatprep.mubr.bf16.mxu0 0
  %195 = vmatmul.mubr.bf16.gmra.mrb[0].mxu0 %v115
  %v196 = vpop.f32.mrb[0].mxu0
  %v197 = vadd.f32 %v44, %v196
  %v198 = vpop.f32.mrb[0].mxu0
  %v199 = vpop.f32.mrb[0].mxu0
  %v200 = vadd.f32 %v44, %v199
  %v201 = vpop.f32.mrb[0].mxu0
  %202 = vmatprep.mubr.bf16.mxu0 0
  %203 = vmatmul.mubr.bf16.gmra.mrb[0].mxu0 %v118
  %v204 = vpop.f32.mrb[0].mxu0
  %v205 = vadd.f32 %v44, %v204
  %v206 = vpop.f32.mrb[0].mxu0
  %v207 = vpop.f32.mrb[0].mxu0
  %v208 = vadd.f32 %v44, %v207
  %v209 = vpop.f32.mrb[0].mxu0
  %210 = vmatprep.mubr.bf16.mxu0 0
  %211 = vmatmul.mubr.bf16.gmra.mrb[0].mxu0 %v121
  %v212 = vpop.f32.mrb[0].mxu0
  %v213 = vadd.f32 %v44, %v212
  %v214 = vpop.f32.mrb[0].mxu0
  %v215 = vpop.f32.mrb[0].mxu0
  %v216 = vadd.f32 %v44, %v215
  %v217 = vpop.f32.mrb[0].mxu0
  %218 = vmatprep.mubr.bf16.mxu0 0
  %219 = vmatmul.mubr.bf16.gmra.mrb[0].mxu0 %v124
  %v220 = vpop.f32.mrb[0].mxu0
  %v221 = vadd.f32 %v44, %v220
  %v222 = vpop.f32.mrb[0].mxu0
  %v223 = vpop.f32.mrb[0].mxu0
  %v224 = vadd.f32 %v44, %v223
  %v225 = vpop.f32.mrb[0].mxu0
  %226 = vdwg.mxu0
  %227 = vst [vmem:[%s3] sm:$0xff] %v165
  %228 = vst [vmem:[%s3 + $0x8] sm:$0xff] %v168
  %229 = vst [vmem:[%s3 + $0x10] sm:$0xff] %v173
  %230 = vst [vmem:[%s3 + $0x18] sm:$0xff] %v176
  %231 = vst [vmem:[%s3 + $0x20] sm:$0xff] %v181
  %232 = vst [vmem:[%s3 + $0x28] sm:$0xff] %v184
  %233 = vst [vmem:[%s3 + $0x30] sm:$0xff] %v189
  %234 = vst [vmem:[%s3 + $0x38] sm:$0xff] %v192
  %235 = vst [vmem:[%s3 + $0x40] sm:$0xff] %v197
  %236 = vst [vmem:[%s3 + $0x48] sm:$0xff] %v200
  %237 = vst [vmem:[%s3 + $0x50] sm:$0xff] %v205
  %238 = vst [vmem:[%s3 + $0x58] sm:$0xff] %v208
  %239 = vst [vmem:[%s3 + $0x60] sm:$0xff] %v213
  %240 = vst [vmem:[%s3 + $0x68] sm:$0xff] %v216
  %241 = vst [vmem:[%s3 + $0x70] sm:$0xff] %v221
  %242 = vst [vmem:[%s3 + $0x78] sm:$0xff] %v224
  %p243 = scmp.eq.s32.totalorder 0, 0
  // Predicated region
  $region14: #{_lambda_.12} parent=0 // pred_check
    %p244 = pneg %p243
  $region15: #{_lambda_.12} parent=0 // pred_check_branch
    %246 = sbr.rel (%p244) target = $region17
  $region16: #{_lambda_.12} parent=0 // pred_region
    %247 = vst [vmem:[%s4] sm:$0x1] 0.0
    %248 = vst [vmem:[%s5] sm:$0x1] 0.0
  $region17: #{_lambda_.12} parent=0 // pred_fallthru
    _
  %v249 = vld [vmem:[%s4] sm:$0x1]
  %v250 = vadd.f32 %v165, %v168
  %v251 = vadd.f32 %v250, %v173
  %v252 = vadd.f32 %v251, %v176
  %v253 = vadd.f32 %v252, %v181
  %v254 = vadd.f32 %v253, %v184
  %v255 = vadd.f32 %v254, %v189
  %v256 = vadd.f32 %v255, %v192
  %v257 = vadd.f32 %v256, %v197
  %v258 = vadd.f32 %v257, %v200
  %v259 = vadd.f32 %v258, %v205
  %v260 = vadd.f32 %v259, %v208
  %v261 = vadd.f32 %v260, %v213
  %v262 = vadd.f32 %v261, %v216
  %v263 = vadd.f32 %v262, %v221
  %v264 = vadd.f32 %v263, %v224
  %v265 = vrot.slane %v264, 4
  %v266 = vadd.f32 %v264, %v265
  %v267 = vrot.slane %v266, 2
  %v268 = vadd.f32 %v266, %v267
  %v269 = vrot.slane %v268, 1
  %v270 = vadd.f32 %v268, %v269
  %v271 = vadd.f32 %v249, %v270
  %272 = vst [vmem:[%s4] sm:$0x1] %v271
  %v273 = vld [vmem:[%s5] sm:$0x1]
  %v274 = vmul.f32 %v165, %v165
  %v275 = vmul.f32 %v168, %v168
  %v276 = vmul.f32 %v173, %v173
  %v277 = vmul.f32 %v176, %v176
  %v278 = vmul.f32 %v181, %v181
  %v279 = vmul.f32 %v184, %v184
  %v280 = vmul.f32 %v189, %v189
  %v281 = vmul.f32 %v192, %v192
  %v282 = vmul.f32 %v197, %v197
  %v283 = vmul.f32 %v200, %v200
  %v284 = vmul.f32 %v205, %v205
  %v285 = vmul.f32 %v208, %v208
  %v286 = vmul.f32 %v213, %v213
  %v287 = vmul.f32 %v216, %v216
  %v288 = vmul.f32 %v221, %v221
  %v289 = vmul.f32 %v224, %v224
  %v290 = vadd.f32 %v274, %v275
  %v291 = vadd.f32 %v290, %v276
  %v292 = vadd.f32 %v291, %v277
  %v293 = vadd.f32 %v292, %v278
  %v294 = vadd.f32 %v293, %v279
  %v295 = vadd.f32 %v294, %v280
  %v296 = vadd.f32 %v295, %v281
  %v297 = vadd.f32 %v296, %v282
  %v298 = vadd.f32 %v297, %v283
  %v299 = vadd.f32 %v298, %v284
  %v300 = vadd.f32 %v299, %v285
  %v301 = vadd.f32 %v300, %v286
  %v302 = vadd.f32 %v301, %v287
  %v303 = vadd.f32 %v302, %v288
  %v304 = vadd.f32 %v303, %v289
  %v305 = vrot.slane %v304, 4
  %v306 = vadd.f32 %v304, %v305
  %v307 = vrot.slane %v306, 2
  %v308 = vadd.f32 %v306, %v307
  %v309 = vrot.slane %v308, 1
  %v310 = vadd.f32 %v308, %v309
  %v311 = vadd.f32 %v273, %v310
  %312 = vst [vmem:[%s5] sm:$0x1] %v311
  // Predicated region
  $region18: #{_lambda_.12} parent=0 // pred_check
    _
  $region19: #{_lambda_.12} parent=0 // pred_check_branch
    %314 = sbr.rel (0) target = $region21
  $region20: #{_lambda_.12} parent=0 // pred_region
    _
  $region21: #{_lambda_.12} parent=0 // pred_fallthru
    _
  // Predicated region
  $region22: #{_lambda_.12} parent=0 // pred_check
    _
  $region23: #{_lambda_.12} parent=0 // pred_check_branch
    %316 = sbr.rel (0) target = $region25
  $region24: #{_lambda_.12} parent=0 // pred_region
    _
  $region25: #{_lambda_.12} parent=0 // pred_fallthru
    _
  // Predicated region
  $region26: #{_lambda_.12} parent=0 // pred_check
    _
  $region27: #{_lambda_.12} parent=0 // pred_check_branch
    %318 = sbr.rel (0) target = $region29
  $region28: #{_lambda_.12} parent=0 // pred_region
    _
  $region29: #{_lambda_.12} parent=0 // pred_fallthru
    _
  // Predicated region
  $region30: #{_lambda_.12} parent=0 // pred_check
    _
  $region31: #{_lambda_.12} parent=0 // pred_check_branch
    %320 = sbr.rel (0) target = $region33
  $region32: #{_lambda_.12} parent=0 // pred_region
    _
  $region33: #{_lambda_.12} parent=0 // pred_fallthru
    _
  // Predicated region
  $region34: #{_lambda_.12} parent=0 // pred_check
    _
  $region35: #{_lambda_.12} parent=0 // pred_check_branch
    %322 = sbr.rel (0) target = $region37
  $region36: #{_lambda_.12} parent=0 // pred_region
    _
  $region37: #{_lambda_.12} parent=0 // pred_fallthru
    _
  // Predicated region
  $region38: #{_lambda_.12} parent=0 // pred_check
    _
  $region39: #{_lambda_.12} parent=0 // pred_check_branch
    %324 = sbr.rel (0) target = $region41
  $region40: #{_lambda_.12} parent=0 // pred_region
    _
  $region41: #{_lambda_.12} parent=0 // pred_fallthru
    _

// kernel: _lambda_.14
$region0: #{_lambda_.14}
  #allocation0 [shape = 'u32[]', space=smem, size = 0x4, offset = 0x4, fixed_abs, tag = 'smem constant byte address 0x4 - core index']
  #allocation1 [shape = 'u32[144,128]{1,0:T(1,128)}', space=vmem, size = 0x12000, scoped, tag = 'internal scratch']
  %s0 = inlined_call_operand.vmem [shape: bf16[32,288], index: 0, kind: input, shape index: {}]
  %s1 = inlined_call_operand.vmem [shape: bf16[288,128], index: 1, kind: input, shape index: {}]
  %s2 = inlined_call_operand.vmem [shape: f32[1,128], index: 2, kind: input, shape index: {}]
  %s3 = inlined_call_operand.vmem [shape: f32[32,128], index: 3, kind: output, shape index: {0}]
  %s4 = inlined_call_operand.vmem [shape: f32[1,128], index: 4, kind: output, shape index: {1}]
  %s5 = inlined_call_operand.vmem [shape: f32[1,128], index: 5, kind: output, shape index: {2}]
  %6 = xla_tuple %s3, %s4, %s5
  %s7 = sld [smem:[#allocation0]]
  $region42: #{_lambda_.14} parent=0
    _
  %s9 = ssub.s32 1, %s7
  %s10 = scalar_select 0, %s9, %s7
  // Predicated region
  $region2: #{_lambda_.14} parent=0 // pred_check
    _
  $region3: #{_lambda_.14} parent=0 // pred_check_branch
    %12 = sbr.rel (0) target = $region5
  $region4: #{_lambda_.14} parent=0 // pred_region
    _
  $region5: #{_lambda_.14} parent=0 // pred_fallthru
    _
  // Predicated region
  $region6: #{_lambda_.14} parent=0 // pred_check
    _
  $region7: #{_lambda_.14} parent=0 // pred_check_branch
    %14 = sbr.rel (0) target = $region9
  $region8: #{_lambda_.14} parent=0 // pred_region
    _
  $region9: #{_lambda_.14} parent=0 // pred_fallthru
    _
  // Predicated region
  $region10: #{_lambda_.14} parent=0 // pred_check
    _
  $region11: #{_lambda_.14} parent=0 // pred_check_branch
    %16 = sbr.rel (0) target = $region13
  $region12: #{_lambda_.14} parent=0 // pred_region
    _
  $region13: #{_lambda_.14} parent=0 // pred_fallthru
    _
  %v18 = vld [vmem:[%s0] sm:$0xff]
  %v19 = vld [vmem:[%s0 + $0x8] sm:$0xf]
  %v20 = vld [vmem:[%s0 + $0xc] sm:$0xff]
  %v21 = vld [vmem:[%s0 + $0x14] sm:$0xf]
  %v22 = vld [vmem:[%s0 + $0x18] sm:$0xff]
  %v23 = vld [vmem:[%s0 + $0x20] sm:$0xf]
  %v24 = vld [vmem:[%s0 + $0x24] sm:$0xff]
  %v25 = vld [vmem:[%s0 + $0x2c] sm:$0xf]
  %v26 = vld [vmem:[%s1] sm:$0xf]
  %v27 = vld [vmem:[%s1 + $0x4] sm:$0xf]
  %v28 = vld [vmem:[%s1 + $0x8] sm:$0xf]
  %v29 = vld [vmem:[%s1 + $0xc] sm:$0xf]
  %v30 = vld [vmem:[%s1 + $0x10] sm:$0xf]
  %v31 = vld [vmem:[%s1 + $0x14] sm:$0xf]
  %v32 = vld [vmem:[%s1 + $0x18] sm:$0xf]
  %v33 = vld [vmem:[%s1 + $0x1c] sm:$0xf]
  %v34 = vld [vmem:[%s1 + $0x20] sm:$0xf]
  %v35 = vld [vmem:[%s1 + $0x24] sm:$0xf]
  %v36 = vld [vmem:[%s1 + $0x28] sm:$0xf]
  %v37 = vld [vmem:[%s1 + $0x2c] sm:$0xf]
  %v38 = vld [vmem:[%s1 + $0x30] sm:$0xf]
  %v39 = vld [vmem:[%s1 + $0x34] sm:$0xf]
  %v40 = vld [vmem:[%s1 + $0x38] sm:$0xf]
  %v41 = vld [vmem:[%s1 + $0x3c] sm:$0xf]
  %v42 = vld [vmem:[%s1 + $0x40] sm:$0xf]
  %v43 = vld [vmem:[%s1 + $0x44] sm:$0xf]
  %v44 = vld [vmem:[%s1 + $0x48] sm:$0xf]
  %v45 = vld [vmem:[%s1 + $0x4c] sm:$0xf]
  %v46 = vld [vmem:[%s1 + $0x50] sm:$0xf]
  %v47 = vld [vmem:[%s1 + $0x54] sm:$0xf]
  %v48 = vld [vmem:[%s1 + $0x58] sm:$0xf]
  %v49 = vld [vmem:[%s1 + $0x5c] sm:$0xf]
  %v50 = vld [vmem:[%s1 + $0x60] sm:$0xf]
  %v51 = vld [vmem:[%s1 + $0x64] sm:$0xf]
  %v52 = vld [vmem:[%s1 + $0x68] sm:$0xf]
  %v53 = vld [vmem:[%s1 + $0x6c] sm:$0xf]
  %v54 = vld [vmem:[%s1 + $0x70] sm:$0xf]
  %v55 = vld [vmem:[%s1 + $0x74] sm:$0xf]
  %v56 = vld [vmem:[%s1 + $0x78] sm:$0xf]
  %v57 = vld [vmem:[%s1 + $0x7c] sm:$0xf]
  %v58 = vld [vmem:[%s1 + $0x80] sm:$0xf]
  %v59 = vld [vmem:[%s1 + $0x84] sm:$0xf]
  %v60 = vld [vmem:[%s1 + $0x88] sm:$0xf]
  %v61 = vld [vmem:[%s1 + $0x8c] sm:$0xf]
  %v62 = vld [vmem:[%s2] sm:$0x1]
  %v64 = vlaneseq
  %v65 = vshrl.u32 %v64, 7
  %v66 = vsub.s32 0, %v65
  %v67 = vrot.slane %v62, %v66
  %v77 = vunpack.c.l.b16 %v18
  %v78 = vunpack.c.h.b16 %v18
  %v79 = vunpack.c.l.b16 %v19
  %v80 = vunpack.c.l.b16 %v20
  %v81 = vunpack.c.h.b16 %v20
  %v82 = vunpack.c.l.b16 %v21
  %v83 = vunpack.c.l.b16 %v22
  %v84 = vunpack.c.h.b16 %v22
  %v85 = vunpack.c.l.b16 %v23
  %v86 = vunpack.c.l.b16 %v24
  %v87 = vunpack.c.h.b16 %v24
  %v88 = vunpack.c.l.b16 %v25
  %v89 = vpack.c.b16 %v80, %v77
  %v90 = vpack.c.b16 %v81, %v78
  %v91 = vpack.c.b16 %v82, %v79
  %v92 = vpack.c.b16 %v86, %v83
  %v93 = vpack.c.b16 %v87, %v84
  %v94 = vpack.c.b16 %v88, %v85
  %v135 = vunpack.c.l.b16 %v26
  %v136 = vunpack.c.l.b16 %v27
  %v137 = vunpack.c.l.b16 %v28
  %v138 = vunpack.c.l.b16 %v29
  %v139 = vunpack.c.l.b16 %v30
  %v140 = vunpack.c.l.b16 %v31
  %v141 = vunpack.c.l.b16 %v32
  %v142 = vunpack.c.l.b16 %v33
  %v143 = vunpack.c.l.b16 %v34
  %v144 = vunpack.c.l.b16 %v35
  %v145 = vunpack.c.l.b16 %v36
  %v146 = vunpack.c.l.b16 %v37
  %v147 = vunpack.c.l.b16 %v38
  %v148 = vunpack.c.l.b16 %v39
  %v149 = vunpack.c.l.b16 %v40
  %v150 = vunpack.c.l.b16 %v41
  %v151 = vunpack.c.l.b16 %v42
  %v152 = vunpack.c.l.b16 %v43
  %v153 = vunpack.c.l.b16 %v44
  %v154 = vunpack.c.l.b16 %v45
  %v155 = vunpack.c.l.b16 %v46
  %v156 = vunpack.c.l.b16 %v47
  %v157 = vunpack.c.l.b16 %v48
  %v158 = vunpack.c.l.b16 %v49
  %v159 = vunpack.c.l.b16 %v50
  %v160 = vunpack.c.l.b16 %v51
  %v161 = vunpack.c.l.b16 %v52
  %v162 = vunpack.c.l.b16 %v53
  %v163 = vunpack.c.l.b16 %v54
  %v164 = vunpack.c.l.b16 %v55
  %v165 = vunpack.c.l.b16 %v56
  %v166 = vunpack.c.l.b16 %v57
  %v167 = vunpack.c.l.b16 %v58
  %v168 = vunpack.c.l.b16 %v59
  %v169 = vunpack.c.l.b16 %v60
  %v170 = vunpack.c.l.b16 %v61
  %v171 = vpack.c.b16 %v136, %v135
  %v172 = vpack.c.b16 %v138, %v137
  %v173 = vpack.c.b16 %v140, %v139
  %v174 = vpack.c.b16 %v142, %v141
  %v175 = vpack.c.b16 %v144, %v143
  %v176 = vpack.c.b16 %v146, %v145
  %v177 = vpack.c.b16 %v148, %v147
  %v178 = vpack.c.b16 %v150, %v149
  %v179 = vpack.c.b16 %v152, %v151
  %v180 = vpack.c.b16 %v154, %v153
  %v181 = vpack.c.b16 %v156, %v155
  %v182 = vpack.c.b16 %v158, %v157
  %v183 = vpack.c.b16 %v160, %v159
  %v184 = vpack.c.b16 %v162, %v161
  %v185 = vpack.c.b16 %v164, %v163
  %v186 = vpack.c.b16 %v166, %v165
  %v187 = vpack.c.b16 %v168, %v167
  %v188 = vpack.c.b16 %v170, %v169
  %vm207 = vcmask 261120
  %v209 = vsel %vm207, %v91, 0
  %v212 = vsel %vm207, %v94, 0
  %214 = vmatprep.subr.bf16.mxu0 0
  %215 = vmatpush1.bf16.msra.mxu0 %v171
  %216 = vmatprep.subr.bf16.mxu0 0
  %217 = vmatpush1.bf16.msra.mxu0 %v172
  %218 = vmatprep.subr.bf16.mxu0 0
  %219 = vmatpush1.bf16.msra.mxu0 %v173
  %220 = vmatprep.subr.bf16.mxu0 0
  %221 = vmatpush1.bf16.msra.mxu0 %v174
  %222 = vmatprep.subr.bf16.mxu0 0
  %223 = vmatpush1.bf16.msra.mxu0 %v175
  %224 = vmatprep.subr.bf16.mxu0 0
  %225 = vmatpush1.bf16.msra.mxu0 %v176
  %226 = vmatprep.subr.bf16.mxu0 0
  %227 = vmatpush1.bf16.msra.mxu0 %v177
  %228 = vmatprep.subr.bf16.mxu0 0
  %229 = vmatpush1.bf16.msra.mxu0 %v178
  %230 = vmatprep.subr.bf16.mxu0 0
  %231 = vmatpush1.bf16.msra.mxu0 %v179
  %232 = vmatprep.subr.bf16.mxu0 0
  %233 = vmatpush1.bf16.msra.mxu0 %v180
  %234 = vmatprep.subr.bf16.mxu0 0
  %235 = vmatpush1.bf16.msra.mxu0 %v181
  %236 = vmatprep.subr.bf16.mxu0 0
  %237 = vmatpush1.bf16.msra.mxu0 %v182
  %238 = vmatprep.subr.bf16.mxu0 0
  %239 = vmatpush1.bf16.msra.mxu0 %v183
  %240 = vmatprep.subr.bf16.mxu0 0
  %241 = vmatpush1.bf16.msra.mxu0 %v184
  %242 = vmatprep.subr.bf16.mxu0 0
  %243 = vmatpush1.bf16.msra.mxu0 %v185
  %244 = vmatprep.subr.bf16.mxu0 0
  %245 = vmatpush1.bf16.msra.mxu0 %v186
  %246 = vmatprep.mubr.bf16.mxu0 %v90
  %247 = vmatmul.mubr.bf16.gmra.mrb[0].mxu0 %v89
  %v248 = vpop.f32.mrb[0].mxu0
  %v249 = vadd.f32 %v67, %v248
  %v250 = vpop.f32.mrb[0].mxu0
  %v251 = vpop.f32.mrb[0].mxu0
  %v252 = vadd.f32 %v67, %v251
  %v253 = vpop.f32.mrb[0].mxu0
  %254 = vmatprep.mubr.bf16.mxu0 %v93
  %255 = vmatmul.mubr.bf16.gmra.mrb[0].mxu0 %v92
  %v256 = vpop.f32.mrb[0].mxu0
  %v257 = vadd.f32 %v67, %v256
  %v258 = vpop.f32.mrb[0].mxu0
  %v259 = vpop.f32.mrb[0].mxu0
  %v260 = vadd.f32 %v67, %v259
  %v261 = vpop.f32.mrb[0].mxu0
  %262 = vdwg.mxu0
  %263 = vmatprep.subr.bf16.mxu0 0
  %264 = vmatpush1.bf16.msra.mxu0 %v187
  %265 = vmatprep.subr.bf16.mxu0 0
  %266 = vmatpush1.bf16.msra.mxu0 %v188
  %267 = vmatprep.subr.bf16.mxu0 0
  %268 = vmatpush1.bf16.msra.mxu0 0
  %269 = vmatprep.subr.bf16.mxu0 0
  %270 = vmatpush1.bf16.msra.mxu0 0
  %271 = vmatprep.subr.bf16.mxu0 0
  %272 = vmatpush1.bf16.msra.mxu0 0
  %273 = vmatprep.subr.bf16.mxu0 0
  %274 = vmatpush1.bf16.msra.mxu0 0
  %275 = vmatprep.subr.bf16.mxu0 0
  %276 = vmatpush1.bf16.msra.mxu0 0
  %277 = vmatprep.subr.bf16.mxu0 0
  %278 = vmatpush1.bf16.msra.mxu0 0
  %279 = vmatprep.subr.bf16.mxu0 0
  %280 = vmatpush1.bf16.msra.mxu0 0
  %281 = vmatprep.subr.bf16.mxu0 0
  %282 = vmatpush1.bf16.msra.mxu0 0
  %283 = vmatprep.subr.bf16.mxu0 0
  %284 = vmatpush1.bf16.msra.mxu0 0
  %285 = vmatprep.subr.bf16.mxu0 0
  %286 = vmatpush1.bf16.msra.mxu0 0
  %287 = vmatprep.subr.bf16.mxu0 0
  %288 = vmatpush1.bf16.msra.mxu0 0
  %289 = vmatprep.subr.bf16.mxu0 0
  %290 = vmatpush1.bf16.msra.mxu0 0
  %291 = vmatprep.subr.bf16.mxu0 0
  %292 = vmatpush1.bf16.msra.mxu0 0
  %293 = vmatprep.subr.bf16.mxu0 0
  %294 = vmatpush1.bf16.msra.mxu0 0
  %295 = vmatprep.mubr.bf16.mxu0 0
  %296 = vmatmul.mubr.bf16.gmra.mrb[0].mxu0 %v209
  %v297 = vpop.f32.mrb[0].mxu0
  %v298 = vadd.f32 %v249, %v297
  %v299 = vpop.f32.mrb[0].mxu0
  %v300 = vpop.f32.mrb[0].mxu0
  %v301 = vadd.f32 %v252, %v300
  %v302 = vpop.f32.mrb[0].mxu0
  %303 = vmatprep.mubr.bf16.mxu0 0
  %304 = vmatmul.mubr.bf16.gmra.mrb[0].mxu0 %v212
  %v305 = vpop.f32.mrb[0].mxu0
  %v306 = vadd.f32 %v257, %v305
  %v307 = vpop.f32.mrb[0].mxu0
  %v308 = vpop.f32.mrb[0].mxu0
  %v309 = vadd.f32 %v260, %v308
  %v310 = vpop.f32.mrb[0].mxu0
  %311 = vdwg.mxu0
  %312 = vst [vmem:[%s3] sm:$0xff] %v298
  %313 = vst [vmem:[%s3 + $0x8] sm:$0xff] %v301
  %314 = vst [vmem:[%s3 + $0x10] sm:$0xff] %v306
  %315 = vst [vmem:[%s3 + $0x18] sm:$0xff] %v309
  %p316 = scmp.eq.s32.totalorder 0, 0
  // Predicated region
  $region14: #{_lambda_.14} parent=0 // pred_check
    %p317 = pneg %p316
  $region15: #{_lambda_.14} parent=0 // pred_check_branch
    %319 = sbr.rel (%p317) target = $region17
  $region16: #{_lambda_.14} parent=0 // pred_region
    %320 = vst [vmem:[%s4] sm:$0x1] 0.0
    %321 = vst [vmem:[%s5] sm:$0x1] 0.0
  $region17: #{_lambda_.14} parent=0 // pred_fallthru
    _
  %v322 = vld [vmem:[%s4] sm:$0x1]
  %v323 = vadd.f32 %v298, %v301
  %v324 = vadd.f32 %v323, %v306
  %v325 = vadd.f32 %v324, %v309
  %v326 = vrot.slane %v325, 4
  %v327 = vadd.f32 %v325, %v326
  %v328 = vrot.slane %v327, 2
  %v329 = vadd.f32 %v327, %v328
  %v330 = vrot.slane %v329, 1
  %v331 = vadd.f32 %v329, %v330
  %v332 = vadd.f32 %v322, %v331
  %333 = vst [vmem:[%s4] sm:$0x1] %v332
  %v334 = vld [vmem:[%s5] sm:$0x1]
  %v335 = vmul.f32 %v298, %v298
  %v336 = vmul.f32 %v301, %v301
  %v337 = vmul.f32 %v306, %v306
  %v338 = vmul.f32 %v309, %v309
  %v339 = vadd.f32 %v335, %v336
  %v340 = vadd.f32 %v339, %v337
  %v341 = vadd.f32 %v340, %v338
  %v342 = vrot.slane %v341, 4
  %v343 = vadd.f32 %v341, %v342
  %v344 = vrot.slane %v343, 2
  %v345 = vadd.f32 %v343, %v344
  %v346 = vrot.slane %v345, 1
  %v347 = vadd.f32 %v345, %v346
  %v348 = vadd.f32 %v334, %v347
  %349 = vst [vmem:[%s5] sm:$0x1] %v348
  // Predicated region
  $region18: #{_lambda_.14} parent=0 // pred_check
    _
  $region19: #{_lambda_.14} parent=0 // pred_check_branch
    %351 = sbr.rel (0) target = $region21
  $region20: #{_lambda_.14} parent=0 // pred_region
    _
  $region21: #{_lambda_.14} parent=0 // pred_fallthru
    _
  // Predicated region
  $region22: #{_lambda_.14} parent=0 // pred_check
    _
  $region23: #{_lambda_.14} parent=0 // pred_check_branch
    %353 = sbr.rel (0) target = $region25
  $region24: #{_lambda_.14} parent=0 // pred_region
    _
  $region25: #{_lambda_.14} parent=0 // pred_fallthru
    _
  // Predicated region
  $region26: #{_lambda_.14} parent=0 // pred_check
    _
  $region27: #{_lambda_.14} parent=0 // pred_check_branch
    %355 = sbr.rel (0) target = $region29
  $region28: #{_lambda_.14} parent=0 // pred_region
    _
  $region29: #{_lambda_.14} parent=0 // pred_fallthru
    _
  // Predicated region
  $region30: #{_lambda_.14} parent=0 // pred_check
    _
  $region31: #{_lambda_.14} parent=0 // pred_check_branch
    %357 = sbr.rel (0) target = $region33
  $region32: #{_lambda_.14} parent=0 // pred_region
    _
  $region33: #{_lambda_.14} parent=0 // pred_fallthru
    _
  // Predicated region
  $region34: #{_lambda_.14} parent=0 // pred_check
    _
  $region35: #{_lambda_.14} parent=0 // pred_check_branch
    %359 = sbr.rel (0) target = $region37
  $region36: #{_lambda_.14} parent=0 // pred_region
    _
  $region37: #{_lambda_.14} parent=0 // pred_fallthru
    _
  // Predicated region
  $region38: #{_lambda_.14} parent=0 // pred_check
    _
  $region39: #{_lambda_.14} parent=0 // pred_check_branch
    %361 = sbr.rel (0) target = $region41
  $region40: #{_lambda_.14} parent=0 // pred_region
    _
  $region41: #{_lambda_.14} parent=0 // pred_fallthru
    _

// kernel: _lambda_.15
$region0: #{_lambda_.15}
  #allocation0 [shape = 'u32[]', space=smem, size = 0x4, offset = 0x4, fixed_abs, tag = 'smem constant byte address 0x4 - core index']
  #allocation1 [shape = 'u32[144,128]{1,0:T(1,128)}', space=vmem, size = 0x12000, scoped, tag = 'internal scratch']
  %s0 = inlined_call_operand.vmem [shape: f32[32,128], index: 0, kind: input, shape index: {}]
  %s1 = inlined_call_operand.vmem [shape: f32[1,128], index: 1, kind: input, shape index: {}]
  %s2 = inlined_call_operand.vmem [shape: f32[1,128], index: 2, kind: input, shape index: {}]
  %s3 = inlined_call_operand.vmem [shape: bf16[32,128], index: 3, kind: output, shape index: {}]
  %s4 = sld [smem:[#allocation0]]
  $region22: #{_lambda_.15} parent=0
    _
  %s6 = ssub.s32 1, %s4
  %s7 = scalar_select 0, %s6, %s4
  // Predicated region
  $region2: #{_lambda_.15} parent=0 // pred_check
    _
  $region3: #{_lambda_.15} parent=0 // pred_check_branch
    %9 = sbr.rel (0) target = $region5
  $region4: #{_lambda_.15} parent=0 // pred_region
    _
  $region5: #{_lambda_.15} parent=0 // pred_fallthru
    _
  // Predicated region
  $region6: #{_lambda_.15} parent=0 // pred_check
    _
  $region7: #{_lambda_.15} parent=0 // pred_check_branch
    %11 = sbr.rel (0) target = $region9
  $region8: #{_lambda_.15} parent=0 // pred_region
    _
  $region9: #{_lambda_.15} parent=0 // pred_fallthru
    _
  // Predicated region
  $region10: #{_lambda_.15} parent=0 // pred_check
    _
  $region11: #{_lambda_.15} parent=0 // pred_check_branch
    %13 = sbr.rel (0) target = $region13
  $region12: #{_lambda_.15} parent=0 // pred_region
    _
  $region13: #{_lambda_.15} parent=0 // pred_fallthru
    _
  %v14 = vld [vmem:[%s0] sm:$0xff]
  %v15 = vld [vmem:[%s0 + $0x8] sm:$0xff]
  %v16 = vld [vmem:[%s0 + $0x10] sm:$0xff]
  %v17 = vld [vmem:[%s0 + $0x18] sm:$0xff]
  %v18 = vld [vmem:[%s1] sm:$0x1]
  %v20 = vlaneseq
  %v21 = vshrl.u32 %v20, 7
  %v22 = vsub.s32 0, %v21
  %v23 = vrot.slane %v18, %v22
  %v25 = vmul.f32 %v14, %v23
  %v26 = vmul.f32 %v15, %v23
  %v27 = vmul.f32 %v16, %v23
  %v28 = vmul.f32 %v17, %v23
  %v29 = vld [vmem:[%s2] sm:$0x1]
  %v31 = vlaneseq
  %v32 = vshrl.u32 %v31, 7
  %v33 = vsub.s32 0, %v32
  %v34 = vrot.slane %v29, %v33
  %v36 = vadd.f32 %v25, %v34
  %v37 = vadd.f32 %v26, %v34
  %v38 = vadd.f32 %v27, %v34
  %v39 = vadd.f32 %v28, %v34
  %vm40 = vcmp.ge.f32.partialorder %v36, 0.0
  %vm41 = vcmp.ge.f32.partialorder %v37, 0.0
  %vm42 = vcmp.ge.f32.partialorder %v38, 0.0
  %vm43 = vcmp.ge.f32.partialorder %v39, 0.0
  %v44 = vmul.f32 %v36, 0.01
  %v45 = vmul.f32 %v37, 0.01
  %v46 = vmul.f32 %v38, 0.01
  %v47 = vmul.f32 %v39, 0.01
  %v48 = vsel %vm40, %v36, %v44
  %v49 = vsel %vm41, %v37, %v45
  %v50 = vsel %vm42, %v38, %v46
  %v51 = vsel %vm43, %v39, %v47
  %v52 = vpack.c.bf16 %v49, %v48
  %v53 = vpack.c.bf16 %v51, %v50
  %v56 = vunpack.c.l.b16 %v52
  %v57 = vunpack.c.h.b16 %v52
  %v58 = vunpack.c.l.b16 %v53
  %v59 = vunpack.c.h.b16 %v53
  %v60 = vpack.c.b16 %v56, %v56
  %v61 = vpack.c.b16 %v57, %v57
  %v62 = vpack.c.b16 %v58, %v58
  %v63 = vpack.c.b16 %v59, %v59
  %68 = vst [vmem:[%s3] sm:$0xf] %v60
  %69 = vst [vmem:[%s3 + $0x4] sm:$0xf] %v61
  %70 = vst [vmem:[%s3 + $0x8] sm:$0xf] %v62
  %71 = vst [vmem:[%s3 + $0xc] sm:$0xf] %v63
  // Predicated region
  $region14: #{_lambda_.15} parent=0 // pred_check
    _
  $region15: #{_lambda_.15} parent=0 // pred_check_branch
    %73 = sbr.rel (0) target = $region17
  $region16: #{_lambda_.15} parent=0 // pred_region
    _
  $region17: #{_lambda_.15} parent=0 // pred_fallthru
    _
  // Predicated region
  $region18: #{_lambda_.15} parent=0 // pred_check
    _
  $region19: #{_lambda_.15} parent=0 // pred_check_branch
    %75 = sbr.rel (0) target = $region21
  $region20: #{_lambda_.15} parent=0 // pred_region
    _
  $region21: #{_lambda_.15} parent=0 // pred_fallthru
    _

// kernel: _lambda_.17
$region0: #{_lambda_.17}
  #allocation0 [shape = 'u32[]', space=smem, size = 0x4, offset = 0x4, fixed_abs, tag = 'smem constant byte address 0x4 - core index']
  #allocation1 [shape = 'u32[144,128]{1,0:T(1,128)}', space=vmem, size = 0x12000, scoped, tag = 'internal scratch']
  %s0 = inlined_call_operand.vmem [shape: bf16[16,32], index: 0, kind: input, shape index: {}]
  %s1 = inlined_call_operand.vmem [shape: bf16[32,1024], index: 1, kind: input, shape index: {}]
  %s2 = inlined_call_operand.vmem [shape: f32[1,1024], index: 2, kind: input, shape index: {}]
  %s3 = inlined_call_operand.vmem [shape: bf16[16,1024], index: 3, kind: output, shape index: {}]
  %s4 = sld [smem:[#allocation0]]
  $region22: #{_lambda_.17} parent=0
    _
  %s6 = ssub.s32 1, %s4
  %s7 = scalar_select 0, %s6, %s4
  // Predicated region
  $region2: #{_lambda_.17} parent=0 // pred_check
    _
  $region3: #{_lambda_.17} parent=0 // pred_check_branch
    %9 = sbr.rel (0) target = $region5
  $region4: #{_lambda_.17} parent=0 // pred_region
    _
  $region5: #{_lambda_.17} parent=0 // pred_fallthru
    _
  // Predicated region
  $region6: #{_lambda_.17} parent=0 // pred_check
    _
  $region7: #{_lambda_.17} parent=0 // pred_check_branch
    %11 = sbr.rel (0) target = $region9
  $region8: #{_lambda_.17} parent=0 // pred_region
    _
  $region9: #{_lambda_.17} parent=0 // pred_fallthru
    _
  // Predicated region
  $region10: #{_lambda_.17} parent=0 // pred_check
    _
  $region11: #{_lambda_.17} parent=0 // pred_check_branch
    %13 = sbr.rel (0) target = $region13
  $region12: #{_lambda_.17} parent=0 // pred_region
    _
  $region13: #{_lambda_.17} parent=0 // pred_fallthru
    _
  %v15 = vld [vmem:[%s0] sm:$0xf]
  %v16 = vld [vmem:[%s0 + $0x4] sm:$0xf]
  %v17 = vld [vmem:[%s1] sm:$0xff]
  %v18 = vld [vmem:[%s1 + $0x8] sm:$0xff]
  %v19 = vld [vmem:[%s1 + $0x10] sm:$0xff]
  %v20 = vld [vmem:[%s1 + $0x18] sm:$0xff]
  %v21 = vld [vmem:[%s1 + $0x20] sm:$0xff]
  %v22 = vld [vmem:[%s1 + $0x28] sm:$0xff]
  %v23 = vld [vmem:[%s1 + $0x30] sm:$0xff]
  %v24 = vld [vmem:[%s1 + $0x38] sm:$0xff]
  %v25 = vld [vmem:[%s1 + $0x40] sm:$0xff]
  %v26 = vld [vmem:[%s1 + $0x48] sm:$0xff]
  %v27 = vld [vmem:[%s1 + $0x50] sm:$0xff]
  %v28 = vld [vmem:[%s1 + $0x58] sm:$0xff]
  %v29 = vld [vmem:[%s1 + $0x60] sm:$0xff]
  %v30 = vld [vmem:[%s1 + $0x68] sm:$0xff]
  %v31 = vld [vmem:[%s1 + $0x70] sm:$0xff]
  %v32 = vld [vmem:[%s1 + $0x78] sm:$0xff]
  %v33 = vld [vmem:[%s2] sm:$0xff]
  %v35 = vlaneseq
  %v36 = vshrl.u32 %v35, 7
  %v37 = vsub.s32 0, %v36
  %v38 = vrot.slane %v33, %v37
  %v39 = vlaneseq
  %v40 = vshrl.u32 %v39, 7
  %v41 = vsub.s32 1, %v40
  %v42 = vrot.slane %v33, %v41
  %v43 = vlaneseq
  %v44 = vshrl.u32 %v43, 7
  %v45 = vsub.s32 2, %v44
  %v46 = vrot.slane %v33, %v45
  %v47 = vlaneseq
  %v48 = vshrl.u32 %v47, 7
  %v49 = vsub.s32 3, %v48
  %v50 = vrot.slane %v33, %v49
  %v51 = vlaneseq
  %v52 = vshrl.u32 %v51, 7
  %v53 = vsub.s32 4, %v52
  %v54 = vrot.slane %v33, %v53
  %v55 = vlaneseq
  %v56 = vshrl.u32 %v55, 7
  %v57 = vsub.s32 5, %v56
  %v58 = vrot.slane %v33, %v57
  %v59 = vlaneseq
  %v60 = vshrl.u32 %v59, 7
  %v61 = vsub.s32 6, %v60
  %v62 = vrot.slane %v33, %v61
  %v63 = vlaneseq
  %v64 = vshrl.u32 %v63, 7
  %v65 = vsub.s32 7, %v64
  %v66 = vrot.slane %v33, %v65
  %v77 = vunpack.c.l.b16 %v15
  %v78 = vunpack.c.l.b16 %v16
  %v79 = vpack.c.b16 %v78, %v77
  %v96 = vunpack.c.l.b16 %v17
  %v97 = vunpack.c.h.b16 %v17
  %v98 = vunpack.c.l.b16 %v18
  %v99 = vunpack.c.h.b16 %v18
  %v100 = vunpack.c.l.b16 %v19
  %v101 = vunpack.c.h.b16 %v19
  %v102 = vunpack.c.l.b16 %v20
  %v103 = vunpack.c.h.b16 %v20
  %v104 = vunpack.c.l.b16 %v21
  %v105 = vunpack.c.h.b16 %v21
  %v106 = vunpack.c.l.b16 %v22
  %v107 = vunpack.c.h.b16 %v22
  %v108 = vunpack.c.l.b16 %v23
  %v109 = vunpack.c.h.b16 %v23
  %v110 = vunpack.c.l.b16 %v24
  %v111 = vunpack.c.h.b16 %v24
  %v112 = vunpack.c.l.b16 %v25
  %v113 = vunpack.c.h.b16 %v25
  %v114 = vunpack.c.l.b16 %v26
  %v115 = vunpack.c.h.b16 %v26
  %v116 = vunpack.c.l.b16 %v27
  %v117 = vunpack.c.h.b16 %v27
  %v118 = vunpack.c.l.b16 %v28
  %v119 = vunpack.c.h.b16 %v28
  %v120 = vunpack.c.l.b16 %v29
  %v121 = vunpack.c.h.b16 %v29
  %v122 = vunpack.c.l.b16 %v30
  %v123 = vunpack.c.h.b16 %v30
  %v124 = vunpack.c.l.b16 %v31
  %v125 = vunpack.c.h.b16 %v31
  %v126 = vunpack.c.l.b16 %v32
  %v127 = vunpack.c.h.b16 %v32
  %v128 = vpack.c.b16 %v104, %v96
  %v129 = vpack.c.b16 %v105, %v97
  %v130 = vpack.c.b16 %v106, %v98
  %v131 = vpack.c.b16 %v107, %v99
  %v132 = vpack.c.b16 %v108, %v100
  %v133 = vpack.c.b16 %v109, %v101
  %v134 = vpack.c.b16 %v110, %v102
  %v135 = vpack.c.b16 %v111, %v103
  %v136 = vpack.c.b16 %v120, %v112
  %v137 = vpack.c.b16 %v121, %v113
  %v138 = vpack.c.b16 %v122, %v114
  %v139 = vpack.c.b16 %v123, %v115
  %v140 = vpack.c.b16 %v124, %v116
  %v141 = vpack.c.b16 %v125, %v117
  %v142 = vpack.c.b16 %v126, %v118
  %v143 = vpack.c.b16 %v127, %v119
  %vm160 = vcmask 261120
  %v162 = vsel %vm160, %v79, 0
  %164 = vmatprep.subr.bf16.mxu0 %v129
  %165 = vmatpush1.bf16.msra.mxu0 %v128
  %166 = vmatprep.subr.bf16.mxu0 %v137
  %167 = vmatpush1.bf16.msra.mxu0 %v136
  %168 = vmatprep.subr.bf16.mxu0 0
  %169 = vmatpush1.bf16.msra.mxu0 0
  %170 = vmatprep.subr.bf16.mxu0 0
  %171 = vmatpush1.bf16.msra.mxu0 0
  %172 = vmatprep.subr.bf16.mxu0 0
  %173 = vmatpush1.bf16.msra.mxu0 0
  %174 = vmatprep.subr.bf16.mxu0 0
  %175 = vmatpush1.bf16.msra.mxu0 0
  %176 = vmatprep.subr.bf16.mxu0 0
  %177 = vmatpush1.bf16.msra.mxu0 0
  %178 = vmatprep.subr.bf16.mxu0 0
  %179 = vmatpush1.bf16.msra.mxu0 0
  %180 = vmatprep.subr.bf16.mxu0 0
  %181 = vmatpush1.bf16.msra.mxu0 0
  %182 = vmatprep.subr.bf16.mxu0 0
  %183 = vmatpush1.bf16.msra.mxu0 0
  %184 = vmatprep.subr.bf16.mxu0 0
  %185 = vmatpush1.bf16.msra.mxu0 0
  %186 = vmatprep.subr.bf16.mxu0 0
  %187 = vmatpush1.bf16.msra.mxu0 0
  %188 = vmatprep.subr.bf16.mxu0 0
  %189 = vmatpush1.bf16.msra.mxu0 0
  %190 = vmatprep.subr.bf16.mxu0 0
  %191 = vmatpush1.bf16.msra.mxu0 0
  %192 = vmatprep.subr.bf16.mxu0 0
  %193 = vmatpush1.bf16.msra.mxu0 0
  %194 = vmatprep.subr.bf16.mxu0 0
  %195 = vmatpush1.bf16.msra.mxu0 0
  %196 = vmatprep.mubr.bf16.mxu0 0
  %197 = vmatmul.mubr.bf16.gmra.mrb[0].mxu0 %v162
  %v198 = vpop.f32.mrb[0].mxu0
  %v199 = vadd.f32 %v38, %v198
  %v200 = vpop.f32.mrb[0].mxu0
  %v201 = vadd.f32 %v42, %v200
  %v202 = vpop.f32.mrb[0].mxu0
  %v203 = vadd.f32 %v38, %v202
  %v204 = vpop.f32.mrb[0].mxu0
  %v205 = vadd.f32 %v42, %v204
  %206 = vdwg.mxu0
  %207 = vmatprep.subr.bf16.mxu0 %v131
  %208 = vmatpush1.bf16.msra.mxu0 %v130
  %209 = vmatprep.subr.bf16.mxu0 %v139
  %210 = vmatpush1.bf16.msra.mxu0 %v138
  %211 = vmatprep.subr.bf16.mxu0 0
  %212 = vmatpush1.bf16.msra.mxu0 0
  %213 = vmatprep.subr.bf16.mxu0 0
  %214 = vmatpush1.bf16.msra.mxu0 0
  %215 = vmatprep.subr.bf16.mxu0 0
  %216 = vmatpush1.bf16.msra.mxu0 0
  %217 = vmatprep.subr.bf16.mxu0 0
  %218 = vmatpush1.bf16.msra.mxu0 0
  %219 = vmatprep.subr.bf16.mxu0 0
  %220 = vmatpush1.bf16.msra.mxu0 0
  %221 = vmatprep.subr.bf16.mxu0 0
  %222 = vmatpush1.bf16.msra.mxu0 0
  %223 = vmatprep.subr.bf16.mxu0 0
  %224 = vmatpush1.bf16.msra.mxu0 0
  %225 = vmatprep.subr.bf16.mxu0 0
  %226 = vmatpush1.bf16.msra.mxu0 0
  %227 = vmatprep.subr.bf16.mxu0 0
  %228 = vmatpush1.bf16.msra.mxu0 0
  %229 = vmatprep.subr.bf16.mxu0 0
  %230 = vmatpush1.bf16.msra.mxu0 0
  %231 = vmatprep.subr.bf16.mxu0 0
  %232 = vmatpush1.bf16.msra.mxu0 0
  %233 = vmatprep.subr.bf16.mxu0 0
  %234 = vmatpush1.bf16.msra.mxu0 0
  %235 = vmatprep.subr.bf16.mxu0 0
  %236 = vmatpush1.bf16.msra.mxu0 0
  %237 = vmatprep.subr.bf16.mxu0 0
  %238 = vmatpush1.bf16.msra.mxu0 0
  %239 = vmatprep.mubr.bf16.mxu0 0
  %240 = vmatmul.mubr.bf16.gmra.mrb[0].mxu0 %v162
  %v241 = vpop.f32.mrb[0].mxu0
  %v242 = vadd.f32 %v46, %v241
  %v243 = vpop.f32.mrb[0].mxu0
  %v244 = vadd.f32 %v50, %v243
  %v245 = vpop.f32.mrb[0].mxu0
  %v246 = vadd.f32 %v46, %v245
  %v247 = vpop.f32.mrb[0].mxu0
  %v248 = vadd.f32 %v50, %v247
  %249 = vdwg.mxu0
  %250 = vmatprep.subr.bf16.mxu0 %v133
  %251 = vmatpush1.bf16.msra.mxu0 %v132
  %252 = vmatprep.subr.bf16.mxu0 %v141
  %253 = vmatpush1.bf16.msra.mxu0 %v140
  %254 = vmatprep.subr.bf16.mxu0 0
  %255 = vmatpush1.bf16.msra.mxu0 0
  %256 = vmatprep.subr.bf16.mxu0 0
  %257 = vmatpush1.bf16.msra.mxu0 0
  %258 = vmatprep.subr.bf16.mxu0 0
  %259 = vmatpush1.bf16.msra.mxu0 0
  %260 = vmatprep.subr.bf16.mxu0 0
  %261 = vmatpush1.bf16.msra.mxu0 0
  %262 = vmatprep.subr.bf16.mxu0 0
  %263 = vmatpush1.bf16.msra.mxu0 0
  %264 = vmatprep.subr.bf16.mxu0 0
  %265 = vmatpush1.bf16.msra.mxu0 0
  %266 = vmatprep.subr.bf16.mxu0 0
  %267 = vmatpush1.bf16.msra.mxu0 0
  %268 = vmatprep.subr.bf16.mxu0 0
  %269 = vmatpush1.bf16.msra.mxu0 0
  %270 = vmatprep.subr.bf16.mxu0 0
  %271 = vmatpush1.bf16.msra.mxu0 0
  %272 = vmatprep.subr.bf16.mxu0 0
  %273 = vmatpush1.bf16.msra.mxu0 0
  %274 = vmatprep.subr.bf16.mxu0 0
  %275 = vmatpush1.bf16.msra.mxu0 0
  %276 = vmatprep.subr.bf16.mxu0 0
  %277 = vmatpush1.bf16.msra.mxu0 0
  %278 = vmatprep.subr.bf16.mxu0 0
  %279 = vmatpush1.bf16.msra.mxu0 0
  %280 = vmatprep.subr.bf16.mxu0 0
  %281 = vmatpush1.bf16.msra.mxu0 0
  %282 = vmatprep.mubr.bf16.mxu0 0
  %283 = vmatmul.mubr.bf16.gmra.mrb[0].mxu0 %v162
  %v284 = vpop.f32.mrb[0].mxu0
  %v285 = vadd.f32 %v54, %v284
  %v286 = vpop.f32.mrb[0].mxu0
  %v287 = vadd.f32 %v58, %v286
  %v288 = vpop.f32.mrb[0].mxu0
  %v289 = vadd.f32 %v54, %v288
  %v290 = vpop.f32.mrb[0].mxu0
  %v291 = vadd.f32 %v58, %v290
  %292 = vdwg.mxu0
  %293 = vmatprep.subr.bf16.mxu0 %v135
  %294 = vmatpush1.bf16.msra.mxu0 %v134
  %295 = vmatprep.subr.bf16.mxu0 %v143
  %296 = vmatpush1.bf16.msra.mxu0 %v142
  %297 = vmatprep.subr.bf16.mxu0 0
  %298 = vmatpush1.bf16.msra.mxu0 0
  %299 = vmatprep.subr.bf16.mxu0 0
  %300 = vmatpush1.bf16.msra.mxu0 0
  %301 = vmatprep.subr.bf16.mxu0 0
  %302 = vmatpush1.bf16.msra.mxu0 0
  %303 = vmatprep.subr.bf16.mxu0 0
  %304 = vmatpush1.bf16.msra.mxu0 0
  %305 = vmatprep.subr.bf16.mxu0 0
  %306 = vmatpush1.bf16.msra.mxu0 0
  %307 = vmatprep.subr.bf16.mxu0 0
  %308 = vmatpush1.bf16.msra.mxu0 0
  %309 = vmatprep.subr.bf16.mxu0 0
  %310 = vmatpush1.bf16.msra.mxu0 0
  %311 = vmatprep.subr.bf16.mxu0 0
  %312 = vmatpush1.bf16.msra.mxu0 0
  %313 = vmatprep.subr.bf16.mxu0 0
  %314 = vmatpush1.bf16.msra.mxu0 0
  %315 = vmatprep.subr.bf16.mxu0 0
  %316 = vmatpush1.bf16.msra.mxu0 0
  %317 = vmatprep.subr.bf16.mxu0 0
  %318 = vmatpush1.bf16.msra.mxu0 0
  %319 = vmatprep.subr.bf16.mxu0 0
  %320 = vmatpush1.bf16.msra.mxu0 0
  %321 = vmatprep.subr.bf16.mxu0 0
  %322 = vmatpush1.bf16.msra.mxu0 0
  %323 = vmatprep.subr.bf16.mxu0 0
  %324 = vmatpush1.bf16.msra.mxu0 0
  %325 = vmatprep.mubr.bf16.mxu0 0
  %326 = vmatmul.mubr.bf16.gmra.mrb[0].mxu0 %v162
  %v327 = vpop.f32.mrb[0].mxu0
  %v328 = vadd.f32 %v62, %v327
  %v329 = vpop.f32.mrb[0].mxu0
  %v330 = vadd.f32 %v66, %v329
  %v331 = vpop.f32.mrb[0].mxu0
  %v332 = vadd.f32 %v62, %v331
  %v333 = vpop.f32.mrb[0].mxu0
  %v334 = vadd.f32 %v66, %v333
  %335 = vdwg.mxu0
  %v336 = vpack.c.bf16 %v203, %v199
  %v337 = vpack.c.bf16 %v205, %v201
  %v338 = vpack.c.bf16 %v246, %v242
  %v339 = vpack.c.bf16 %v248, %v244
  %v340 = vpack.c.bf16 %v289, %v285
  %v341 = vpack.c.bf16 %v291, %v287
  %v342 = vpack.c.bf16 %v332, %v328
  %v343 = vpack.c.bf16 %v334, %v330
  %v352 = vunpack.c.l.b16 %v336
  %v353 = vunpack.c.l.b16 %v337
  %v354 = vunpack.c.l.b16 %v338
  %v355 = vunpack.c.l.b16 %v339
  %v356 = vunpack.c.l.b16 %v340
  %v357 = vunpack.c.l.b16 %v341
  %v358 = vunpack.c.l.b16 %v342
  %v359 = vunpack.c.l.b16 %v343
  %v360 = vunpack.c.h.b16 %v336
  %v361 = vunpack.c.h.b16 %v337
  %v362 = vunpack.c.h.b16 %v338
  %v363 = vunpack.c.h.b16 %v339
  %v364 = vunpack.c.h.b16 %v340
  %v365 = vunpack.c.h.b16 %v341
  %v366 = vunpack.c.h.b16 %v342
  %v367 = vunpack.c.h.b16 %v343
  %v368 = vpack.c.b16 %v353, %v352
  %v369 = vpack.c.b16 %v355, %v354
  %v370 = vpack.c.b16 %v357, %v356
  %v371 = vpack.c.b16 %v359, %v358
  %v372 = vpack.c.b16 %v361, %v360
  %v373 = vpack.c.b16 %v363, %v362
  %v374 = vpack.c.b16 %v365, %v364
  %v375 = vpack.c.b16 %v367, %v366
  %384 = vst [vmem:[%s3] sm:$0xff] %v368
  %385 = vst [vmem:[%s3 + $0x8] sm:$0xff] %v369
  %386 = vst [vmem:[%s3 + $0x10] sm:$0xff] %v370
  %387 = vst [vmem:[%s3 + $0x18] sm:$0xff] %v371
  %388 = vst [vmem:[%s3 + $0x20] sm:$0xff] %v372
  %389 = vst [vmem:[%s3 + $0x28] sm:$0xff] %v373
  %390 = vst [vmem:[%s3 + $0x30] sm:$0xff] %v374
  %391 = vst [vmem:[%s3 + $0x38] sm:$0xff] %v375
  // Predicated region
  $region14: #{_lambda_.17} parent=0 // pred_check
    _
  $region15: #{_lambda_.17} parent=0 // pred_check_branch
    %393 = sbr.rel (0) target = $region17
  $region16: #{_lambda_.17} parent=0 // pred_region
    _
  $region17: #{_lambda_.17} parent=0 // pred_fallthru
    _
  // Predicated region
  $region18: #{_lambda_.17} parent=0 // pred_check
    _
  $region19: #{_lambda_.17} parent=0 // pred_check_branch
    %395 = sbr.rel (0) target = $region21
  $region20: #{_lambda_.17} parent=0 // pred_region
    _
  $region21: #{_lambda_.17} parent=0 // pred_fallthru
    _

// kernel: _lambda_.16
$region0: #{_lambda_.16}
  #allocation0 [shape = 'u32[]', space=smem, size = 0x4, offset = 0x4, fixed_abs, tag = 'smem constant byte address 0x4 - core index']
  #allocation1 [shape = 'u32[144,128]{1,0:T(1,128)}', space=vmem, size = 0x12000, scoped, tag = 'internal scratch']
  %s0 = inlined_call_operand.vmem [shape: bf16[16,1024], index: 0, kind: input, shape index: {}]
  %s1 = inlined_call_operand.vmem [shape: bf16[1024,128], index: 1, kind: input, shape index: {}]
  %s2 = inlined_call_operand.vmem [shape: f32[1,128], index: 2, kind: input, shape index: {}]
  %s3 = inlined_call_operand.vmem [shape: bf16[16,128], index: 3, kind: output, shape index: {}]
  %s4 = sld [smem:[#allocation0]]
  $region22: #{_lambda_.16} parent=0
    _
  %s6 = ssub.s32 1, %s4
  %s7 = scalar_select 0, %s6, %s4
  // Predicated region
  $region2: #{_lambda_.16} parent=0 // pred_check
    _
  $region3: #{_lambda_.16} parent=0 // pred_check_branch
    %9 = sbr.rel (0) target = $region5
  $region4: #{_lambda_.16} parent=0 // pred_region
    _
  $region5: #{_lambda_.16} parent=0 // pred_fallthru
    _
  // Predicated region
  $region6: #{_lambda_.16} parent=0 // pred_check
    _
  $region7: #{_lambda_.16} parent=0 // pred_check_branch
    %11 = sbr.rel (0) target = $region9
  $region8: #{_lambda_.16} parent=0 // pred_region
    _
  $region9: #{_lambda_.16} parent=0 // pred_fallthru
    _
  // Predicated region
  $region10: #{_lambda_.16} parent=0 // pred_check
    _
  $region11: #{_lambda_.16} parent=0 // pred_check_branch
    %13 = sbr.rel (0) target = $region13
  $region12: #{_lambda_.16} parent=0 // pred_region
    _
  $region13: #{_lambda_.16} parent=0 // pred_fallthru
    _
  %v15 = vld [vmem:[%s0] sm:$0xff]
  %v16 = vld [vmem:[%s0 + $0x8] sm:$0xff]
  %v17 = vld [vmem:[%s0 + $0x10] sm:$0xff]
  %v18 = vld [vmem:[%s0 + $0x18] sm:$0xff]
  %v19 = vld [vmem:[%s0 + $0x20] sm:$0xff]
  %v20 = vld [vmem:[%s0 + $0x28] sm:$0xff]
  %v21 = vld [vmem:[%s0 + $0x30] sm:$0xff]
  %v22 = vld [vmem:[%s0 + $0x38] sm:$0xff]
  %v23 = vld [vmem:[%s1] sm:$0xf]
  %v24 = vld [vmem:[%s1 + $0x4] sm:$0xf]
  %v25 = vld [vmem:[%s1 + $0x8] sm:$0xf]
  %v26 = vld [vmem:[%s1 + $0xc] sm:$0xf]
  %v27 = vld [vmem:[%s1 + $0x10] sm:$0xf]
  %v28 = vld [vmem:[%s1 + $0x14] sm:$0xf]
  %v29 = vld [vmem:[%s1 + $0x18] sm:$0xf]
  %v30 = vld [vmem:[%s1 + $0x1c] sm:$0xf]
  %v31 = vld [vmem:[%s1 + $0x20] sm:$0xf]
  %v32 = vld [vmem:[%s1 + $0x24] sm:$0xf]
  %v33 = vld [vmem:[%s1 + $0x28] sm:$0xf]
  %v34 = vld [vmem:[%s1 + $0x2c] sm:$0xf]
  %v35 = vld [vmem:[%s1 + $0x30] sm:$0xf]
  %v36 = vld [vmem:[%s1 + $0x34] sm:$0xf]
  %v37 = vld [vmem:[%s1 + $0x38] sm:$0xf]
  %v38 = vld [vmem:[%s1 + $0x3c] sm:$0xf]
  %v39 = vld [vmem:[%s1 + $0x40] sm:$0xf]
  %v40 = vld [vmem:[%s1 + $0x44] sm:$0xf]
  %v41 = vld [vmem:[%s1 + $0x48] sm:$0xf]
  %v42 = vld [vmem:[%s1 + $0x4c] sm:$0xf]
  %v43 = vld [vmem:[%s1 + $0x50] sm:$0xf]
  %v44 = vld [vmem:[%s1 + $0x54] sm:$0xf]
  %v45 = vld [vmem:[%s1 + $0x58] sm:$0xf]
  %v46 = vld [vmem:[%s1 + $0x5c] sm:$0xf]
  %v47 = vld [vmem:[%s1 + $0x60] sm:$0xf]
  %v48 = vld [vmem:[%s1 + $0x64] sm:$0xf]
  %v49 = vld [vmem:[%s1 + $0x68] sm:$0xf]
  %v50 = vld [vmem:[%s1 + $0x6c] sm:$0xf]
  %v51 = vld [vmem:[%s1 + $0x70] sm:$0xf]
  %v52 = vld [vmem:[%s1 + $0x74] sm:$0xf]
  %v53 = vld [vmem:[%s1 + $0x78] sm:$0xf]
  %v54 = vld [vmem:[%s1 + $0x7c] sm:$0xf]
  %v55 = vld [vmem:[%s1 + $0x80] sm:$0xf]
  %v56 = vld [vmem:[%s1 + $0x84] sm:$0xf]
  %v57 = vld [vmem:[%s1 + $0x88] sm:$0xf]
  %v58 = vld [vmem:[%s1 + $0x8c] sm:$0xf]
  %v59 = vld [vmem:[%s1 + $0x90] sm:$0xf]
  %v60 = vld [vmem:[%s1 + $0x94] sm:$0xf]
  %v61 = vld [vmem:[%s1 + $0x98] sm:$0xf]
  %v62 = vld [vmem:[%s1 + $0x9c] sm:$0xf]
  %v63 = vld [vmem:[%s1 + $0xa0] sm:$0xf]
  %v64 = vld [vmem:[%s1 + $0xa4] sm:$0xf]
  %v65 = vld [vmem:[%s1 + $0xa8] sm:$0xf]
  %v66 = vld [vmem:[%s1 + $0xac] sm:$0xf]
  %v67 = vld [vmem:[%s1 + $0xb0] sm:$0xf]
  %v68 = vld [vmem:[%s1 + $0xb4] sm:$0xf]
  %v69 = vld [vmem:[%s1 + $0xb8] sm:$0xf]
  %v70 = vld [vmem:[%s1 + $0xbc] sm:$0xf]
  %v71 = vld [vmem:[%s1 + $0xc0] sm:$0xf]
  %v72 = vld [vmem:[%s1 + $0xc4] sm:$0xf]
  %v73 = vld [vmem:[%s1 + $0xc8] sm:$0xf]
  %v74 = vld [vmem:[%s1 + $0xcc] sm:$0xf]
  %v75 = vld [vmem:[%s1 + $0xd0] sm:$0xf]
  %v76 = vld [vmem:[%s1 + $0xd4] sm:$0xf]
  %v77 = vld [vmem:[%s1 + $0xd8] sm:$0xf]
  %v78 = vld [vmem:[%s1 + $0xdc] sm:$0xf]
  %v79 = vld [vmem:[%s1 + $0xe0] sm:$0xf]
  %v80 = vld [vmem:[%s1 + $0xe4] sm:$0xf]
  %v81 = vld [vmem:[%s1 + $0xe8] sm:$0xf]
  %v82 = vld [vmem:[%s1 + $0xec] sm:$0xf]
  %v83 = vld [vmem:[%s1 + $0xf0] sm:$0xf]
  %v84 = vld [vmem:[%s1 + $0xf4] sm:$0xf]
  %v85 = vld [vmem:[%s1 + $0xf8] sm:$0xf]
  %v86 = vld [vmem:[%s1 + $0xfc] sm:$0xf]
  %v87 = vld [vmem:[%s1 + $0x100] sm:$0xf]
  %v88 = vld [vmem:[%s1 + $0x104] sm:$0xf]
  %v89 = vld [vmem:[%s1 + $0x108] sm:$0xf]
  %v90 = vld [vmem:[%s1 + $0x10c] sm:$0xf]
  %v91 = vld [vmem:[%s1 + $0x110] sm:$0xf]
  %v92 = vld [vmem:[%s1 + $0x114] sm:$0xf]
  %v93 = vld [vmem:[%s1 + $0x118] sm:$0xf]
  %v94 = vld [vmem:[%s1 + $0x11c] sm:$0xf]
  %v95 = vld [vmem:[%s1 + $0x120] sm:$0xf]
  %v96 = vld [vmem:[%s1 + $0x124] sm:$0xf]
  %v97 = vld [vmem:[%s1 + $0x128] sm:$0xf]
  %v98 = vld [vmem:[%s1 + $0x12c] sm:$0xf]
  %v99 = vld [vmem:[%s1 + $0x130] sm:$0xf]
  %v100 = vld [vmem:[%s1 + $0x134] sm:$0xf]
  %v101 = vld [vmem:[%s1 + $0x138] sm:$0xf]
  %v102 = vld [vmem:[%s1 + $0x13c] sm:$0xf]
  %v103 = vld [vmem:[%s1 + $0x140] sm:$0xf]
  %v104 = vld [vmem:[%s1 + $0x144] sm:$0xf]
  %v105 = vld [vmem:[%s1 + $0x148] sm:$0xf]
  %v106 = vld [vmem:[%s1 + $0x14c] sm:$0xf]
  %v107 = vld [vmem:[%s1 + $0x150] sm:$0xf]
  %v108 = vld [vmem:[%s1 + $0x154] sm:$0xf]
  %v109 = vld [vmem:[%s1 + $0x158] sm:$0xf]
  %v110 = vld [vmem:[%s1 + $0x15c] sm:$0xf]
  %v111 = vld [vmem:[%s1 + $0x160] sm:$0xf]
  %v112 = vld [vmem:[%s1 + $0x164] sm:$0xf]
  %v113 = vld [vmem:[%s1 + $0x168] sm:$0xf]
  %v114 = vld [vmem:[%s1 + $0x16c] sm:$0xf]
  %v115 = vld [vmem:[%s1 + $0x170] sm:$0xf]
  %v116 = vld [vmem:[%s1 + $0x174] sm:$0xf]
  %v117 = vld [vmem:[%s1 + $0x178] sm:$0xf]
  %v118 = vld [vmem:[%s1 + $0x17c] sm:$0xf]
  %v119 = vld [vmem:[%s1 + $0x180] sm:$0xf]
  %v120 = vld [vmem:[%s1 + $0x184] sm:$0xf]
  %v121 = vld [vmem:[%s1 + $0x188] sm:$0xf]
  %v122 = vld [vmem:[%s1 + $0x18c] sm:$0xf]
  %v123 = vld [vmem:[%s1 + $0x190] sm:$0xf]
  %v124 = vld [vmem:[%s1 + $0x194] sm:$0xf]
  %v125 = vld [vmem:[%s1 + $0x198] sm:$0xf]
  %v126 = vld [vmem:[%s1 + $0x19c] sm:$0xf]
  %v127 = vld [vmem:[%s1 + $0x1a0] sm:$0xf]
  %v128 = vld [vmem:[%s1 + $0x1a4] sm:$0xf]
  %v129 = vld [vmem:[%s1 + $0x1a8] sm:$0xf]
  %v130 = vld [vmem:[%s1 + $0x1ac] sm:$0xf]
  %v131 = vld [vmem:[%s1 + $0x1b0] sm:$0xf]
  %v132 = vld [vmem:[%s1 + $0x1b4] sm:$0xf]
  %v133 = vld [vmem:[%s1 + $0x1b8] sm:$0xf]
  %v134 = vld [vmem:[%s1 + $0x1bc] sm:$0xf]
  %v135 = vld [vmem:[%s1 + $0x1c0] sm:$0xf]
  %v136 = vld [vmem:[%s1 + $0x1c4] sm:$0xf]
  %v137 = vld [vmem:[%s1 + $0x1c8] sm:$0xf]
  %v138 = vld [vmem:[%s1 + $0x1cc] sm:$0xf]
  %v139 = vld [vmem:[%s1 + $0x1d0] sm:$0xf]
  %v140 = vld [vmem:[%s1 + $0x1d4] sm:$0xf]
  %v141 = vld [vmem:[%s1 + $0x1d8] sm:$0xf]
  %v142 = vld [vmem:[%s1 + $0x1dc] sm:$0xf]
  %v143 = vld [vmem:[%s1 + $0x1e0] sm:$0xf]
  %v144 = vld [vmem:[%s1 + $0x1e4] sm:$0xf]
  %v145 = vld [vmem:[%s1 + $0x1e8] sm:$0xf]
  %v146 = vld [vmem:[%s1 + $0x1ec] sm:$0xf]
  %v147 = vld [vmem:[%s1 + $0x1f0] sm:$0xf]
  %v148 = vld [vmem:[%s1 + $0x1f4] sm:$0xf]
  %v149 = vld [vmem:[%s1 + $0x1f8] sm:$0xf]
  %v150 = vld [vmem:[%s1 + $0x1fc] sm:$0xf]
  %v151 = vld [vmem:[%s2] sm:$0x1]
  %v153 = vlaneseq
  %v154 = vshrl.u32 %v153, 7
  %v155 = vsub.s32 0, %v154
  %v156 = vrot.slane %v151, %v155
  %v166 = vunpack.c.l.b16 %v15
  %v167 = vunpack.c.h.b16 %v15
  %v168 = vunpack.c.l.b16 %v16
  %v169 = vunpack.c.h.b16 %v16
  %v170 = vunpack.c.l.b16 %v17
  %v171 = vunpack.c.h.b16 %v17
  %v172 = vunpack.c.l.b16 %v18
  %v173 = vunpack.c.h.b16 %v18
  %v174 = vunpack.c.l.b16 %v19
  %v175 = vunpack.c.h.b16 %v19
  %v176 = vunpack.c.l.b16 %v20
  %v177 = vunpack.c.h.b16 %v20
  %v178 = vunpack.c.l.b16 %v21
  %v179 = vunpack.c.h.b16 %v21
  %v180 = vunpack.c.l.b16 %v22
  %v181 = vunpack.c.h.b16 %v22
  %v182 = vpack.c.b16 %v174, %v166
  %v183 = vpack.c.b16 %v175, %v167
  %v184 = vpack.c.b16 %v176, %v168
  %v185 = vpack.c.b16 %v177, %v169
  %v186 = vpack.c.b16 %v178, %v170
  %v187 = vpack.c.b16 %v179, %v171
  %v188 = vpack.c.b16 %v180, %v172
  %v189 = vpack.c.b16 %v181, %v173
  %v326 = vunpack.c.l.b16 %v23
  %v327 = vunpack.c.l.b16 %v24
  %v328 = vunpack.c.l.b16 %v25
  %v329 = vunpack.c.l.b16 %v26
  %v330 = vunpack.c.l.b16 %v27
  %v331 = vunpack.c.l.b16 %v28
  %v332 = vunpack.c.l.b16 %v29
  %v333 = vunpack.c.l.b16 %v30
  %v334 = vunpack.c.l.b16 %v31
  %v335 = vunpack.c.l.b16 %v32
  %v336 = vunpack.c.l.b16 %v33
  %v337 = vunpack.c.l.b16 %v34
  %v338 = vunpack.c.l.b16 %v35
  %v339 = vunpack.c.l.b16 %v36
  %v340 = vunpack.c.l.b16 %v37
  %v341 = vunpack.c.l.b16 %v38
  %v342 = vunpack.c.l.b16 %v39
  %v343 = vunpack.c.l.b16 %v40
  %v344 = vunpack.c.l.b16 %v41
  %v345 = vunpack.c.l.b16 %v42
  %v346 = vunpack.c.l.b16 %v43
  %v347 = vunpack.c.l.b16 %v44
  %v348 = vunpack.c.l.b16 %v45
  %v349 = vunpack.c.l.b16 %v46
  %v350 = vunpack.c.l.b16 %v47
  %v351 = vunpack.c.l.b16 %v48
  %v352 = vunpack.c.l.b16 %v49
  %v353 = vunpack.c.l.b16 %v50
  %v354 = vunpack.c.l.b16 %v51
  %v355 = vunpack.c.l.b16 %v52
  %v356 = vunpack.c.l.b16 %v53
  %v357 = vunpack.c.l.b16 %v54
  %v358 = vunpack.c.l.b16 %v55
  %v359 = vunpack.c.l.b16 %v56
  %v360 = vunpack.c.l.b16 %v57
  %v361 = vunpack.c.l.b16 %v58
  %v362 = vunpack.c.l.b16 %v59
  %v363 = vunpack.c.l.b16 %v60
  %v364 = vunpack.c.l.b16 %v61
  %v365 = vunpack.c.l.b16 %v62
  %v366 = vunpack.c.l.b16 %v63
  %v367 = vunpack.c.l.b16 %v64
  %v368 = vunpack.c.l.b16 %v65
  %v369 = vunpack.c.l.b16 %v66
  %v370 = vunpack.c.l.b16 %v67
  %v371 = vunpack.c.l.b16 %v68
  %v372 = vunpack.c.l.b16 %v69
  %v373 = vunpack.c.l.b16 %v70
  %v374 = vunpack.c.l.b16 %v71
  %v375 = vunpack.c.l.b16 %v72
  %v376 = vunpack.c.l.b16 %v73
  %v377 = vunpack.c.l.b16 %v74
  %v378 = vunpack.c.l.b16 %v75
  %v379 = vunpack.c.l.b16 %v76
  %v380 = vunpack.c.l.b16 %v77
  %v381 = vunpack.c.l.b16 %v78
  %v382 = vunpack.c.l.b16 %v79
  %v383 = vunpack.c.l.b16 %v80
  %v384 = vunpack.c.l.b16 %v81
  %v385 = vunpack.c.l.b16 %v82
  %v386 = vunpack.c.l.b16 %v83
  %v387 = vunpack.c.l.b16 %v84
  %v388 = vunpack.c.l.b16 %v85
  %v389 = vunpack.c.l.b16 %v86
  %v390 = vunpack.c.l.b16 %v87
  %v391 = vunpack.c.l.b16 %v88
  %v392 = vunpack.c.l.b16 %v89
  %v393 = vunpack.c.l.b16 %v90
  %v394 = vunpack.c.l.b16 %v91
  %v395 = vunpack.c.l.b16 %v92
  %v396 = vunpack.c.l.b16 %v93
  %v397 = vunpack.c.l.b16 %v94
  %v398 = vunpack.c.l.b16 %v95
  %v399 = vunpack.c.l.b16 %v96
  %v400 = vunpack.c.l.b16 %v97
  %v401 = vunpack.c.l.b16 %v98
  %v402 = vunpack.c.l.b16 %v99
  %v403 = vunpack.c.l.b16 %v100
  %v404 = vunpack.c.l.b16 %v101
  %v405 = vunpack.c.l.b16 %v102
  %v406 = vunpack.c.l.b16 %v103
  %v407 = vunpack.c.l.b16 %v104
  %v408 = vunpack.c.l.b16 %v105
  %v409 = vunpack.c.l.b16 %v106
  %v410 = vunpack.c.l.b16 %v107
  %v411 = vunpack.c.l.b16 %v108
  %v412 = vunpack.c.l.b16 %v109
  %v413 = vunpack.c.l.b16 %v110
  %v414 = vunpack.c.l.b16 %v111
  %v415 = vunpack.c.l.b16 %v112
  %v416 = vunpack.c.l.b16 %v113
  %v417 = vunpack.c.l.b16 %v114
  %v418 = vunpack.c.l.b16 %v115
  %v419 = vunpack.c.l.b16 %v116
  %v420 = vunpack.c.l.b16 %v117
  %v421 = vunpack.c.l.b16 %v118
  %v422 = vunpack.c.l.b16 %v119
  %v423 = vunpack.c.l.b16 %v120
  %v424 = vunpack.c.l.b16 %v121
  %v425 = vunpack.c.l.b16 %v122
  %v426 = vunpack.c.l.b16 %v123
  %v427 = vunpack.c.l.b16 %v124
  %v428 = vunpack.c.l.b16 %v125
  %v429 = vunpack.c.l.b16 %v126
  %v430 = vunpack.c.l.b16 %v127
  %v431 = vunpack.c.l.b16 %v128
  %v432 = vunpack.c.l.b16 %v129
  %v433 = vunpack.c.l.b16 %v130
  %v434 = vunpack.c.l.b16 %v131
  %v435 = vunpack.c.l.b16 %v132
  %v436 = vunpack.c.l.b16 %v133
  %v437 = vunpack.c.l.b16 %v134
  %v438 = vunpack.c.l.b16 %v135
  %v439 = vunpack.c.l.b16 %v136
  %v440 = vunpack.c.l.b16 %v137
  %v441 = vunpack.c.l.b16 %v138
  %v442 = vunpack.c.l.b16 %v139
  %v443 = vunpack.c.l.b16 %v140
  %v444 = vunpack.c.l.b16 %v141
  %v445 = vunpack.c.l.b16 %v142
  %v446 = vunpack.c.l.b16 %v143
  %v447 = vunpack.c.l.b16 %v144
  %v448 = vunpack.c.l.b16 %v145
  %v449 = vunpack.c.l.b16 %v146
  %v450 = vunpack.c.l.b16 %v147
  %v451 = vunpack.c.l.b16 %v148
  %v452 = vunpack.c.l.b16 %v149
  %v453 = vunpack.c.l.b16 %v150
  %v454 = vpack.c.b16 %v327, %v326
  %v455 = vpack.c.b16 %v329, %v328
  %v456 = vpack.c.b16 %v331, %v330
  %v457 = vpack.c.b16 %v333, %v332
  %v458 = vpack.c.b16 %v335, %v334
  %v459 = vpack.c.b16 %v337, %v336
  %v460 = vpack.c.b16 %v339, %v338
  %v461 = vpack.c.b16 %v341, %v340
  %v462 = vpack.c.b16 %v343, %v342
  %v463 = vpack.c.b16 %v345, %v344
  %v464 = vpack.c.b16 %v347, %v346
  %v465 = vpack.c.b16 %v349, %v348
  %v466 = vpack.c.b16 %v351, %v350
  %v467 = vpack.c.b16 %v353, %v352
  %v468 = vpack.c.b16 %v355, %v354
  %v469 = vpack.c.b16 %v357, %v356
  %v470 = vpack.c.b16 %v359, %v358
  %v471 = vpack.c.b16 %v361, %v360
  %v472 = vpack.c.b16 %v363, %v362
  %v473 = vpack.c.b16 %v365, %v364
  %v474 = vpack.c.b16 %v367, %v366
  %v475 = vpack.c.b16 %v369, %v368
  %v476 = vpack.c.b16 %v371, %v370
  %v477 = vpack.c.b16 %v373, %v372
  %v478 = vpack.c.b16 %v375, %v374
  %v479 = vpack.c.b16 %v377, %v376
  %v480 = vpack.c.b16 %v379, %v378
  %v481 = vpack.c.b16 %v381, %v380
  %v482 = vpack.c.b16 %v383, %v382
  %v483 = vpack.c.b16 %v385, %v384
  %v484 = vpack.c.b16 %v387, %v386
  %v485 = vpack.c.b16 %v389, %v388
  %v486 = vpack.c.b16 %v391, %v390
  %v487 = vpack.c.b16 %v393, %v392
  %v488 = vpack.c.b16 %v395, %v394
  %v489 = vpack.c.b16 %v397, %v396
  %v490 = vpack.c.b16 %v399, %v398
  %v491 = vpack.c.b16 %v401, %v400
  %v492 = vpack.c.b16 %v403, %v402
  %v493 = vpack.c.b16 %v405, %v404
  %v494 = vpack.c.b16 %v407, %v406
  %v495 = vpack.c.b16 %v409, %v408
  %v496 = vpack.c.b16 %v411, %v410
  %v497 = vpack.c.b16 %v413, %v412
  %v498 = vpack.c.b16 %v415, %v414
  %v499 = vpack.c.b16 %v417, %v416
  %v500 = vpack.c.b16 %v419, %v418
  %v501 = vpack.c.b16 %v421, %v420
  %v502 = vpack.c.b16 %v423, %v422
  %v503 = vpack.c.b16 %v425, %v424
  %v504 = vpack.c.b16 %v427, %v426
  %v505 = vpack.c.b16 %v429, %v428
  %v506 = vpack.c.b16 %v431, %v430
  %v507 = vpack.c.b16 %v433, %v432
  %v508 = vpack.c.b16 %v435, %v434
  %v509 = vpack.c.b16 %v437, %v436
  %v510 = vpack.c.b16 %v439, %v438
  %v511 = vpack.c.b16 %v441, %v440
  %v512 = vpack.c.b16 %v443, %v442
  %v513 = vpack.c.b16 %v445, %v444
  %v514 = vpack.c.b16 %v447, %v446
  %v515 = vpack.c.b16 %v449, %v448
  %v516 = vpack.c.b16 %v451, %v450
  %v517 = vpack.c.b16 %v453, %v452
  %582 = vmatprep.subr.bf16.mxu0 0
  %583 = vmatpush1.bf16.msra.mxu0 %v454
  %584 = vmatprep.subr.bf16.mxu0 0
  %585 = vmatpush1.bf16.msra.mxu0 %v455
  %586 = vmatprep.subr.bf16.mxu0 0
  %587 = vmatpush1.bf16.msra.mxu0 %v456
  %588 = vmatprep.subr.bf16.mxu0 0
  %589 = vmatpush1.bf16.msra.mxu0 %v457
  %590 = vmatprep.subr.bf16.mxu0 0
  %591 = vmatpush1.bf16.msra.mxu0 %v458
  %592 = vmatprep.subr.bf16.mxu0 0
  %593 = vmatpush1.bf16.msra.mxu0 %v459
  %594 = vmatprep.subr.bf16.mxu0 0
  %595 = vmatpush1.bf16.msra.mxu0 %v460
  %596 = vmatprep.subr.bf16.mxu0 0
  %597 = vmatpush1.bf16.msra.mxu0 %v461
  %598 = vmatprep.subr.bf16.mxu0 0
  %599 = vmatpush1.bf16.msra.mxu0 %v462
  %600 = vmatprep.subr.bf16.mxu0 0
  %601 = vmatpush1.bf16.msra.mxu0 %v463
  %602 = vmatprep.subr.bf16.mxu0 0
  %603 = vmatpush1.bf16.msra.mxu0 %v464
  %604 = vmatprep.subr.bf16.mxu0 0
  %605 = vmatpush1.bf16.msra.mxu0 %v465
  %606 = vmatprep.subr.bf16.mxu0 0
  %607 = vmatpush1.bf16.msra.mxu0 %v466
  %608 = vmatprep.subr.bf16.mxu0 0
  %609 = vmatpush1.bf16.msra.mxu0 %v467
  %610 = vmatprep.subr.bf16.mxu0 0
  %611 = vmatpush1.bf16.msra.mxu0 %v468
  %612 = vmatprep.subr.bf16.mxu0 0
  %613 = vmatpush1.bf16.msra.mxu0 %v469
  %614 = vmatprep.mubr.bf16.mxu0 %v183
  %615 = vmatmul.mubr.bf16.gmra.mrb[0].mxu0 %v182
  %v616 = vpop.f32.mrb[0].mxu0
  %v617 = vadd.f32 %v156, %v616
  %v618 = vpop.f32.mrb[0].mxu0
  %v619 = vpop.f32.mrb[0].mxu0
  %v620 = vadd.f32 %v156, %v619
  %v621 = vpop.f32.mrb[0].mxu0
  %622 = vdwg.mxu0
  %623 = vmatprep.subr.bf16.mxu0 0
  %624 = vmatpush1.bf16.msra.mxu0 %v470
  %625 = vmatprep.subr.bf16.mxu0 0
  %626 = vmatpush1.bf16.msra.mxu0 %v471
  %627 = vmatprep.subr.bf16.mxu0 0
  %628 = vmatpush1.bf16.msra.mxu0 %v472
  %629 = vmatprep.subr.bf16.mxu0 0
  %630 = vmatpush1.bf16.msra.mxu0 %v473
  %631 = vmatprep.subr.bf16.mxu0 0
  %632 = vmatpush1.bf16.msra.mxu0 %v474
  %633 = vmatprep.subr.bf16.mxu0 0
  %634 = vmatpush1.bf16.msra.mxu0 %v475
  %635 = vmatprep.subr.bf16.mxu0 0
  %636 = vmatpush1.bf16.msra.mxu0 %v476
  %637 = vmatprep.subr.bf16.mxu0 0
  %638 = vmatpush1.bf16.msra.mxu0 %v477
  %639 = vmatprep.subr.bf16.mxu0 0
  %640 = vmatpush1.bf16.msra.mxu0 %v478
  %641 = vmatprep.subr.bf16.mxu0 0
  %642 = vmatpush1.bf16.msra.mxu0 %v479
  %643 = vmatprep.subr.bf16.mxu0 0
  %644 = vmatpush1.bf16.msra.mxu0 %v480
  %645 = vmatprep.subr.bf16.mxu0 0
  %646 = vmatpush1.bf16.msra.mxu0 %v481
  %647 = vmatprep.subr.bf16.mxu0 0
  %648 = vmatpush1.bf16.msra.mxu0 %v482
  %649 = vmatprep.subr.bf16.mxu0 0
  %650 = vmatpush1.bf16.msra.mxu0 %v483
  %651 = vmatprep.subr.bf16.mxu0 0
  %652 = vmatpush1.bf16.msra.mxu0 %v484
  %653 = vmatprep.subr.bf16.mxu0 0
  %654 = vmatpush1.bf16.msra.mxu0 %v485
  %655 = vmatprep.mubr.bf16.mxu0 %v185
  %656 = vmatmul.mubr.bf16.gmra.mrb[0].mxu0 %v184
  %v657 = vpop.f32.mrb[0].mxu0
  %v658 = vadd.f32 %v617, %v657
  %v659 = vpop.f32.mrb[0].mxu0
  %v660 = vpop.f32.mrb[0].mxu0
  %v661 = vadd.f32 %v620, %v660
  %v662 = vpop.f32.mrb[0].mxu0
  %663 = vdwg.mxu0
  %664 = vmatprep.subr.bf16.mxu0 0
  %665 = vmatpush1.bf16.msra.mxu0 %v486
  %666 = vmatprep.subr.bf16.mxu0 0
  %667 = vmatpush1.bf16.msra.mxu0 %v487
  %668 = vmatprep.subr.bf16.mxu0 0
  %669 = vmatpush1.bf16.msra.mxu0 %v488
  %670 = vmatprep.subr.bf16.mxu0 0
  %671 = vmatpush1.bf16.msra.mxu0 %v489
  %672 = vmatprep.subr.bf16.mxu0 0
  %673 = vmatpush1.bf16.msra.mxu0 %v490
  %674 = vmatprep.subr.bf16.mxu0 0
  %675 = vmatpush1.bf16.msra.mxu0 %v491
  %676 = vmatprep.subr.bf16.mxu0 0
  %677 = vmatpush1.bf16.msra.mxu0 %v492
  %678 = vmatprep.subr.bf16.mxu0 0
  %679 = vmatpush1.bf16.msra.mxu0 %v493
  %680 = vmatprep.subr.bf16.mxu0 0
  %681 = vmatpush1.bf16.msra.mxu0 %v494
  %682 = vmatprep.subr.bf16.mxu0 0
  %683 = vmatpush1.bf16.msra.mxu0 %v495
  %684 = vmatprep.subr.bf16.mxu0 0
  %685 = vmatpush1.bf16.msra.mxu0 %v496
  %686 = vmatprep.subr.bf16.mxu0 0
  %687 = vmatpush1.bf16.msra.mxu0 %v497
  %688 = vmatprep.subr.bf16.mxu0 0
  %689 = vmatpush1.bf16.msra.mxu0 %v498
  %690 = vmatprep.subr.bf16.mxu0 0
  %691 = vmatpush1.bf16.msra.mxu0 %v499
  %692 = vmatprep.subr.bf16.mxu0 0
  %693 = vmatpush1.bf16.msra.mxu0 %v500
  %694 = vmatprep.subr.bf16.mxu0 0
  %695 = vmatpush1.bf16.msra.mxu0 %v501
  %696 = vmatprep.mubr.bf16.mxu0 %v187
  %697 = vmatmul.mubr.bf16.gmra.mrb[0].mxu0 %v186
  %v698 = vpop.f32.mrb[0].mxu0
  %v699 = vadd.f32 %v658, %v698
  %v700 = vpop.f32.mrb[0].mxu0
  %v701 = vpop.f32.mrb[0].mxu0
  %v702 = vadd.f32 %v661, %v701
  %v703 = vpop.f32.mrb[0].mxu0
  %704 = vdwg.mxu0
  %705 = vmatprep.subr.bf16.mxu0 0
  %706 = vmatpush1.bf16.msra.mxu0 %v502
  %707 = vmatprep.subr.bf16.mxu0 0
  %708 = vmatpush1.bf16.msra.mxu0 %v503
  %709 = vmatprep.subr.bf16.mxu0 0
  %710 = vmatpush1.bf16.msra.mxu0 %v504
  %711 = vmatprep.subr.bf16.mxu0 0
  %712 = vmatpush1.bf16.msra.mxu0 %v505
  %713 = vmatprep.subr.bf16.mxu0 0
  %714 = vmatpush1.bf16.msra.mxu0 %v506
  %715 = vmatprep.subr.bf16.mxu0 0
  %716 = vmatpush1.bf16.msra.mxu0 %v507
  %717 = vmatprep.subr.bf16.mxu0 0
  %718 = vmatpush1.bf16.msra.mxu0 %v508
  %719 = vmatprep.subr.bf16.mxu0 0
  %720 = vmatpush1.bf16.msra.mxu0 %v509
  %721 = vmatprep.subr.bf16.mxu0 0
  %722 = vmatpush1.bf16.msra.mxu0 %v510
  %723 = vmatprep.subr.bf16.mxu0 0
  %724 = vmatpush1.bf16.msra.mxu0 %v511
  %725 = vmatprep.subr.bf16.mxu0 0
  %726 = vmatpush1.bf16.msra.mxu0 %v512
  %727 = vmatprep.subr.bf16.mxu0 0
  %728 = vmatpush1.bf16.msra.mxu0 %v513
  %729 = vmatprep.subr.bf16.mxu0 0
  %730 = vmatpush1.bf16.msra.mxu0 %v514
  %731 = vmatprep.subr.bf16.mxu0 0
  %732 = vmatpush1.bf16.msra.mxu0 %v515
  %733 = vmatprep.subr.bf16.mxu0 0
  %734 = vmatpush1.bf16.msra.mxu0 %v516
  %735 = vmatprep.subr.bf16.mxu0 0
  %736 = vmatpush1.bf16.msra.mxu0 %v517
  %737 = vmatprep.mubr.bf16.mxu0 %v189
  %738 = vmatmul.mubr.bf16.gmra.mrb[0].mxu0 %v188
  %v739 = vpop.f32.mrb[0].mxu0
  %v740 = vadd.f32 %v699, %v739
  %v741 = vpop.f32.mrb[0].mxu0
  %v742 = vpop.f32.mrb[0].mxu0
  %v743 = vadd.f32 %v702, %v742
  %v744 = vpop.f32.mrb[0].mxu0
  %745 = vdwg.mxu0
  %v746 = vpack.c.bf16 %v743, %v740
  %v748 = vunpack.c.l.b16 %v746
  %v749 = vunpack.c.h.b16 %v746
  %v750 = vpack.c.b16 %v748, %v748
  %v751 = vpack.c.b16 %v749, %v749
  %754 = vst [vmem:[%s3] sm:$0xf] %v750
  %755 = vst [vmem:[%s3 + $0x4] sm:$0xf] %v751
  // Predicated region
  $region14: #{_lambda_.16} parent=0 // pred_check
    _
  $region15: #{_lambda_.16} parent=0 // pred_check_branch
    %757 = sbr.rel (0) target = $region17
  $region16: #{_lambda_.16} parent=0 // pred_region
    _
  $region17: #{_lambda_.16} parent=0 // pred_fallthru
    _
  // Predicated region
  $region18: #{_lambda_.16} parent=0 // pred_check
    _
  $region19: #{_lambda_.16} parent=0 // pred_check_branch
    %759 = sbr.rel (0) target = $region21
  $region20: #{_lambda_.16} parent=0 // pred_region
    _
  $region21: #{_lambda_.16} parent=0 // pred_fallthru
    _

// kernel: squeeze.13
$region0: #{squeeze.13}
  %s0 = inlined_call_operand.vmem [shape: f32[128], index: 0, kind: input, shape index: {}]
  %s1 = inlined_call_operand.vmem [shape: f32[4,32], index: 1, kind: output, shape index: {}]
  $region1: #{squeeze.13} parent=0
    #allocation0 [shape = 'u8[4096]{0}', space=vmem, size = 0x1000, scoped, tag = 'scoped mem for output reshape']
    #allocation1 [shape = 'u8[4096]{0}', space=vmem, size = 0x1000, scoped, tag = 'scoped mem for input reshape']
    %s3 = sshllo.u32 0, 1
    %v4 = vld [vmem:[%s0] sm:%s3]
    %5 = vst [vmem:[#allocation1] sm:%s3] %v4
    %v6 = vld [vmem:[#allocation1] sm:$0x1]
    %vm7 = vcmask 261120
    %8 = vst.msk [vmem:[#allocation0] sm:$0x1] %vm7, %v6
    %v9 = vld [vmem:[#allocation1] sm:$0x1]
    %10 = vrot.lane.b32.xlu0 %v9, 96
    %v11 = vpop.permute.xlu0 %10
    %vm12 = vcmask 261120
    %s13 = scalar_lea.vmem [#allocation0], 1
    %14 = vst.msk [vmem:[%s13] sm:$0x1] %vm12, %v11
    %v15 = vld [vmem:[#allocation1] sm:$0x1]
    %16 = vrot.lane.b32.xlu0 %v15, 64
    %v17 = vpop.permute.xlu0 %16
    %vm18 = vcmask 261120
    %s19 = scalar_lea.vmem [#allocation0], 2
    %20 = vst.msk [vmem:[%s19] sm:$0x1] %vm18, %v17
    %v21 = vld [vmem:[#allocation1] sm:$0x1]
    %22 = vrot.lane.b32.xlu0 %v21, 32
    %v23 = vpop.permute.xlu0 %22
    %vm24 = vcmask 261120
    %s25 = scalar_lea.vmem [#allocation0], 3
    %26 = vst.msk [vmem:[%s25] sm:$0x1] %vm24, %v23
    %s28 = sshllo.u32 0, 4
    %v30 = vld [vmem:[#allocation0] sm:%s28]
    %s31 = sshllo.u32 0, 4
    %32 = vst [vmem:[%s1] sm:%s31] %v30

// kernel: tile.23
$region0: #{tile.23}
  #allocation0 [shape = 's32[1]{0}', space=sflag, size = 0x4, scoped, tag = 'scoped memory for tile.23']
  %s0 = inlined_call_operand.vmem [shape: f32[32], index: 0, kind: input, shape index: {}]
  %s1 = inlined_call_operand.vmem [shape: f32[4,32], index: 1, kind: output, shape index: {}]
  // Predicated region
  $region2: #{tile.23} parent=0 // pred_check
    _
  $region3: #{tile.23} parent=0 // pred_check_branch
    %3 = sbr.rel (0) target = $region5
  $region4: #{tile.23} parent=0 // pred_region
    _
  $region5: #{tile.23} parent=0 // pred_fallthru
    _
  %v4 = vld [vmem:[%s0] ss:$0 sm:$0xff]
  %5 = vst [vmem:[%s1] sm:$0xf] %v4

// kernel: tile.28
$region0: #{tile.28}
  %s0 = inlined_call_operand.vmem [shape: f32[4,32], index: 0, kind: input, shape index: {}]
  %s1 = inlined_call_operand.vmem [shape: f32[1,128], index: 1, kind: output, shape index: {}]
  $region1: #{tile.28} parent=0
    #allocation0 [shape = 'u8[4096]{0}', space=vmem, size = 0x1000, scoped, tag = 'scoped mem for output reshape']
    #allocation1 [shape = 'u8[4096]{0}', space=vmem, size = 0x1000, scoped, tag = 'scoped mem for input reshape']
    %s3 = sshllo.u32 0, 4
    %v4 = vld [vmem:[%s0] sm:%s3]
    %5 = vst [vmem:[#allocation1] sm:%s3] %v4
    %v6 = vld [vmem:[#allocation1] sm:$0x1]
    %vm7 = vcmask 261120
    %8 = vst.msk [vmem:[#allocation0] sm:$0x1] %vm7, %v6
    %s9 = scalar_lea.vmem [#allocation1], 3
    %v10 = vld [vmem:[%s9] sm:$0x1]
    %11 = vrot.lane.b32.xlu0 %v10, 96
    %v12 = vpop.permute.xlu0 %11
    %vm13 = vcmask 1048320
    %14 = vst.msk [vmem:[#allocation0] sm:$0x1] %vm13, %v12
    %s15 = scalar_lea.vmem [#allocation1], 2
    %v16 = vld [vmem:[%s15] sm:$0x1]
    %17 = vrot.lane.b32.xlu0 %v16, 64
    %v18 = vpop.permute.xlu0 %17
    %vm19 = vcmask 785920
    %20 = vst.msk [vmem:[#allocation0] sm:$0x1] %vm19, %v18
    %s21 = scalar_lea.vmem [#allocation1], 1
    %v22 = vld [vmem:[%s21] sm:$0x1]
    %23 = vrot.lane.b32.xlu0 %v22, 32
    %v24 = vpop.permute.xlu0 %23
    %vm25 = vcmask 523520
    %26 = vst.msk [vmem:[#allocation0] sm:$0x1] %vm25, %v24
    %s28 = sshllo.u32 0, 1
    %v30 = vld [vmem:[#allocation0] sm:%s28]
    %s31 = sshllo.u32 0, 1
    %32 = vst [vmem:[%s1] sm:%s31] %v30

// kernel: _lambda_.18
$region0: #{_lambda_.18}
  #allocation0 [shape = 'u32[]', space=smem, size = 0x4, offset = 0x4, fixed_abs, tag = 'smem constant byte address 0x4 - core index']
  #allocation1 [shape = 'u32[144,128]{1,0:T(1,128)}', space=vmem, size = 0x12000, scoped, tag = 'internal scratch']
  %s0 = inlined_call_operand.vmem [shape: bf16[32,256], index: 0, kind: input, shape index: {}]
  %s1 = inlined_call_operand.vmem [shape: bf16[256,128], index: 1, kind: input, shape index: {}]
  %s2 = inlined_call_operand.vmem [shape: f32[1,128], index: 2, kind: input, shape index: {}]
  %s3 = inlined_call_operand.vmem [shape: f32[32,128], index: 3, kind: output, shape index: {0}]
  %s4 = inlined_call_operand.vmem [shape: f32[1,128], index: 4, kind: output, shape index: {1}]
  %s5 = inlined_call_operand.vmem [shape: f32[1,128], index: 5, kind: output, shape index: {2}]
  %6 = xla_tuple %s3, %s4, %s5
  %s7 = sld [smem:[#allocation0]]
  $region42: #{_lambda_.18} parent=0
    _
  %s9 = ssub.s32 1, %s7
  %s10 = scalar_select 0, %s9, %s7
  // Predicated region
  $region2: #{_lambda_.18} parent=0 // pred_check
    _
  $region3: #{_lambda_.18} parent=0 // pred_check_branch
    %12 = sbr.rel (0) target = $region5
  $region4: #{_lambda_.18} parent=0 // pred_region
    _
  $region5: #{_lambda_.18} parent=0 // pred_fallthru
    _
  // Predicated region
  $region6: #{_lambda_.18} parent=0 // pred_check
    _
  $region7: #{_lambda_.18} parent=0 // pred_check_branch
    %14 = sbr.rel (0) target = $region9
  $region8: #{_lambda_.18} parent=0 // pred_region
    _
  $region9: #{_lambda_.18} parent=0 // pred_fallthru
    _
  // Predicated region
  $region10: #{_lambda_.18} parent=0 // pred_check
    _
  $region11: #{_lambda_.18} parent=0 // pred_check_branch
    %16 = sbr.rel (0) target = $region13
  $region12: #{_lambda_.18} parent=0 // pred_region
    _
  $region13: #{_lambda_.18} parent=0 // pred_fallthru
    _
  %v18 = vld [vmem:[%s0] sm:$0xff]
  %v19 = vld [vmem:[%s0 + $0x8] sm:$0xff]
  %v20 = vld [vmem:[%s0 + $0x10] sm:$0xff]
  %v21 = vld [vmem:[%s0 + $0x18] sm:$0xff]
  %v22 = vld [vmem:[%s1] sm:$0xf]
  %v23 = vld [vmem:[%s1 + $0x4] sm:$0xf]
  %v24 = vld [vmem:[%s1 + $0x8] sm:$0xf]
  %v25 = vld [vmem:[%s1 + $0xc] sm:$0xf]
  %v26 = vld [vmem:[%s1 + $0x10] sm:$0xf]
  %v27 = vld [vmem:[%s1 + $0x14] sm:$0xf]
  %v28 = vld [vmem:[%s1 + $0x18] sm:$0xf]
  %v29 = vld [vmem:[%s1 + $0x1c] sm:$0xf]
  %v30 = vld [vmem:[%s1 + $0x20] sm:$0xf]
  %v31 = vld [vmem:[%s1 + $0x24] sm:$0xf]
  %v32 = vld [vmem:[%s1 + $0x28] sm:$0xf]
  %v33 = vld [vmem:[%s1 + $0x2c] sm:$0xf]
  %v34 = vld [vmem:[%s1 + $0x30] sm:$0xf]
  %v35 = vld [vmem:[%s1 + $0x34] sm:$0xf]
  %v36 = vld [vmem:[%s1 + $0x38] sm:$0xf]
  %v37 = vld [vmem:[%s1 + $0x3c] sm:$0xf]
  %v38 = vld [vmem:[%s1 + $0x40] sm:$0xf]
  %v39 = vld [vmem:[%s1 + $0x44] sm:$0xf]
  %v40 = vld [vmem:[%s1 + $0x48] sm:$0xf]
  %v41 = vld [vmem:[%s1 + $0x4c] sm:$0xf]
  %v42 = vld [vmem:[%s1 + $0x50] sm:$0xf]
  %v43 = vld [vmem:[%s1 + $0x54] sm:$0xf]
  %v44 = vld [vmem:[%s1 + $0x58] sm:$0xf]
  %v45 = vld [vmem:[%s1 + $0x5c] sm:$0xf]
  %v46 = vld [vmem:[%s1 + $0x60] sm:$0xf]
  %v47 = vld [vmem:[%s1 + $0x64] sm:$0xf]
  %v48 = vld [vmem:[%s1 + $0x68] sm:$0xf]
  %v49 = vld [vmem:[%s1 + $0x6c] sm:$0xf]
  %v50 = vld [vmem:[%s1 + $0x70] sm:$0xf]
  %v51 = vld [vmem:[%s1 + $0x74] sm:$0xf]
  %v52 = vld [vmem:[%s1 + $0x78] sm:$0xf]
  %v53 = vld [vmem:[%s1 + $0x7c] sm:$0xf]
  %v54 = vld [vmem:[%s2] sm:$0x1]
  %v56 = vlaneseq
  %v57 = vshrl.u32 %v56, 7
  %v58 = vsub.s32 0, %v57
  %v59 = vrot.slane %v54, %v58
  %v65 = vunpack.c.l.b16 %v18
  %v66 = vunpack.c.h.b16 %v18
  %v67 = vunpack.c.l.b16 %v19
  %v68 = vunpack.c.h.b16 %v19
  %v69 = vunpack.c.l.b16 %v20
  %v70 = vunpack.c.h.b16 %v20
  %v71 = vunpack.c.l.b16 %v21
  %v72 = vunpack.c.h.b16 %v21
  %v73 = vpack.c.b16 %v67, %v65
  %v74 = vpack.c.b16 %v68, %v66
  %v75 = vpack.c.b16 %v71, %v69
  %v76 = vpack.c.b16 %v72, %v70
  %v113 = vunpack.c.l.b16 %v22
  %v114 = vunpack.c.l.b16 %v23
  %v115 = vunpack.c.l.b16 %v24
  %v116 = vunpack.c.l.b16 %v25
  %v117 = vunpack.c.l.b16 %v26
  %v118 = vunpack.c.l.b16 %v27
  %v119 = vunpack.c.l.b16 %v28
  %v120 = vunpack.c.l.b16 %v29
  %v121 = vunpack.c.l.b16 %v30
  %v122 = vunpack.c.l.b16 %v31
  %v123 = vunpack.c.l.b16 %v32
  %v124 = vunpack.c.l.b16 %v33
  %v125 = vunpack.c.l.b16 %v34
  %v126 = vunpack.c.l.b16 %v35
  %v127 = vunpack.c.l.b16 %v36
  %v128 = vunpack.c.l.b16 %v37
  %v129 = vunpack.c.l.b16 %v38
  %v130 = vunpack.c.l.b16 %v39
  %v131 = vunpack.c.l.b16 %v40
  %v132 = vunpack.c.l.b16 %v41
  %v133 = vunpack.c.l.b16 %v42
  %v134 = vunpack.c.l.b16 %v43
  %v135 = vunpack.c.l.b16 %v44
  %v136 = vunpack.c.l.b16 %v45
  %v137 = vunpack.c.l.b16 %v46
  %v138 = vunpack.c.l.b16 %v47
  %v139 = vunpack.c.l.b16 %v48
  %v140 = vunpack.c.l.b16 %v49
  %v141 = vunpack.c.l.b16 %v50
  %v142 = vunpack.c.l.b16 %v51
  %v143 = vunpack.c.l.b16 %v52
  %v144 = vunpack.c.l.b16 %v53
  %v145 = vpack.c.b16 %v114, %v113
  %v146 = vpack.c.b16 %v116, %v115
  %v147 = vpack.c.b16 %v118, %v117
  %v148 = vpack.c.b16 %v120, %v119
  %v149 = vpack.c.b16 %v122, %v121
  %v150 = vpack.c.b16 %v124, %v123
  %v151 = vpack.c.b16 %v126, %v125
  %v152 = vpack.c.b16 %v128, %v127
  %v153 = vpack.c.b16 %v130, %v129
  %v154 = vpack.c.b16 %v132, %v131
  %v155 = vpack.c.b16 %v134, %v133
  %v156 = vpack.c.b16 %v136, %v135
  %v157 = vpack.c.b16 %v138, %v137
  %v158 = vpack.c.b16 %v140, %v139
  %v159 = vpack.c.b16 %v142, %v141
  %v160 = vpack.c.b16 %v144, %v143
  %177 = vmatprep.subr.bf16.mxu0 0
  %178 = vmatpush1.bf16.msra.mxu0 %v145
  %179 = vmatprep.subr.bf16.mxu0 0
  %180 = vmatpush1.bf16.msra.mxu0 %v146
  %181 = vmatprep.subr.bf16.mxu0 0
  %182 = vmatpush1.bf16.msra.mxu0 %v147
  %183 = vmatprep.subr.bf16.mxu0 0
  %184 = vmatpush1.bf16.msra.mxu0 %v148
  %185 = vmatprep.subr.bf16.mxu0 0
  %186 = vmatpush1.bf16.msra.mxu0 %v149
  %187 = vmatprep.subr.bf16.mxu0 0
  %188 = vmatpush1.bf16.msra.mxu0 %v150
  %189 = vmatprep.subr.bf16.mxu0 0
  %190 = vmatpush1.bf16.msra.mxu0 %v151
  %191 = vmatprep.subr.bf16.mxu0 0
  %192 = vmatpush1.bf16.msra.mxu0 %v152
  %193 = vmatprep.subr.bf16.mxu0 0
  %194 = vmatpush1.bf16.msra.mxu0 %v153
  %195 = vmatprep.subr.bf16.mxu0 0
  %196 = vmatpush1.bf16.msra.mxu0 %v154
  %197 = vmatprep.subr.bf16.mxu0 0
  %198 = vmatpush1.bf16.msra.mxu0 %v155
  %199 = vmatprep.subr.bf16.mxu0 0
  %200 = vmatpush1.bf16.msra.mxu0 %v156
  %201 = vmatprep.subr.bf16.mxu0 0
  %202 = vmatpush1.bf16.msra.mxu0 %v157
  %203 = vmatprep.subr.bf16.mxu0 0
  %204 = vmatpush1.bf16.msra.mxu0 %v158
  %205 = vmatprep.subr.bf16.mxu0 0
  %206 = vmatpush1.bf16.msra.mxu0 %v159
  %207 = vmatprep.subr.bf16.mxu0 0
  %208 = vmatpush1.bf16.msra.mxu0 %v160
  %209 = vmatprep.mubr.bf16.mxu0 %v74
  %210 = vmatmul.mubr.bf16.gmra.mrb[0].mxu0 %v73
  %v211 = vpop.f32.mrb[0].mxu0
  %v212 = vadd.f32 %v59, %v211
  %v213 = vpop.f32.mrb[0].mxu0
  %v214 = vpop.f32.mrb[0].mxu0
  %v215 = vadd.f32 %v59, %v214
  %v216 = vpop.f32.mrb[0].mxu0
  %217 = vmatprep.mubr.bf16.mxu0 %v76
  %218 = vmatmul.mubr.bf16.gmra.mrb[0].mxu0 %v75
  %v219 = vpop.f32.mrb[0].mxu0
  %v220 = vadd.f32 %v59, %v219
  %v221 = vpop.f32.mrb[0].mxu0
  %v222 = vpop.f32.mrb[0].mxu0
  %v223 = vadd.f32 %v59, %v222
  %v224 = vpop.f32.mrb[0].mxu0
  %225 = vdwg.mxu0
  %226 = vst [vmem:[%s3] sm:$0xff] %v212
  %227 = vst [vmem:[%s3 + $0x8] sm:$0xff] %v215
  %228 = vst [vmem:[%s3 + $0x10] sm:$0xff] %v220
  %229 = vst [vmem:[%s3 + $0x18] sm:$0xff] %v223
  %p230 = scmp.eq.s32.totalorder 0, 0
  // Predicated region
  $region14: #{_lambda_.18} parent=0 // pred_check
    %p231 = pneg %p230
  $region15: #{_lambda_.18} parent=0 // pred_check_branch
    %233 = sbr.rel (%p231) target = $region17
  $region16: #{_lambda_.18} parent=0 // pred_region
    %234 = vst [vmem:[%s4] sm:$0x1] 0.0
    %235 = vst [vmem:[%s5] sm:$0x1] 0.0
  $region17: #{_lambda_.18} parent=0 // pred_fallthru
    _
  %v236 = vld [vmem:[%s4] sm:$0x1]
  %v237 = vadd.f32 %v212, %v215
  %v238 = vadd.f32 %v237, %v220
  %v239 = vadd.f32 %v238, %v223
  %v240 = vrot.slane %v239, 4
  %v241 = vadd.f32 %v239, %v240
  %v242 = vrot.slane %v241, 2
  %v243 = vadd.f32 %v241, %v242
  %v244 = vrot.slane %v243, 1
  %v245 = vadd.f32 %v243, %v244
  %v246 = vadd.f32 %v236, %v245
  %247 = vst [vmem:[%s4] sm:$0x1] %v246
  %v248 = vld [vmem:[%s5] sm:$0x1]
  %v249 = vmul.f32 %v212, %v212
  %v250 = vmul.f32 %v215, %v215
  %v251 = vmul.f32 %v220, %v220
  %v252 = vmul.f32 %v223, %v223
  %v253 = vadd.f32 %v249, %v250
  %v254 = vadd.f32 %v253, %v251
  %v255 = vadd.f32 %v254, %v252
  %v256 = vrot.slane %v255, 4
  %v257 = vadd.f32 %v255, %v256
  %v258 = vrot.slane %v257, 2
  %v259 = vadd.f32 %v257, %v258
  %v260 = vrot.slane %v259, 1
  %v261 = vadd.f32 %v259, %v260
  %v262 = vadd.f32 %v248, %v261
  %263 = vst [vmem:[%s5] sm:$0x1] %v262
  // Predicated region
  $region18: #{_lambda_.18} parent=0 // pred_check
    _
  $region19: #{_lambda_.18} parent=0 // pred_check_branch
    %265 = sbr.rel (0) target = $region21
  $region20: #{_lambda_.18} parent=0 // pred_region
    _
  $region21: #{_lambda_.18} parent=0 // pred_fallthru
    _
  // Predicated region
  $region22: #{_lambda_.18} parent=0 // pred_check
    _
  $region23: #{_lambda_.18} parent=0 // pred_check_branch
    %267 = sbr.rel (0) target = $region25
  $region24: #{_lambda_.18} parent=0 // pred_region
    _
  $region25: #{_lambda_.18} parent=0 // pred_fallthru
    _
  // Predicated region
  $region26: #{_lambda_.18} parent=0 // pred_check
    _
  $region27: #{_lambda_.18} parent=0 // pred_check_branch
    %269 = sbr.rel (0) target = $region29
  $region28: #{_lambda_.18} parent=0 // pred_region
    _
  $region29: #{_lambda_.18} parent=0 // pred_fallthru
    _
  // Predicated region
  $region30: #{_lambda_.18} parent=0 // pred_check
    _
  $region31: #{_lambda_.18} parent=0 // pred_check_branch
    %271 = sbr.rel (0) target = $region33
  $region32: #{_lambda_.18} parent=0 // pred_region
    _
  $region33: #{_lambda_.18} parent=0 // pred_fallthru
    _
  // Predicated region
  $region34: #{_lambda_.18} parent=0 // pred_check
    _
  $region35: #{_lambda_.18} parent=0 // pred_check_branch
    %273 = sbr.rel (0) target = $region37
  $region36: #{_lambda_.18} parent=0 // pred_region
    _
  $region37: #{_lambda_.18} parent=0 // pred_fallthru
    _
  // Predicated region
  $region38: #{_lambda_.18} parent=0 // pred_check
    _
  $region39: #{_lambda_.18} parent=0 // pred_check_branch
    %275 = sbr.rel (0) target = $region41
  $region40: #{_lambda_.18} parent=0 // pred_region
    _
  $region41: #{_lambda_.18} parent=0 // pred_fallthru
    _

// kernel: _lambda_.20
$region0: #{_lambda_.20}
  #allocation0 [shape = 'u32[]', space=smem, size = 0x4, offset = 0x4, fixed_abs, tag = 'smem constant byte address 0x4 - core index']
  #allocation1 [shape = 'u32[144,128]{1,0:T(1,128)}', space=vmem, size = 0x12000, scoped, tag = 'internal scratch']
  %s0 = inlined_call_operand.vmem [shape: bf16[128,128], index: 0, kind: input, shape index: {}]
  %s1 = inlined_call_operand.vmem [shape: bf16[128,128], index: 1, kind: input, shape index: {}]
  %s2 = inlined_call_operand.vmem [shape: f32[1,128], index: 2, kind: input, shape index: {}]
  %s3 = inlined_call_operand.vmem [shape: f32[128,128], index: 3, kind: output, shape index: {0}]
  %s4 = inlined_call_operand.vmem [shape: f32[1,128], index: 4, kind: output, shape index: {1}]
  %s5 = inlined_call_operand.vmem [shape: f32[1,128], index: 5, kind: output, shape index: {2}]
  %6 = xla_tuple %s3, %s4, %s5
  %s7 = sld [smem:[#allocation0]]
  $region42: #{_lambda_.20} parent=0
    _
  %s9 = ssub.s32 1, %s7
  %s10 = scalar_select 0, %s9, %s7
  // Predicated region
  $region2: #{_lambda_.20} parent=0 // pred_check
    _
  $region3: #{_lambda_.20} parent=0 // pred_check_branch
    %12 = sbr.rel (0) target = $region5
  $region4: #{_lambda_.20} parent=0 // pred_region
    _
  $region5: #{_lambda_.20} parent=0 // pred_fallthru
    _
  // Predicated region
  $region6: #{_lambda_.20} parent=0 // pred_check
    _
  $region7: #{_lambda_.20} parent=0 // pred_check_branch
    %14 = sbr.rel (0) target = $region9
  $region8: #{_lambda_.20} parent=0 // pred_region
    _
  $region9: #{_lambda_.20} parent=0 // pred_fallthru
    _
  // Predicated region
  $region10: #{_lambda_.20} parent=0 // pred_check
    _
  $region11: #{_lambda_.20} parent=0 // pred_check_branch
    %16 = sbr.rel (0) target = $region13
  $region12: #{_lambda_.20} parent=0 // pred_region
    _
  $region13: #{_lambda_.20} parent=0 // pred_fallthru
    _
  %v18 = vld [vmem:[%s0] sm:$0xf]
  %v19 = vld [vmem:[%s0 + $0x4] sm:$0xf]
  %v20 = vld [vmem:[%s0 + $0x8] sm:$0xf]
  %v21 = vld [vmem:[%s0 + $0xc] sm:$0xf]
  %v22 = vld [vmem:[%s0 + $0x10] sm:$0xf]
  %v23 = vld [vmem:[%s0 + $0x14] sm:$0xf]
  %v24 = vld [vmem:[%s0 + $0x18] sm:$0xf]
  %v25 = vld [vmem:[%s0 + $0x1c] sm:$0xf]
  %v26 = vld [vmem:[%s0 + $0x20] sm:$0xf]
  %v27 = vld [vmem:[%s0 + $0x24] sm:$0xf]
  %v28 = vld [vmem:[%s0 + $0x28] sm:$0xf]
  %v29 = vld [vmem:[%s0 + $0x2c] sm:$0xf]
  %v30 = vld [vmem:[%s0 + $0x30] sm:$0xf]
  %v31 = vld [vmem:[%s0 + $0x34] sm:$0xf]
  %v32 = vld [vmem:[%s0 + $0x38] sm:$0xf]
  %v33 = vld [vmem:[%s0 + $0x3c] sm:$0xf]
  %v34 = vld [vmem:[%s1] sm:$0xf]
  %v35 = vld [vmem:[%s1 + $0x4] sm:$0xf]
  %v36 = vld [vmem:[%s1 + $0x8] sm:$0xf]
  %v37 = vld [vmem:[%s1 + $0xc] sm:$0xf]
  %v38 = vld [vmem:[%s1 + $0x10] sm:$0xf]
  %v39 = vld [vmem:[%s1 + $0x14] sm:$0xf]
  %v40 = vld [vmem:[%s1 + $0x18] sm:$0xf]
  %v41 = vld [vmem:[%s1 + $0x1c] sm:$0xf]
  %v42 = vld [vmem:[%s1 + $0x20] sm:$0xf]
  %v43 = vld [vmem:[%s1 + $0x24] sm:$0xf]
  %v44 = vld [vmem:[%s1 + $0x28] sm:$0xf]
  %v45 = vld [vmem:[%s1 + $0x2c] sm:$0xf]
  %v46 = vld [vmem:[%s1 + $0x30] sm:$0xf]
  %v47 = vld [vmem:[%s1 + $0x34] sm:$0xf]
  %v48 = vld [vmem:[%s1 + $0x38] sm:$0xf]
  %v49 = vld [vmem:[%s1 + $0x3c] sm:$0xf]
  %v50 = vld [vmem:[%s2] sm:$0x1]
  %v52 = vlaneseq
  %v53 = vshrl.u32 %v52, 7
  %v54 = vsub.s32 0, %v53
  %v55 = vrot.slane %v50, %v54
  %v73 = vunpack.c.l.b16 %v18
  %v74 = vunpack.c.l.b16 %v19
  %v75 = vunpack.c.l.b16 %v20
  %v76 = vunpack.c.l.b16 %v21
  %v77 = vunpack.c.l.b16 %v22
  %v78 = vunpack.c.l.b16 %v23
  %v79 = vunpack.c.l.b16 %v24
  %v80 = vunpack.c.l.b16 %v25
  %v81 = vunpack.c.l.b16 %v26
  %v82 = vunpack.c.l.b16 %v27
  %v83 = vunpack.c.l.b16 %v28
  %v84 = vunpack.c.l.b16 %v29
  %v85 = vunpack.c.l.b16 %v30
  %v86 = vunpack.c.l.b16 %v31
  %v87 = vunpack.c.l.b16 %v32
  %v88 = vunpack.c.l.b16 %v33
  %v89 = vpack.c.b16 %v74, %v73
  %v90 = vpack.c.b16 %v76, %v75
  %v91 = vpack.c.b16 %v78, %v77
  %v92 = vpack.c.b16 %v80, %v79
  %v93 = vpack.c.b16 %v82, %v81
  %v94 = vpack.c.b16 %v84, %v83
  %v95 = vpack.c.b16 %v86, %v85
  %v96 = vpack.c.b16 %v88, %v87
  %v121 = vunpack.c.l.b16 %v34
  %v122 = vunpack.c.l.b16 %v35
  %v123 = vunpack.c.l.b16 %v36
  %v124 = vunpack.c.l.b16 %v37
  %v125 = vunpack.c.l.b16 %v38
  %v126 = vunpack.c.l.b16 %v39
  %v127 = vunpack.c.l.b16 %v40
  %v128 = vunpack.c.l.b16 %v41
  %v129 = vunpack.c.l.b16 %v42
  %v130 = vunpack.c.l.b16 %v43
  %v131 = vunpack.c.l.b16 %v44
  %v132 = vunpack.c.l.b16 %v45
  %v133 = vunpack.c.l.b16 %v46
  %v134 = vunpack.c.l.b16 %v47
  %v135 = vunpack.c.l.b16 %v48
  %v136 = vunpack.c.l.b16 %v49
  %v137 = vpack.c.b16 %v122, %v121
  %v138 = vpack.c.b16 %v124, %v123
  %v139 = vpack.c.b16 %v126, %v125
  %v140 = vpack.c.b16 %v128, %v127
  %v141 = vpack.c.b16 %v130, %v129
  %v142 = vpack.c.b16 %v132, %v131
  %v143 = vpack.c.b16 %v134, %v133
  %v144 = vpack.c.b16 %v136, %v135
  %153 = vmatprep.subr.bf16.mxu0 0
  %154 = vmatpush1.bf16.msra.mxu0 %v137
  %155 = vmatprep.subr.bf16.mxu0 0
  %156 = vmatpush1.bf16.msra.mxu0 %v138
  %157 = vmatprep.subr.bf16.mxu0 0
  %158 = vmatpush1.bf16.msra.mxu0 %v139
  %159 = vmatprep.subr.bf16.mxu0 0
  %160 = vmatpush1.bf16.msra.mxu0 %v140
  %161 = vmatprep.subr.bf16.mxu0 0
  %162 = vmatpush1.bf16.msra.mxu0 %v141
  %163 = vmatprep.subr.bf16.mxu0 0
  %164 = vmatpush1.bf16.msra.mxu0 %v142
  %165 = vmatprep.subr.bf16.mxu0 0
  %166 = vmatpush1.bf16.msra.mxu0 %v143
  %167 = vmatprep.subr.bf16.mxu0 0
  %168 = vmatpush1.bf16.msra.mxu0 %v144
  %169 = vmatprep.subr.bf16.mxu0 0
  %170 = vmatpush1.bf16.msra.mxu0 0
  %171 = vmatprep.subr.bf16.mxu0 0
  %172 = vmatpush1.bf16.msra.mxu0 0
  %173 = vmatprep.subr.bf16.mxu0 0
  %174 = vmatpush1.bf16.msra.mxu0 0
  %175 = vmatprep.subr.bf16.mxu0 0
  %176 = vmatpush1.bf16.msra.mxu0 0
  %177 = vmatprep.subr.bf16.mxu0 0
  %178 = vmatpush1.bf16.msra.mxu0 0
  %179 = vmatprep.subr.bf16.mxu0 0
  %180 = vmatpush1.bf16.msra.mxu0 0
  %181 = vmatprep.subr.bf16.mxu0 0
  %182 = vmatpush1.bf16.msra.mxu0 0
  %183 = vmatprep.subr.bf16.mxu0 0
  %184 = vmatpush1.bf16.msra.mxu0 0
  %185 = vmatprep.mubr.bf16.mxu0 0
  %186 = vmatmul.mubr.bf16.gmra.mrb[0].mxu0 %v89
  %v187 = vpop.f32.mrb[0].mxu0
  %v188 = vadd.f32 %v55, %v187
  %v189 = vpop.f32.mrb[0].mxu0
  %v190 = vpop.f32.mrb[0].mxu0
  %v191 = vadd.f32 %v55, %v190
  %v192 = vpop.f32.mrb[0].mxu0
  %193 = vmatprep.mubr.bf16.mxu0 0
  %194 = vmatmul.mubr.bf16.gmra.mrb[0].mxu0 %v90
  %v195 = vpop.f32.mrb[0].mxu0
  %v196 = vadd.f32 %v55, %v195
  %v197 = vpop.f32.mrb[0].mxu0
  %v198 = vpop.f32.mrb[0].mxu0
  %v199 = vadd.f32 %v55, %v198
  %v200 = vpop.f32.mrb[0].mxu0
  %201 = vmatprep.mubr.bf16.mxu0 0
  %202 = vmatmul.mubr.bf16.gmra.mrb[0].mxu0 %v91
  %v203 = vpop.f32.mrb[0].mxu0
  %v204 = vadd.f32 %v55, %v203
  %v205 = vpop.f32.mrb[0].mxu0
  %v206 = vpop.f32.mrb[0].mxu0
  %v207 = vadd.f32 %v55, %v206
  %v208 = vpop.f32.mrb[0].mxu0
  %209 = vmatprep.mubr.bf16.mxu0 0
  %210 = vmatmul.mubr.bf16.gmra.mrb[0].mxu0 %v92
  %v211 = vpop.f32.mrb[0].mxu0
  %v212 = vadd.f32 %v55, %v211
  %v213 = vpop.f32.mrb[0].mxu0
  %v214 = vpop.f32.mrb[0].mxu0
  %v215 = vadd.f32 %v55, %v214
  %v216 = vpop.f32.mrb[0].mxu0
  %217 = vmatprep.mubr.bf16.mxu0 0
  %218 = vmatmul.mubr.bf16.gmra.mrb[0].mxu0 %v93
  %v219 = vpop.f32.mrb[0].mxu0
  %v220 = vadd.f32 %v55, %v219
  %v221 = vpop.f32.mrb[0].mxu0
  %v222 = vpop.f32.mrb[0].mxu0
  %v223 = vadd.f32 %v55, %v222
  %v224 = vpop.f32.mrb[0].mxu0
  %225 = vmatprep.mubr.bf16.mxu0 0
  %226 = vmatmul.mubr.bf16.gmra.mrb[0].mxu0 %v94
  %v227 = vpop.f32.mrb[0].mxu0
  %v228 = vadd.f32 %v55, %v227
  %v229 = vpop.f32.mrb[0].mxu0
  %v230 = vpop.f32.mrb[0].mxu0
  %v231 = vadd.f32 %v55, %v230
  %v232 = vpop.f32.mrb[0].mxu0
  %233 = vmatprep.mubr.bf16.mxu0 0
  %234 = vmatmul.mubr.bf16.gmra.mrb[0].mxu0 %v95
  %v235 = vpop.f32.mrb[0].mxu0
  %v236 = vadd.f32 %v55, %v235
  %v237 = vpop.f32.mrb[0].mxu0
  %v238 = vpop.f32.mrb[0].mxu0
  %v239 = vadd.f32 %v55, %v238
  %v240 = vpop.f32.mrb[0].mxu0
  %241 = vmatprep.mubr.bf16.mxu0 0
  %242 = vmatmul.mubr.bf16.gmra.mrb[0].mxu0 %v96
  %v243 = vpop.f32.mrb[0].mxu0
  %v244 = vadd.f32 %v55, %v243
  %v245 = vpop.f32.mrb[0].mxu0
  %v246 = vpop.f32.mrb[0].mxu0
  %v247 = vadd.f32 %v55, %v246
  %v248 = vpop.f32.mrb[0].mxu0
  %249 = vdwg.mxu0
  %250 = vst [vmem:[%s3] sm:$0xff] %v188
  %251 = vst [vmem:[%s3 + $0x8] sm:$0xff] %v191
  %252 = vst [vmem:[%s3 + $0x10] sm:$0xff] %v196
  %253 = vst [vmem:[%s3 + $0x18] sm:$0xff] %v199
  %254 = vst [vmem:[%s3 + $0x20] sm:$0xff] %v204
  %255 = vst [vmem:[%s3 + $0x28] sm:$0xff] %v207
  %256 = vst [vmem:[%s3 + $0x30] sm:$0xff] %v212
  %257 = vst [vmem:[%s3 + $0x38] sm:$0xff] %v215
  %258 = vst [vmem:[%s3 + $0x40] sm:$0xff] %v220
  %259 = vst [vmem:[%s3 + $0x48] sm:$0xff] %v223
  %260 = vst [vmem:[%s3 + $0x50] sm:$0xff] %v228
  %261 = vst [vmem:[%s3 + $0x58] sm:$0xff] %v231
  %262 = vst [vmem:[%s3 + $0x60] sm:$0xff] %v236
  %263 = vst [vmem:[%s3 + $0x68] sm:$0xff] %v239
  %264 = vst [vmem:[%s3 + $0x70] sm:$0xff] %v244
  %265 = vst [vmem:[%s3 + $0x78] sm:$0xff] %v247
  %p266 = scmp.eq.s32.totalorder 0, 0
  // Predicated region
  $region14: #{_lambda_.20} parent=0 // pred_check
    %p267 = pneg %p266
  $region15: #{_lambda_.20} parent=0 // pred_check_branch
    %269 = sbr.rel (%p267) target = $region17
  $region16: #{_lambda_.20} parent=0 // pred_region
    %270 = vst [vmem:[%s4] sm:$0x1] 0.0
    %271 = vst [vmem:[%s5] sm:$0x1] 0.0
  $region17: #{_lambda_.20} parent=0 // pred_fallthru
    _
  %v272 = vld [vmem:[%s4] sm:$0x1]
  %v273 = vadd.f32 %v188, %v191
  %v274 = vadd.f32 %v273, %v196
  %v275 = vadd.f32 %v274, %v199
  %v276 = vadd.f32 %v275, %v204
  %v277 = vadd.f32 %v276, %v207
  %v278 = vadd.f32 %v277, %v212
  %v279 = vadd.f32 %v278, %v215
  %v280 = vadd.f32 %v279, %v220
  %v281 = vadd.f32 %v280, %v223
  %v282 = vadd.f32 %v281, %v228
  %v283 = vadd.f32 %v282, %v231
  %v284 = vadd.f32 %v283, %v236
  %v285 = vadd.f32 %v284, %v239
  %v286 = vadd.f32 %v285, %v244
  %v287 = vadd.f32 %v286, %v247
  %v288 = vrot.slane %v287, 4
  %v289 = vadd.f32 %v287, %v288
  %v290 = vrot.slane %v289, 2
  %v291 = vadd.f32 %v289, %v290
  %v292 = vrot.slane %v291, 1
  %v293 = vadd.f32 %v291, %v292
  %v294 = vadd.f32 %v272, %v293
  %295 = vst [vmem:[%s4] sm:$0x1] %v294
  %v296 = vld [vmem:[%s5] sm:$0x1]
  %v297 = vmul.f32 %v188, %v188
  %v298 = vmul.f32 %v191, %v191
  %v299 = vmul.f32 %v196, %v196
  %v300 = vmul.f32 %v199, %v199
  %v301 = vmul.f32 %v204, %v204
  %v302 = vmul.f32 %v207, %v207
  %v303 = vmul.f32 %v212, %v212
  %v304 = vmul.f32 %v215, %v215
  %v305 = vmul.f32 %v220, %v220
  %v306 = vmul.f32 %v223, %v223
  %v307 = vmul.f32 %v228, %v228
  %v308 = vmul.f32 %v231, %v231
  %v309 = vmul.f32 %v236, %v236
  %v310 = vmul.f32 %v239, %v239
  %v311 = vmul.f32 %v244, %v244
  %v312 = vmul.f32 %v247, %v247
  %v313 = vadd.f32 %v297, %v298
  %v314 = vadd.f32 %v313, %v299
  %v315 = vadd.f32 %v314, %v300
  %v316 = vadd.f32 %v315, %v301
  %v317 = vadd.f32 %v316, %v302
  %v318 = vadd.f32 %v317, %v303
  %v319 = vadd.f32 %v318, %v304
  %v320 = vadd.f32 %v319, %v305
  %v321 = vadd.f32 %v320, %v306
  %v322 = vadd.f32 %v321, %v307
  %v323 = vadd.f32 %v322, %v308
  %v324 = vadd.f32 %v323, %v309
  %v325 = vadd.f32 %v324, %v310
  %v326 = vadd.f32 %v325, %v311
  %v327 = vadd.f32 %v326, %v312
  %v328 = vrot.slane %v327, 4
  %v329 = vadd.f32 %v327, %v328
  %v330 = vrot.slane %v329, 2
  %v331 = vadd.f32 %v329, %v330
  %v332 = vrot.slane %v331, 1
  %v333 = vadd.f32 %v331, %v332
  %v334 = vadd.f32 %v296, %v333
  %335 = vst [vmem:[%s5] sm:$0x1] %v334
  // Predicated region
  $region18: #{_lambda_.20} parent=0 // pred_check
    _
  $region19: #{_lambda_.20} parent=0 // pred_check_branch
    %337 = sbr.rel (0) target = $region21
  $region20: #{_lambda_.20} parent=0 // pred_region
    _
  $region21: #{_lambda_.20} parent=0 // pred_fallthru
    _
  // Predicated region
  $region22: #{_lambda_.20} parent=0 // pred_check
    _
  $region23: #{_lambda_.20} parent=0 // pred_check_branch
    %339 = sbr.rel (0) target = $region25
  $region24: #{_lambda_.20} parent=0 // pred_region
    _
  $region25: #{_lambda_.20} parent=0 // pred_fallthru
    _
  // Predicated region
  $region26: #{_lambda_.20} parent=0 // pred_check
    _
  $region27: #{_lambda_.20} parent=0 // pred_check_branch
    %341 = sbr.rel (0) target = $region29
  $region28: #{_lambda_.20} parent=0 // pred_region
    _
  $region29: #{_lambda_.20} parent=0 // pred_fallthru
    _
  // Predicated region
  $region30: #{_lambda_.20} parent=0 // pred_check
    _
  $region31: #{_lambda_.20} parent=0 // pred_check_branch
    %343 = sbr.rel (0) target = $region33
  $region32: #{_lambda_.20} parent=0 // pred_region
    _
  $region33: #{_lambda_.20} parent=0 // pred_fallthru
    _
  // Predicated region
  $region34: #{_lambda_.20} parent=0 // pred_check
    _
  $region35: #{_lambda_.20} parent=0 // pred_check_branch
    %345 = sbr.rel (0) target = $region37
  $region36: #{_lambda_.20} parent=0 // pred_region
    _
  $region37: #{_lambda_.20} parent=0 // pred_fallthru
    _
  // Predicated region
  $region38: #{_lambda_.20} parent=0 // pred_check
    _
  $region39: #{_lambda_.20} parent=0 // pred_check_branch
    %347 = sbr.rel (0) target = $region41
  $region40: #{_lambda_.20} parent=0 // pred_region
    _
  $region41: #{_lambda_.20} parent=0 // pred_fallthru
    _

// kernel: _lambda_.23
$region0: #{_lambda_.23}
  #allocation0 [shape = 'u32[]', space=smem, size = 0x4, offset = 0x4, fixed_abs, tag = 'smem constant byte address 0x4 - core index']
  #allocation1 [shape = 'u32[144,128]{1,0:T(1,128)}', space=vmem, size = 0x12000, scoped, tag = 'internal scratch']
  #allocation2 [shape = 'f32[1]{0:T(128)}', space=smem, size = 0x200, scoped, tag = 'scratch operand']
  %s0 = inlined_call_operand.vmem [shape: f32[8,1024], index: 0, kind: input, shape index: {}]
  %s1 = inlined_call_operand.vmem [shape: f32[8,1024], index: 1, kind: input, shape index: {}]
  %s2 = inlined_call_operand.hbm [shape: f32[1], index: 2, kind: output, shape index: {}]
  %s3 = sld [smem:[#allocation0]]
  $region22: #{_lambda_.23} parent=0
    _
  %s5 = ssub.s32 1, %s3
  %s6 = scalar_select 0, %s5, %s3
  $region1: #{_lambda_.23} parent=0
    #allocation3 [shape = 'u8[512]{0}', space=smem, size = 0x200, scoped, tag = 'output window, operand 0, single buffered']
    #allocation4 [shape = 's32[1]{0}', space=sflag, size = 0x4, scoped, tag = 'scoped memory for _lambda_.23']
    %7 = vsyncpa [#allocation4], 0
    // Predicated region
    $region2: #{_lambda_.23} parent=1 // pred_check
      _
    $region3: #{_lambda_.23} parent=1 // pred_check_branch
      %9 = sbr.rel (0) target = $region5
    $region4: #{_lambda_.23} parent=1 // pred_region
      _
    $region5: #{_lambda_.23} parent=1 // pred_fallthru
      _
    // Predicated region
    $region6: #{_lambda_.23} parent=1 // pred_check
      _
    $region7: #{_lambda_.23} parent=1 // pred_check_branch
      %11 = sbr.rel (0) target = $region9
    $region8: #{_lambda_.23} parent=1 // pred_region
      _
    $region9: #{_lambda_.23} parent=1 // pred_fallthru
      _
    %p12 = scmp.eq.s32.totalorder 0, 0
    // Predicated region
    $region10: #{_lambda_.23} parent=1 // pred_check
      %p13 = pneg %p12
    $region11: #{_lambda_.23} parent=1 // pred_check_branch
      %15 = sbr.rel (%p13) target = $region13
    $region12: #{_lambda_.23} parent=1 // pred_region
      %s16 = scalar_lea.smem [#allocation2], 0
      %17 = sst [smem:[%s16]] 0.0
    $region13: #{_lambda_.23} parent=1 // pred_fallthru
      _
    %v18 = vld [vmem:[%s0] sm:$0xff]
    %v19 = vld [vmem:[%s0 + $0x8] sm:$0xff]
    %v20 = vld [vmem:[%s0 + $0x10] sm:$0xff]
    %v21 = vld [vmem:[%s0 + $0x18] sm:$0xff]
    %v22 = vld [vmem:[%s0 + $0x20] sm:$0xff]
    %v23 = vld [vmem:[%s0 + $0x28] sm:$0xff]
    %v24 = vld [vmem:[%s0 + $0x30] sm:$0xff]
    %v25 = vld [vmem:[%s0 + $0x38] sm:$0xff]
    %v26 = vld [vmem:[%s1] sm:$0xff]
    %v27 = vld [vmem:[%s1 + $0x8] sm:$0xff]
    %v28 = vld [vmem:[%s1 + $0x10] sm:$0xff]
    %v29 = vld [vmem:[%s1 + $0x18] sm:$0xff]
    %v30 = vld [vmem:[%s1 + $0x20] sm:$0xff]
    %v31 = vld [vmem:[%s1 + $0x28] sm:$0xff]
    %v32 = vld [vmem:[%s1 + $0x30] sm:$0xff]
    %v33 = vld [vmem:[%s1 + $0x38] sm:$0xff]
    %v34 = vsub.f32 %v18, %v26
    %v35 = vsub.f32 %v19, %v27
    %v36 = vsub.f32 %v20, %v28
    %v37 = vsub.f32 %v21, %v29
    %v38 = vsub.f32 %v22, %v30
    %v39 = vsub.f32 %v23, %v31
    %v40 = vsub.f32 %v24, %v32
    %v41 = vsub.f32 %v25, %v33
    %s42 = sld [smem:[#allocation2]]
    %v43 = vmul.f32 %v34, %v34
    %v44 = vmul.f32 %v35, %v35
    %v45 = vmul.f32 %v36, %v36
    %v46 = vmul.f32 %v37, %v37
    %v47 = vmul.f32 %v38, %v38
    %v48 = vmul.f32 %v39, %v39
    %v49 = vmul.f32 %v40, %v40
    %v50 = vmul.f32 %v41, %v41
    %v51 = vadd.f32 %v43, %v44
    %v52 = vadd.f32 %v51, %v45
    %v53 = vadd.f32 %v52, %v46
    %v54 = vadd.f32 %v53, %v47
    %v55 = vadd.f32 %v54, %v48
    %v56 = vadd.f32 %v55, %v49
    %v57 = vadd.f32 %v56, %v50
    %58 = vadd.xlane.f32.xlu0 %v57
    %v59 = vpop.xlane.xlu0 %58
    %v60 = vrot.slane %v59, 4
    %v61 = vadd.f32 %v59, %v60
    %v62 = vrot.slane %v61, 2
    %v63 = vadd.f32 %v61, %v62
    %v64 = vrot.slane %v63, 1
    %v65 = vadd.f32 %v63, %v64
    %s66 = vtos %v65
    %s67 = sadd.f32 %s42, %s66
    %s68 = scalar_lea.smem [#allocation2], 0
    %69 = sst [smem:[%s68]] %s67
    %s70 = sld [smem:[#allocation2]]
    %s71 = smul.f32 %s70, 0.00048828125
    %s72 = scalar_lea.smem [#allocation3], 0
    %73 = sst [smem:[%s72]] %s71
    // Predicated region
    $region14: #{_lambda_.23} parent=1 // pred_check
      _
    $region15: #{_lambda_.23} parent=1 // pred_check_branch
      %75 = sbr.rel (0) target = $region17
    $region16: #{_lambda_.23} parent=1 // pred_region
      %s77 = ssub.s32 16, 16
      %78 = vsyncadd [#allocation4], %s77
      %81 = dma.smem_to_hbm [#allocation3], 16, %s2, [#allocation4]
    $region17: #{_lambda_.23} parent=1 // pred_fallthru
      _
    // Predicated region
    $region18: #{_lambda_.23} parent=1 // pred_check
      _
    $region19: #{_lambda_.23} parent=1 // pred_check_branch
      %83 = sbr.rel (0) target = $region21
    $region20: #{_lambda_.23} parent=1 // pred_region
      %84 = dma.done [#allocation4], 16
    $region21: #{_lambda_.23} parent=1 // pred_fallthru
      _
    %85 = sfence
    %86 = vsyncpa [#allocation4], 1

// kernel: _lambda_.22
$region0: #{_lambda_.22}
  #allocation0 [shape = 'u32[]', space=smem, size = 0x4, offset = 0x4, fixed_abs, tag = 'smem constant byte address 0x4 - core index']
  #allocation1 [shape = 'u32[144,128]{1,0:T(1,128)}', space=vmem, size = 0x12000, scoped, tag = 'internal scratch']
  %s0 = inlined_call_operand.vmem [shape: bf16[512,288], index: 0, kind: input, shape index: {}]
  %s1 = inlined_call_operand.vmem [shape: bf16[288,128], index: 1, kind: input, shape index: {}]
  %s2 = inlined_call_operand.vmem [shape: f32[1,128], index: 2, kind: input, shape index: {}]
  %s3 = inlined_call_operand.vmem [shape: f32[512,128], index: 3, kind: output, shape index: {}]
  %s4 = sld [smem:[#allocation0]]
  $region22: #{_lambda_.22} parent=0
    _
  %s6 = ssub.s32 1, %s4
  %s7 = scalar_select 0, %s6, %s4
  // Predicated region
  $region2: #{_lambda_.22} parent=0 // pred_check
    _
  $region3: #{_lambda_.22} parent=0 // pred_check_branch
    %9 = sbr.rel (0) target = $region5
  $region4: #{_lambda_.22} parent=0 // pred_region
    _
  $region5: #{_lambda_.22} parent=0 // pred_fallthru
    _
  // Predicated region
  $region6: #{_lambda_.22} parent=0 // pred_check
    _
  $region7: #{_lambda_.22} parent=0 // pred_check_branch
    %11 = sbr.rel (0) target = $region9
  $region8: #{_lambda_.22} parent=0 // pred_region
    _
  $region9: #{_lambda_.22} parent=0 // pred_fallthru
    _
  // Predicated region
  $region10: #{_lambda_.22} parent=0 // pred_check
    _
  $region11: #{_lambda_.22} parent=0 // pred_check_branch
    %13 = sbr.rel (0) target = $region13
  $region12: #{_lambda_.22} parent=0 // pred_region
    _
  $region13: #{_lambda_.22} parent=0 // pred_fallthru
    _
  %v15 = vld [vmem:[%s0] sm:$0xff]
  %v16 = vld [vmem:[%s0 + $0x8] sm:$0xf]
  %v17 = vld [vmem:[%s0 + $0xc] sm:$0xff]
  %v18 = vld [vmem:[%s0 + $0x14] sm:$0xf]
  %v19 = vld [vmem:[%s0 + $0x18] sm:$0xff]
  %v20 = vld [vmem:[%s0 + $0x20] sm:$0xf]
  %v21 = vld [vmem:[%s0 + $0x24] sm:$0xff]
  %v22 = vld [vmem:[%s0 + $0x2c] sm:$0xf]
  %v23 = vld [vmem:[%s0 + $0x30] sm:$0xff]
  %v24 = vld [vmem:[%s0 + $0x38] sm:$0xf]
  %v25 = vld [vmem:[%s0 + $0x3c] sm:$0xff]
  %v26 = vld [vmem:[%s0 + $0x44] sm:$0xf]
  %v27 = vld [vmem:[%s0 + $0x48] sm:$0xff]
  %v28 = vld [vmem:[%s0 + $0x50] sm:$0xf]
  %v29 = vld [vmem:[%s0 + $0x54] sm:$0xff]
  %v30 = vld [vmem:[%s0 + $0x5c] sm:$0xf]
  %v31 = vld [vmem:[%s0 + $0x60] sm:$0xff]
  %v32 = vld [vmem:[%s0 + $0x68] sm:$0xf]
  %v33 = vld [vmem:[%s0 + $0x6c] sm:$0xff]
  %v34 = vld [vmem:[%s0 + $0x74] sm:$0xf]
  %v35 = vld [vmem:[%s0 + $0x78] sm:$0xff]
  %v36 = vld [vmem:[%s0 + $0x80] sm:$0xf]
  %v37 = vld [vmem:[%s0 + $0x84] sm:$0xff]
  %v38 = vld [vmem:[%s0 + $0x8c] sm:$0xf]
  %v39 = vld [vmem:[%s0 + $0x90] sm:$0xff]
  %v40 = vld [vmem:[%s0 + $0x98] sm:$0xf]
  %v41 = vld [vmem:[%s0 + $0x9c] sm:$0xff]
  %v42 = vld [vmem:[%s0 + $0xa4] sm:$0xf]
  %v43 = vld [vmem:[%s0 + $0xa8] sm:$0xff]
  %v44 = vld [vmem:[%s0 + $0xb0] sm:$0xf]
  %v45 = vld [vmem:[%s0 + $0xb4] sm:$0xff]
  %v46 = vld [vmem:[%s0 + $0xbc] sm:$0xf]
  %v47 = vld [vmem:[%s0 + $0xc0] sm:$0xff]
  %v48 = vld [vmem:[%s0 + $0xc8] sm:$0xf]
  %v49 = vld [vmem:[%s0 + $0xcc] sm:$0xff]
  %v50 = vld [vmem:[%s0 + $0xd4] sm:$0xf]
  %v51 = vld [vmem:[%s0 + $0xd8] sm:$0xff]
  %v52 = vld [vmem:[%s0 + $0xe0] sm:$0xf]
  %v53 = vld [vmem:[%s0 + $0xe4] sm:$0xff]
  %v54 = vld [vmem:[%s0 + $0xec] sm:$0xf]
  %v55 = vld [vmem:[%s0 + $0xf0] sm:$0xff]
  %v56 = vld [vmem:[%s0 + $0xf8] sm:$0xf]
  %v57 = vld [vmem:[%s0 + $0xfc] sm:$0xff]
  %v58 = vld [vmem:[%s0 + $0x104] sm:$0xf]
  %v59 = vld [vmem:[%s0 + $0x108] sm:$0xff]
  %v60 = vld [vmem:[%s0 + $0x110] sm:$0xf]
  %v61 = vld [vmem:[%s0 + $0x114] sm:$0xff]
  %v62 = vld [vmem:[%s0 + $0x11c] sm:$0xf]
  %v63 = vld [vmem:[%s0 + $0x120] sm:$0xff]
  %v64 = vld [vmem:[%s0 + $0x128] sm:$0xf]
  %v65 = vld [vmem:[%s0 + $0x12c] sm:$0xff]
  %v66 = vld [vmem:[%s0 + $0x134] sm:$0xf]
  %v67 = vld [vmem:[%s0 + $0x138] sm:$0xff]
  %v68 = vld [vmem:[%s0 + $0x140] sm:$0xf]
  %v69 = vld [vmem:[%s0 + $0x144] sm:$0xff]
  %v70 = vld [vmem:[%s0 + $0x14c] sm:$0xf]
  %v71 = vld [vmem:[%s0 + $0x150] sm:$0xff]
  %v72 = vld [vmem:[%s0 + $0x158] sm:$0xf]
  %v73 = vld [vmem:[%s0 + $0x15c] sm:$0xff]
  %v74 = vld [vmem:[%s0 + $0x164] sm:$0xf]
  %v75 = vld [vmem:[%s0 + $0x168] sm:$0xff]
  %v76 = vld [vmem:[%s0 + $0x170] sm:$0xf]
  %v77 = vld [vmem:[%s0 + $0x174] sm:$0xff]
  %v78 = vld [vmem:[%s0 + $0x17c] sm:$0xf]
  %v79 = vld [vmem:[%s0 + $0x180] sm:$0xff]
  %v80 = vld [vmem:[%s0 + $0x188] sm:$0xf]
  %v81 = vld [vmem:[%s0 + $0x18c] sm:$0xff]
  %v82 = vld [vmem:[%s0 + $0x194] sm:$0xf]
  %v83 = vld [vmem:[%s0 + $0x198] sm:$0xff]
  %v84 = vld [vmem:[%s0 + $0x1a0] sm:$0xf]
  %v85 = vld [vmem:[%s0 + $0x1a4] sm:$0xff]
  %v86 = vld [vmem:[%s0 + $0x1ac] sm:$0xf]
  %v87 = vld [vmem:[%s0 + $0x1b0] sm:$0xff]
  %v88 = vld [vmem:[%s0 + $0x1b8] sm:$0xf]
  %v89 = vld [vmem:[%s0 + $0x1bc] sm:$0xff]
  %v90 = vld [vmem:[%s0 + $0x1c4] sm:$0xf]
  %v91 = vld [vmem:[%s0 + $0x1c8] sm:$0xff]
  %v92 = vld [vmem:[%s0 + $0x1d0] sm:$0xf]
  %v93 = vld [vmem:[%s0 + $0x1d4] sm:$0xff]
  %v94 = vld [vmem:[%s0 + $0x1dc] sm:$0xf]
  %v95 = vld [vmem:[%s0 + $0x1e0] sm:$0xff]
  %v96 = vld [vmem:[%s0 + $0x1e8] sm:$0xf]
  %v97 = vld [vmem:[%s0 + $0x1ec] sm:$0xff]
  %v98 = vld [vmem:[%s0 + $0x1f4] sm:$0xf]
  %v99 = vld [vmem:[%s0 + $0x1f8] sm:$0xff]
  %v100 = vld [vmem:[%s0 + $0x200] sm:$0xf]
  %v101 = vld [vmem:[%s0 + $0x204] sm:$0xff]
  %v102 = vld [vmem:[%s0 + $0x20c] sm:$0xf]
  %v103 = vld [vmem:[%s0 + $0x210] sm:$0xff]
  %v104 = vld [vmem:[%s0 + $0x218] sm:$0xf]
  %v105 = vld [vmem:[%s0 + $0x21c] sm:$0xff]
  %v106 = vld [vmem:[%s0 + $0x224] sm:$0xf]
  %v107 = vld [vmem:[%s0 + $0x228] sm:$0xff]
  %v108 = vld [vmem:[%s0 + $0x230] sm:$0xf]
  %v109 = vld [vmem:[%s0 + $0x234] sm:$0xff]
  %v110 = vld [vmem:[%s0 + $0x23c] sm:$0xf]
  %v111 = vld [vmem:[%s0 + $0x240] sm:$0xff]
  %v112 = vld [vmem:[%s0 + $0x248] sm:$0xf]
  %v113 = vld [vmem:[%s0 + $0x24c] sm:$0xff]
  %v114 = vld [vmem:[%s0 + $0x254] sm:$0xf]
  %v115 = vld [vmem:[%s0 + $0x258] sm:$0xff]
  %v116 = vld [vmem:[%s0 + $0x260] sm:$0xf]
  %v117 = vld [vmem:[%s0 + $0x264] sm:$0xff]
  %v118 = vld [vmem:[%s0 + $0x26c] sm:$0xf]
  %v119 = vld [vmem:[%s0 + $0x270] sm:$0xff]
  %v120 = vld [vmem:[%s0 + $0x278] sm:$0xf]
  %v121 = vld [vmem:[%s0 + $0x27c] sm:$0xff]
  %v122 = vld [vmem:[%s0 + $0x284] sm:$0xf]
  %v123 = vld [vmem:[%s0 + $0x288] sm:$0xff]
  %v124 = vld [vmem:[%s0 + $0x290] sm:$0xf]
  %v125 = vld [vmem:[%s0 + $0x294] sm:$0xff]
  %v126 = vld [vmem:[%s0 + $0x29c] sm:$0xf]
  %v127 = vld [vmem:[%s0 + $0x2a0] sm:$0xff]
  %v128 = vld [vmem:[%s0 + $0x2a8] sm:$0xf]
  %v129 = vld [vmem:[%s0 + $0x2ac] sm:$0xff]
  %v130 = vld [vmem:[%s0 + $0x2b4] sm:$0xf]
  %v131 = vld [vmem:[%s0 + $0x2b8] sm:$0xff]
  %v132 = vld [vmem:[%s0 + $0x2c0] sm:$0xf]
  %v133 = vld [vmem:[%s0 + $0x2c4] sm:$0xff]
  %v134 = vld [vmem:[%s0 + $0x2cc] sm:$0xf]
  %v135 = vld [vmem:[%s0 + $0x2d0] sm:$0xff]
  %v136 = vld [vmem:[%s0 + $0x2d8] sm:$0xf]
  %v137 = vld [vmem:[%s0 + $0x2dc] sm:$0xff]
  %v138 = vld [vmem:[%s0 + $0x2e4] sm:$0xf]
  %v139 = vld [vmem:[%s0 + $0x2e8] sm:$0xff]
  %v140 = vld [vmem:[%s0 + $0x2f0] sm:$0xf]
  %v141 = vld [vmem:[%s0 + $0x2f4] sm:$0xff]
  %v142 = vld [vmem:[%s0 + $0x2fc] sm:$0xf]
  %v143 = vld [vmem:[%s1] sm:$0xf]
  %v144 = vld [vmem:[%s1 + $0x4] sm:$0xf]
  %v145 = vld [vmem:[%s1 + $0x8] sm:$0xf]
  %v146 = vld [vmem:[%s1 + $0xc] sm:$0xf]
  %v147 = vld [vmem:[%s1 + $0x10] sm:$0xf]
  %v148 = vld [vmem:[%s1 + $0x14] sm:$0xf]
  %v149 = vld [vmem:[%s1 + $0x18] sm:$0xf]
  %v150 = vld [vmem:[%s1 + $0x1c] sm:$0xf]
  %v151 = vld [vmem:[%s1 + $0x20] sm:$0xf]
  %v152 = vld [vmem:[%s1 + $0x24] sm:$0xf]
  %v153 = vld [vmem:[%s1 + $0x28] sm:$0xf]
  %v154 = vld [vmem:[%s1 + $0x2c] sm:$0xf]
  %v155 = vld [vmem:[%s1 + $0x30] sm:$0xf]
  %v156 = vld [vmem:[%s1 + $0x34] sm:$0xf]
  %v157 = vld [vmem:[%s1 + $0x38] sm:$0xf]
  %v158 = vld [vmem:[%s1 + $0x3c] sm:$0xf]
  %v159 = vld [vmem:[%s1 + $0x40] sm:$0xf]
  %v160 = vld [vmem:[%s1 + $0x44] sm:$0xf]
  %v161 = vld [vmem:[%s1 + $0x48] sm:$0xf]
  %v162 = vld [vmem:[%s1 + $0x4c] sm:$0xf]
  %v163 = vld [vmem:[%s1 + $0x50] sm:$0xf]
  %v164 = vld [vmem:[%s1 + $0x54] sm:$0xf]
  %v165 = vld [vmem:[%s1 + $0x58] sm:$0xf]
  %v166 = vld [vmem:[%s1 + $0x5c] sm:$0xf]
  %v167 = vld [vmem:[%s1 + $0x60] sm:$0xf]
  %v168 = vld [vmem:[%s1 + $0x64] sm:$0xf]
  %v169 = vld [vmem:[%s1 + $0x68] sm:$0xf]
  %v170 = vld [vmem:[%s1 + $0x6c] sm:$0xf]
  %v171 = vld [vmem:[%s1 + $0x70] sm:$0xf]
  %v172 = vld [vmem:[%s1 + $0x74] sm:$0xf]
  %v173 = vld [vmem:[%s1 + $0x78] sm:$0xf]
  %v174 = vld [vmem:[%s1 + $0x7c] sm:$0xf]
  %v175 = vld [vmem:[%s1 + $0x80] sm:$0xf]
  %v176 = vld [vmem:[%s1 + $0x84] sm:$0xf]
  %v177 = vld [vmem:[%s1 + $0x88] sm:$0xf]
  %v178 = vld [vmem:[%s1 + $0x8c] sm:$0xf]
  %v179 = vld [vmem:[%s2] sm:$0x1]
  %v181 = vlaneseq
  %v182 = vshrl.u32 %v181, 7
  %v183 = vsub.s32 0, %v182
  %v184 = vrot.slane %v179, %v183
  %v314 = vunpack.c.l.b16 %v15
  %v315 = vunpack.c.h.b16 %v15
  %v316 = vunpack.c.l.b16 %v16
  %v317 = vunpack.c.l.b16 %v17
  %v318 = vunpack.c.h.b16 %v17
  %v319 = vunpack.c.l.b16 %v18
  %v320 = vunpack.c.l.b16 %v19
  %v321 = vunpack.c.h.b16 %v19
  %v322 = vunpack.c.l.b16 %v20
  %v323 = vunpack.c.l.b16 %v21
  %v324 = vunpack.c.h.b16 %v21
  %v325 = vunpack.c.l.b16 %v22
  %v326 = vunpack.c.l.b16 %v23
  %v327 = vunpack.c.h.b16 %v23
  %v328 = vunpack.c.l.b16 %v24
  %v329 = vunpack.c.l.b16 %v25
  %v330 = vunpack.c.h.b16 %v25
  %v331 = vunpack.c.l.b16 %v26
  %v332 = vunpack.c.l.b16 %v27
  %v333 = vunpack.c.h.b16 %v27
  %v334 = vunpack.c.l.b16 %v28
  %v335 = vunpack.c.l.b16 %v29
  %v336 = vunpack.c.h.b16 %v29
  %v337 = vunpack.c.l.b16 %v30
  %v338 = vunpack.c.l.b16 %v31
  %v339 = vunpack.c.h.b16 %v31
  %v340 = vunpack.c.l.b16 %v32
  %v341 = vunpack.c.l.b16 %v33
  %v342 = vunpack.c.h.b16 %v33
  %v343 = vunpack.c.l.b16 %v34
  %v344 = vunpack.c.l.b16 %v35
  %v345 = vunpack.c.h.b16 %v35
  %v346 = vunpack.c.l.b16 %v36
  %v347 = vunpack.c.l.b16 %v37
  %v348 = vunpack.c.h.b16 %v37
  %v349 = vunpack.c.l.b16 %v38
  %v350 = vunpack.c.l.b16 %v39
  %v351 = vunpack.c.h.b16 %v39
  %v352 = vunpack.c.l.b16 %v40
  %v353 = vunpack.c.l.b16 %v41
  %v354 = vunpack.c.h.b16 %v41
  %v355 = vunpack.c.l.b16 %v42
  %v356 = vunpack.c.l.b16 %v43
  %v357 = vunpack.c.h.b16 %v43
  %v358 = vunpack.c.l.b16 %v44
  %v359 = vunpack.c.l.b16 %v45
  %v360 = vunpack.c.h.b16 %v45
  %v361 = vunpack.c.l.b16 %v46
  %v362 = vunpack.c.l.b16 %v47
  %v363 = vunpack.c.h.b16 %v47
  %v364 = vunpack.c.l.b16 %v48
  %v365 = vunpack.c.l.b16 %v49
  %v366 = vunpack.c.h.b16 %v49
  %v367 = vunpack.c.l.b16 %v50
  %v368 = vunpack.c.l.b16 %v51
  %v369 = vunpack.c.h.b16 %v51
  %v370 = vunpack.c.l.b16 %v52
  %v371 = vunpack.c.l.b16 %v53
  %v372 = vunpack.c.h.b16 %v53
  %v373 = vunpack.c.l.b16 %v54
  %v374 = vunpack.c.l.b16 %v55
  %v375 = vunpack.c.h.b16 %v55
  %v376 = vunpack.c.l.b16 %v56
  %v377 = vunpack.c.l.b16 %v57
  %v378 = vunpack.c.h.b16 %v57
  %v379 = vunpack.c.l.b16 %v58
  %v380 = vunpack.c.l.b16 %v59
  %v381 = vunpack.c.h.b16 %v59
  %v382 = vunpack.c.l.b16 %v60
  %v383 = vunpack.c.l.b16 %v61
  %v384 = vunpack.c.h.b16 %v61
  %v385 = vunpack.c.l.b16 %v62
  %v386 = vunpack.c.l.b16 %v63
  %v387 = vunpack.c.h.b16 %v63
  %v388 = vunpack.c.l.b16 %v64
  %v389 = vunpack.c.l.b16 %v65
  %v390 = vunpack.c.h.b16 %v65
  %v391 = vunpack.c.l.b16 %v66
  %v392 = vunpack.c.l.b16 %v67
  %v393 = vunpack.c.h.b16 %v67
  %v394 = vunpack.c.l.b16 %v68
  %v395 = vunpack.c.l.b16 %v69
  %v396 = vunpack.c.h.b16 %v69
  %v397 = vunpack.c.l.b16 %v70
  %v398 = vunpack.c.l.b16 %v71
  %v399 = vunpack.c.h.b16 %v71
  %v400 = vunpack.c.l.b16 %v72
  %v401 = vunpack.c.l.b16 %v73
  %v402 = vunpack.c.h.b16 %v73
  %v403 = vunpack.c.l.b16 %v74
  %v404 = vunpack.c.l.b16 %v75
  %v405 = vunpack.c.h.b16 %v75
  %v406 = vunpack.c.l.b16 %v76
  %v407 = vunpack.c.l.b16 %v77
  %v408 = vunpack.c.h.b16 %v77
  %v409 = vunpack.c.l.b16 %v78
  %v410 = vunpack.c.l.b16 %v79
  %v411 = vunpack.c.h.b16 %v79
  %v412 = vunpack.c.l.b16 %v80
  %v413 = vunpack.c.l.b16 %v81
  %v414 = vunpack.c.h.b16 %v81
  %v415 = vunpack.c.l.b16 %v82
  %v416 = vunpack.c.l.b16 %v83
  %v417 = vunpack.c.h.b16 %v83
  %v418 = vunpack.c.l.b16 %v84
  %v419 = vunpack.c.l.b16 %v85
  %v420 = vunpack.c.h.b16 %v85
  %v421 = vunpack.c.l.b16 %v86
  %v422 = vunpack.c.l.b16 %v87
  %v423 = vunpack.c.h.b16 %v87
  %v424 = vunpack.c.l.b16 %v88
  %v425 = vunpack.c.l.b16 %v89
  %v426 = vunpack.c.h.b16 %v89
  %v427 = vunpack.c.l.b16 %v90
  %v428 = vunpack.c.l.b16 %v91
  %v429 = vunpack.c.h.b16 %v91
  %v430 = vunpack.c.l.b16 %v92
  %v431 = vunpack.c.l.b16 %v93
  %v432 = vunpack.c.h.b16 %v93
  %v433 = vunpack.c.l.b16 %v94
  %v434 = vunpack.c.l.b16 %v95
  %v435 = vunpack.c.h.b16 %v95
  %v436 = vunpack.c.l.b16 %v96
  %v437 = vunpack.c.l.b16 %v97
  %v438 = vunpack.c.h.b16 %v97
  %v439 = vunpack.c.l.b16 %v98
  %v440 = vunpack.c.l.b16 %v99
  %v441 = vunpack.c.h.b16 %v99
  %v442 = vunpack.c.l.b16 %v100
  %v443 = vunpack.c.l.b16 %v101
  %v444 = vunpack.c.h.b16 %v101
  %v445 = vunpack.c.l.b16 %v102
  %v446 = vunpack.c.l.b16 %v103
  %v447 = vunpack.c.h.b16 %v103
  %v448 = vunpack.c.l.b16 %v104
  %v449 = vunpack.c.l.b16 %v105
  %v450 = vunpack.c.h.b16 %v105
  %v451 = vunpack.c.l.b16 %v106
  %v452 = vunpack.c.l.b16 %v107
  %v453 = vunpack.c.h.b16 %v107
  %v454 = vunpack.c.l.b16 %v108
  %v455 = vunpack.c.l.b16 %v109
  %v456 = vunpack.c.h.b16 %v109
  %v457 = vunpack.c.l.b16 %v110
  %v458 = vunpack.c.l.b16 %v111
  %v459 = vunpack.c.h.b16 %v111
  %v460 = vunpack.c.l.b16 %v112
  %v461 = vunpack.c.l.b16 %v113
  %v462 = vunpack.c.h.b16 %v113
  %v463 = vunpack.c.l.b16 %v114
  %v464 = vunpack.c.l.b16 %v115
  %v465 = vunpack.c.h.b16 %v115
  %v466 = vunpack.c.l.b16 %v116
  %v467 = vunpack.c.l.b16 %v117
  %v468 = vunpack.c.h.b16 %v117
  %v469 = vunpack.c.l.b16 %v118
  %v470 = vunpack.c.l.b16 %v119
  %v471 = vunpack.c.h.b16 %v119
  %v472 = vunpack.c.l.b16 %v120
  %v473 = vunpack.c.l.b16 %v121
  %v474 = vunpack.c.h.b16 %v121
  %v475 = vunpack.c.l.b16 %v122
  %v476 = vunpack.c.l.b16 %v123
  %v477 = vunpack.c.h.b16 %v123
  %v478 = vunpack.c.l.b16 %v124
  %v479 = vunpack.c.l.b16 %v125
  %v480 = vunpack.c.h.b16 %v125
  %v481 = vunpack.c.l.b16 %v126
  %v482 = vunpack.c.l.b16 %v127
  %v483 = vunpack.c.h.b16 %v127
  %v484 = vunpack.c.l.b16 %v128
  %v485 = vunpack.c.l.b16 %v129
  %v486 = vunpack.c.h.b16 %v129
  %v487 = vunpack.c.l.b16 %v130
  %v488 = vunpack.c.l.b16 %v131
  %v489 = vunpack.c.h.b16 %v131
  %v490 = vunpack.c.l.b16 %v132
  %v491 = vunpack.c.l.b16 %v133
  %v492 = vunpack.c.h.b16 %v133
  %v493 = vunpack.c.l.b16 %v134
  %v494 = vunpack.c.l.b16 %v135
  %v495 = vunpack.c.h.b16 %v135
  %v496 = vunpack.c.l.b16 %v136
  %v497 = vunpack.c.l.b16 %v137
  %v498 = vunpack.c.h.b16 %v137
  %v499 = vunpack.c.l.b16 %v138
  %v500 = vunpack.c.l.b16 %v139
  %v501 = vunpack.c.h.b16 %v139
  %v502 = vunpack.c.l.b16 %v140
  %v503 = vunpack.c.l.b16 %v141
  %v504 = vunpack.c.h.b16 %v141
  %v505 = vunpack.c.l.b16 %v142
  %v506 = vpack.c.b16 %v317, %v314
  %v507 = vpack.c.b16 %v318, %v315
  %v508 = vpack.c.b16 %v319, %v316
  %v509 = vpack.c.b16 %v323, %v320
  %v510 = vpack.c.b16 %v324, %v321
  %v511 = vpack.c.b16 %v325, %v322
  %v512 = vpack.c.b16 %v329, %v326
  %v513 = vpack.c.b16 %v330, %v327
  %v514 = vpack.c.b16 %v331, %v328
  %v515 = vpack.c.b16 %v335, %v332
  %v516 = vpack.c.b16 %v336, %v333
  %v517 = vpack.c.b16 %v337, %v334
  %v518 = vpack.c.b16 %v341, %v338
  %v519 = vpack.c.b16 %v342, %v339
  %v520 = vpack.c.b16 %v343, %v340
  %v521 = vpack.c.b16 %v347, %v344
  %v522 = vpack.c.b16 %v348, %v345
  %v523 = vpack.c.b16 %v349, %v346
  %v524 = vpack.c.b16 %v353, %v350
  %v525 = vpack.c.b16 %v354, %v351
  %v526 = vpack.c.b16 %v355, %v352
  %v527 = vpack.c.b16 %v359, %v356
  %v528 = vpack.c.b16 %v360, %v357
  %v529 = vpack.c.b16 %v361, %v358
  %v530 = vpack.c.b16 %v365, %v362
  %v531 = vpack.c.b16 %v366, %v363
  %v532 = vpack.c.b16 %v367, %v364
  %v533 = vpack.c.b16 %v371, %v368
  %v534 = vpack.c.b16 %v372, %v369
  %v535 = vpack.c.b16 %v373, %v370
  %v536 = vpack.c.b16 %v377, %v374
  %v537 = vpack.c.b16 %v378, %v375
  %v538 = vpack.c.b16 %v379, %v376
  %v539 = vpack.c.b16 %v383, %v380
  %v540 = vpack.c.b16 %v384, %v381
  %v541 = vpack.c.b16 %v385, %v382
  %v542 = vpack.c.b16 %v389, %v386
  %v543 = vpack.c.b16 %v390, %v387
  %v544 = vpack.c.b16 %v391, %v388
  %v545 = vpack.c.b16 %v395, %v392
  %v546 = vpack.c.b16 %v396, %v393
  %v547 = vpack.c.b16 %v397, %v394
  %v548 = vpack.c.b16 %v401, %v398
  %v549 = vpack.c.b16 %v402, %v399
  %v550 = vpack.c.b16 %v403, %v400
  %v551 = vpack.c.b16 %v407, %v404
  %v552 = vpack.c.b16 %v408, %v405
  %v553 = vpack.c.b16 %v409, %v406
  %v554 = vpack.c.b16 %v413, %v410
  %v555 = vpack.c.b16 %v414, %v411
  %v556 = vpack.c.b16 %v415, %v412
  %v557 = vpack.c.b16 %v419, %v416
  %v558 = vpack.c.b16 %v420, %v417
  %v559 = vpack.c.b16 %v421, %v418
  %v560 = vpack.c.b16 %v425, %v422
  %v561 = vpack.c.b16 %v426, %v423
  %v562 = vpack.c.b16 %v427, %v424
  %v563 = vpack.c.b16 %v431, %v428
  %v564 = vpack.c.b16 %v432, %v429
  %v565 = vpack.c.b16 %v433, %v430
  %v566 = vpack.c.b16 %v437, %v434
  %v567 = vpack.c.b16 %v438, %v435
  %v568 = vpack.c.b16 %v439, %v436
  %v569 = vpack.c.b16 %v443, %v440
  %v570 = vpack.c.b16 %v444, %v441
  %v571 = vpack.c.b16 %v445, %v442
  %v572 = vpack.c.b16 %v449, %v446
  %v573 = vpack.c.b16 %v450, %v447
  %v574 = vpack.c.b16 %v451, %v448
  %v575 = vpack.c.b16 %v455, %v452
  %v576 = vpack.c.b16 %v456, %v453
  %v577 = vpack.c.b16 %v457, %v454
  %v578 = vpack.c.b16 %v461, %v458
  %v579 = vpack.c.b16 %v462, %v459
  %v580 = vpack.c.b16 %v463, %v460
  %v581 = vpack.c.b16 %v467, %v464
  %v582 = vpack.c.b16 %v468, %v465
  %v583 = vpack.c.b16 %v469, %v466
  %v584 = vpack.c.b16 %v473, %v470
  %v585 = vpack.c.b16 %v474, %v471
  %v586 = vpack.c.b16 %v475, %v472
  %v587 = vpack.c.b16 %v479, %v476
  %v588 = vpack.c.b16 %v480, %v477
  %v589 = vpack.c.b16 %v481, %v478
  %v590 = vpack.c.b16 %v485, %v482
  %v591 = vpack.c.b16 %v486, %v483
  %v592 = vpack.c.b16 %v487, %v484
  %v593 = vpack.c.b16 %v491, %v488
  %v594 = vpack.c.b16 %v492, %v489
  %v595 = vpack.c.b16 %v493, %v490
  %v596 = vpack.c.b16 %v497, %v494
  %v597 = vpack.c.b16 %v498, %v495
  %v598 = vpack.c.b16 %v499, %v496
  %v599 = vpack.c.b16 %v503, %v500
  %v600 = vpack.c.b16 %v504, %v501
  %v601 = vpack.c.b16 %v505, %v502
  %v702 = vunpack.c.l.b16 %v143
  %v703 = vunpack.c.l.b16 %v144
  %v704 = vunpack.c.l.b16 %v145
  %v705 = vunpack.c.l.b16 %v146
  %v706 = vunpack.c.l.b16 %v147
  %v707 = vunpack.c.l.b16 %v148
  %v708 = vunpack.c.l.b16 %v149
  %v709 = vunpack.c.l.b16 %v150
  %v710 = vunpack.c.l.b16 %v151
  %v711 = vunpack.c.l.b16 %v152
  %v712 = vunpack.c.l.b16 %v153
  %v713 = vunpack.c.l.b16 %v154
  %v714 = vunpack.c.l.b16 %v155
  %v715 = vunpack.c.l.b16 %v156
  %v716 = vunpack.c.l.b16 %v157
  %v717 = vunpack.c.l.b16 %v158
  %v718 = vunpack.c.l.b16 %v159
  %v719 = vunpack.c.l.b16 %v160
  %v720 = vunpack.c.l.b16 %v161
  %v721 = vunpack.c.l.b16 %v162
  %v722 = vunpack.c.l.b16 %v163
  %v723 = vunpack.c.l.b16 %v164
  %v724 = vunpack.c.l.b16 %v165
  %v725 = vunpack.c.l.b16 %v166
  %v726 = vunpack.c.l.b16 %v167
  %v727 = vunpack.c.l.b16 %v168
  %v728 = vunpack.c.l.b16 %v169
  %v729 = vunpack.c.l.b16 %v170
  %v730 = vunpack.c.l.b16 %v171
  %v731 = vunpack.c.l.b16 %v172
  %v732 = vunpack.c.l.b16 %v173
  %v733 = vunpack.c.l.b16 %v174
  %v734 = vunpack.c.l.b16 %v175
  %v735 = vunpack.c.l.b16 %v176
  %v736 = vunpack.c.l.b16 %v177
  %v737 = vunpack.c.l.b16 %v178
  %v738 = vpack.c.b16 %v703, %v702
  %v739 = vpack.c.b16 %v705, %v704
  %v740 = vpack.c.b16 %v707, %v706
  %v741 = vpack.c.b16 %v709, %v708
  %v742 = vpack.c.b16 %v711, %v710
  %v743 = vpack.c.b16 %v713, %v712
  %v744 = vpack.c.b16 %v715, %v714
  %v745 = vpack.c.b16 %v717, %v716
  %v746 = vpack.c.b16 %v719, %v718
  %v747 = vpack.c.b16 %v721, %v720
  %v748 = vpack.c.b16 %v723, %v722
  %v749 = vpack.c.b16 %v725, %v724
  %v750 = vpack.c.b16 %v727, %v726
  %v751 = vpack.c.b16 %v729, %v728
  %v752 = vpack.c.b16 %v731, %v730
  %v753 = vpack.c.b16 %v733, %v732
  %v754 = vpack.c.b16 %v735, %v734
  %v755 = vpack.c.b16 %v737, %v736
  %vm774 = vcmask 261120
  %v776 = vsel %vm774, %v508, 0
  %v779 = vsel %vm774, %v511, 0
  %v782 = vsel %vm774, %v514, 0
  %v785 = vsel %vm774, %v517, 0
  %v788 = vsel %vm774, %v520, 0
  %v791 = vsel %vm774, %v523, 0
  %v794 = vsel %vm774, %v526, 0
  %v797 = vsel %vm774, %v529, 0
  %v800 = vsel %vm774, %v532, 0
  %v803 = vsel %vm774, %v535, 0
  %v806 = vsel %vm774, %v538, 0
  %v809 = vsel %vm774, %v541, 0
  %v812 = vsel %vm774, %v544, 0
  %v815 = vsel %vm774, %v547, 0
  %v818 = vsel %vm774, %v550, 0
  %v821 = vsel %vm774, %v553, 0
  %v824 = vsel %vm774, %v556, 0
  %v827 = vsel %vm774, %v559, 0
  %v830 = vsel %vm774, %v562, 0
  %v833 = vsel %vm774, %v565, 0
  %v836 = vsel %vm774, %v568, 0
  %v839 = vsel %vm774, %v571, 0
  %v842 = vsel %vm774, %v574, 0
  %v845 = vsel %vm774, %v577, 0
  %v848 = vsel %vm774, %v580, 0
  %v851 = vsel %vm774, %v583, 0
  %v854 = vsel %vm774, %v586, 0
  %v857 = vsel %vm774, %v589, 0
  %v860 = vsel %vm774, %v592, 0
  %v863 = vsel %vm774, %v595, 0
  %v866 = vsel %vm774, %v598, 0
  %v869 = vsel %vm774, %v601, 0
  %871 = vmatprep.subr.bf16.mxu0 0
  %872 = vmatpush1.bf16.msra.mxu0 %v738
  %873 = vmatprep.subr.bf16.mxu0 0
  %874 = vmatpush1.bf16.msra.mxu0 %v739
  %875 = vmatprep.subr.bf16.mxu0 0
  %876 = vmatpush1.bf16.msra.mxu0 %v740
  %877 = vmatprep.subr.bf16.mxu0 0
  %878 = vmatpush1.bf16.msra.mxu0 %v741
  %879 = vmatprep.subr.bf16.mxu0 0
  %880 = vmatpush1.bf16.msra.mxu0 %v742
  %881 = vmatprep.subr.bf16.mxu0 0
  %882 = vmatpush1.bf16.msra.mxu0 %v743
  %883 = vmatprep.subr.bf16.mxu0 0
  %884 = vmatpush1.bf16.msra.mxu0 %v744
  %885 = vmatprep.subr.bf16.mxu0 0
  %886 = vmatpush1.bf16.msra.mxu0 %v745
  %887 = vmatprep.subr.bf16.mxu0 0
  %888 = vmatpush1.bf16.msra.mxu0 %v746
  %889 = vmatprep.subr.bf16.mxu0 0
  %890 = vmatpush1.bf16.msra.mxu0 %v747
  %891 = vmatprep.subr.bf16.mxu0 0
  %892 = vmatpush1.bf16.msra.mxu0 %v748
  %893 = vmatprep.subr.bf16.mxu0 0
  %894 = vmatpush1.bf16.msra.mxu0 %v749
  %895 = vmatprep.subr.bf16.mxu0 0
  %896 = vmatpush1.bf16.msra.mxu0 %v750
  %897 = vmatprep.subr.bf16.mxu0 0
  %898 = vmatpush1.bf16.msra.mxu0 %v751
  %899 = vmatprep.subr.bf16.mxu0 0
  %900 = vmatpush1.bf16.msra.mxu0 %v752
  %901 = vmatprep.subr.bf16.mxu0 0
  %902 = vmatpush1.bf16.msra.mxu0 %v753
  %903 = vmatprep.mubr.bf16.mxu0 %v507
  %904 = vmatmul.mubr.bf16.gmra.mrb[0].mxu0 %v506
  %v905 = vpop.f32.mrb[0].mxu0
  %v906 = vadd.f32 %v184, %v905
  %v907 = vpop.f32.mrb[0].mxu0
  %v908 = vpop.f32.mrb[0].mxu0
  %v909 = vadd.f32 %v184, %v908
  %v910 = vpop.f32.mrb[0].mxu0
  %911 = vmatprep.mubr.bf16.mxu0 %v510
  %912 = vmatmul.mubr.bf16.gmra.mrb[0].mxu0 %v509
  %v913 = vpop.f32.mrb[0].mxu0
  %v914 = vadd.f32 %v184, %v913
  %v915 = vpop.f32.mrb[0].mxu0
  %v916 = vpop.f32.mrb[0].mxu0
  %v917 = vadd.f32 %v184, %v916
  %v918 = vpop.f32.mrb[0].mxu0
  %919 = vmatprep.mubr.bf16.mxu0 %v513
  %920 = vmatmul.mubr.bf16.gmra.mrb[0].mxu0 %v512
  %v921 = vpop.f32.mrb[0].mxu0
  %v922 = vadd.f32 %v184, %v921
  %v923 = vpop.f32.mrb[0].mxu0
  %v924 = vpop.f32.mrb[0].mxu0
  %v925 = vadd.f32 %v184, %v924
  %v926 = vpop.f32.mrb[0].mxu0
  %927 = vmatprep.mubr.bf16.mxu0 %v516
  %928 = vmatmul.mubr.bf16.gmra.mrb[0].mxu0 %v515
  %v929 = vpop.f32.mrb[0].mxu0
  %v930 = vadd.f32 %v184, %v929
  %v931 = vpop.f32.mrb[0].mxu0
  %v932 = vpop.f32.mrb[0].mxu0
  %v933 = vadd.f32 %v184, %v932
  %v934 = vpop.f32.mrb[0].mxu0
  %935 = vmatprep.mubr.bf16.mxu0 %v519
  %936 = vmatmul.mubr.bf16.gmra.mrb[0].mxu0 %v518
  %v937 = vpop.f32.mrb[0].mxu0
  %v938 = vadd.f32 %v184, %v937
  %v939 = vpop.f32.mrb[0].mxu0
  %v940 = vpop.f32.mrb[0].mxu0
  %v941 = vadd.f32 %v184, %v940
  %v942 = vpop.f32.mrb[0].mxu0
  %943 = vmatprep.mubr.bf16.mxu0 %v522
  %944 = vmatmul.mubr.bf16.gmra.mrb[0].mxu0 %v521
  %v945 = vpop.f32.mrb[0].mxu0
  %v946 = vadd.f32 %v184, %v945
  %v947 = vpop.f32.mrb[0].mxu0
  %v948 = vpop.f32.mrb[0].mxu0
  %v949 = vadd.f32 %v184, %v948
  %v950 = vpop.f32.mrb[0].mxu0
  %951 = vmatprep.mubr.bf16.mxu0 %v525
  %952 = vmatmul.mubr.bf16.gmra.mrb[0].mxu0 %v524
  %v953 = vpop.f32.mrb[0].mxu0
  %v954 = vadd.f32 %v184, %v953
  %v955 = vpop.f32.mrb[0].mxu0
  %v956 = vpop.f32.mrb[0].mxu0
  %v957 = vadd.f32 %v184, %v956
  %v958 = vpop.f32.mrb[0].mxu0
  %959 = vmatprep.mubr.bf16.mxu0 %v528
  %960 = vmatmul.mubr.bf16.gmra.mrb[0].mxu0 %v527
  %v961 = vpop.f32.mrb[0].mxu0
  %v962 = vadd.f32 %v184, %v961
  %v963 = vpop.f32.mrb[0].mxu0
  %v964 = vpop.f32.mrb[0].mxu0
  %v965 = vadd.f32 %v184, %v964
  %v966 = vpop.f32.mrb[0].mxu0
  %967 = vmatprep.mubr.bf16.mxu0 %v531
  %968 = vmatmul.mubr.bf16.gmra.mrb[0].mxu0 %v530
  %v969 = vpop.f32.mrb[0].mxu0
  %v970 = vadd.f32 %v184, %v969
  %v971 = vpop.f32.mrb[0].mxu0
  %v972 = vpop.f32.mrb[0].mxu0
  %v973 = vadd.f32 %v184, %v972
  %v974 = vpop.f32.mrb[0].mxu0
  %975 = vmatprep.mubr.bf16.mxu0 %v534
  %976 = vmatmul.mubr.bf16.gmra.mrb[0].mxu0 %v533
  %v977 = vpop.f32.mrb[0].mxu0
  %v978 = vadd.f32 %v184, %v977
  %v979 = vpop.f32.mrb[0].mxu0
  %v980 = vpop.f32.mrb[0].mxu0
  %v981 = vadd.f32 %v184, %v980
  %v982 = vpop.f32.mrb[0].mxu0
  %983 = vmatprep.mubr.bf16.mxu0 %v537
  %984 = vmatmul.mubr.bf16.gmra.mrb[0].mxu0 %v536
  %v985 = vpop.f32.mrb[0].mxu0
  %v986 = vadd.f32 %v184, %v985
  %v987 = vpop.f32.mrb[0].mxu0
  %v988 = vpop.f32.mrb[0].mxu0
  %v989 = vadd.f32 %v184, %v988
  %v990 = vpop.f32.mrb[0].mxu0
  %991 = vmatprep.mubr.bf16.mxu0 %v540
  %992 = vmatmul.mubr.bf16.gmra.mrb[0].mxu0 %v539
  %v993 = vpop.f32.mrb[0].mxu0
  %v994 = vadd.f32 %v184, %v993
  %v995 = vpop.f32.mrb[0].mxu0
  %v996 = vpop.f32.mrb[0].mxu0
  %v997 = vadd.f32 %v184, %v996
  %v998 = vpop.f32.mrb[0].mxu0
  %999 = vmatprep.mubr.bf16.mxu0 %v543
  %1000 = vmatmul.mubr.bf16.gmra.mrb[0].mxu0 %v542
  %v1001 = vpop.f32.mrb[0].mxu0
  %v1002 = vadd.f32 %v184, %v1001
  %v1003 = vpop.f32.mrb[0].mxu0
  %v1004 = vpop.f32.mrb[0].mxu0
  %v1005 = vadd.f32 %v184, %v1004
  %v1006 = vpop.f32.mrb[0].mxu0
  %1007 = vmatprep.mubr.bf16.mxu0 %v546
  %1008 = vmatmul.mubr.bf16.gmra.mrb[0].mxu0 %v545
  %v1009 = vpop.f32.mrb[0].mxu0
  %v1010 = vadd.f32 %v184, %v1009
  %v1011 = vpop.f32.mrb[0].mxu0
  %v1012 = vpop.f32.mrb[0].mxu0
  %v1013 = vadd.f32 %v184, %v1012
  %v1014 = vpop.f32.mrb[0].mxu0
  %1015 = vmatprep.mubr.bf16.mxu0 %v549
  %1016 = vmatmul.mubr.bf16.gmra.mrb[0].mxu0 %v548
  %v1017 = vpop.f32.mrb[0].mxu0
  %v1018 = vadd.f32 %v184, %v1017
  %v1019 = vpop.f32.mrb[0].mxu0
  %v1020 = vpop.f32.mrb[0].mxu0
  %v1021 = vadd.f32 %v184, %v1020
  %v1022 = vpop.f32.mrb[0].mxu0
  %1023 = vmatprep.mubr.bf16.mxu0 %v552
  %1024 = vmatmul.mubr.bf16.gmra.mrb[0].mxu0 %v551
  %v1025 = vpop.f32.mrb[0].mxu0
  %v1026 = vadd.f32 %v184, %v1025
  %v1027 = vpop.f32.mrb[0].mxu0
  %v1028 = vpop.f32.mrb[0].mxu0
  %v1029 = vadd.f32 %v184, %v1028
  %v1030 = vpop.f32.mrb[0].mxu0
  %1031 = vmatprep.mubr.bf16.mxu0 %v555
  %1032 = vmatmul.mubr.bf16.gmra.mrb[0].mxu0 %v554
  %v1033 = vpop.f32.mrb[0].mxu0
  %v1034 = vadd.f32 %v184, %v1033
  %v1035 = vpop.f32.mrb[0].mxu0
  %v1036 = vpop.f32.mrb[0].mxu0
  %v1037 = vadd.f32 %v184, %v1036
  %v1038 = vpop.f32.mrb[0].mxu0
  %1039 = vmatprep.mubr.bf16.mxu0 %v558
  %1040 = vmatmul.mubr.bf16.gmra.mrb[0].mxu0 %v557
  %v1041 = vpop.f32.mrb[0].mxu0
  %v1042 = vadd.f32 %v184, %v1041
  %v1043 = vpop.f32.mrb[0].mxu0
  %v1044 = vpop.f32.mrb[0].mxu0
  %v1045 = vadd.f32 %v184, %v1044
  %v1046 = vpop.f32.mrb[0].mxu0
  %1047 = vmatprep.mubr.bf16.mxu0 %v561
  %1048 = vmatmul.mubr.bf16.gmra.mrb[0].mxu0 %v560
  %v1049 = vpop.f32.mrb[0].mxu0
  %v1050 = vadd.f32 %v184, %v1049
  %v1051 = vpop.f32.mrb[0].mxu0
  %v1052 = vpop.f32.mrb[0].mxu0
  %v1053 = vadd.f32 %v184, %v1052
  %v1054 = vpop.f32.mrb[0].mxu0
  %1055 = vmatprep.mubr.bf16.mxu0 %v564
  %1056 = vmatmul.mubr.bf16.gmra.mrb[0].mxu0 %v563
  %v1057 = vpop.f32.mrb[0].mxu0
  %v1058 = vadd.f32 %v184, %v1057
  %v1059 = vpop.f32.mrb[0].mxu0
  %v1060 = vpop.f32.mrb[0].mxu0
  %v1061 = vadd.f32 %v184, %v1060
  %v1062 = vpop.f32.mrb[0].mxu0
  %1063 = vmatprep.mubr.bf16.mxu0 %v567
  %1064 = vmatmul.mubr.bf16.gmra.mrb[0].mxu0 %v566
  %v1065 = vpop.f32.mrb[0].mxu0
  %v1066 = vadd.f32 %v184, %v1065
  %v1067 = vpop.f32.mrb[0].mxu0
  %v1068 = vpop.f32.mrb[0].mxu0
  %v1069 = vadd.f32 %v184, %v1068
  %v1070 = vpop.f32.mrb[0].mxu0
  %1071 = vmatprep.mubr.bf16.mxu0 %v570
  %1072 = vmatmul.mubr.bf16.gmra.mrb[0].mxu0 %v569
  %v1073 = vpop.f32.mrb[0].mxu0
  %v1074 = vadd.f32 %v184, %v1073
  %v1075 = vpop.f32.mrb[0].mxu0
  %v1076 = vpop.f32.mrb[0].mxu0
  %v1077 = vadd.f32 %v184, %v1076
  %v1078 = vpop.f32.mrb[0].mxu0
  %1079 = vmatprep.mubr.bf16.mxu0 %v573
  %1080 = vmatmul.mubr.bf16.gmra.mrb[0].mxu0 %v572
  %v1081 = vpop.f32.mrb[0].mxu0
  %v1082 = vadd.f32 %v184, %v1081
  %v1083 = vpop.f32.mrb[0].mxu0
  %v1084 = vpop.f32.mrb[0].mxu0
  %v1085 = vadd.f32 %v184, %v1084
  %v1086 = vpop.f32.mrb[0].mxu0
  %1087 = vmatprep.mubr.bf16.mxu0 %v576
  %1088 = vmatmul.mubr.bf16.gmra.mrb[0].mxu0 %v575
  %v1089 = vpop.f32.mrb[0].mxu0
  %v1090 = vadd.f32 %v184, %v1089
  %v1091 = vpop.f32.mrb[0].mxu0
  %v1092 = vpop.f32.mrb[0].mxu0
  %v1093 = vadd.f32 %v184, %v1092
  %v1094 = vpop.f32.mrb[0].mxu0
  %1095 = vmatprep.mubr.bf16.mxu0 %v579
  %1096 = vmatmul.mubr.bf16.gmra.mrb[0].mxu0 %v578
  %v1097 = vpop.f32.mrb[0].mxu0
  %v1098 = vadd.f32 %v184, %v1097
  %v1099 = vpop.f32.mrb[0].mxu0
  %v1100 = vpop.f32.mrb[0].mxu0
  %v1101 = vadd.f32 %v184, %v1100
  %v1102 = vpop.f32.mrb[0].mxu0
  %1103 = vmatprep.mubr.bf16.mxu0 %v582
  %1104 = vmatmul.mubr.bf16.gmra.mrb[0].mxu0 %v581
  %v1105 = vpop.f32.mrb[0].mxu0
  %v1106 = vadd.f32 %v184, %v1105
  %v1107 = vpop.f32.mrb[0].mxu0
  %v1108 = vpop.f32.mrb[0].mxu0
  %v1109 = vadd.f32 %v184, %v1108
  %v1110 = vpop.f32.mrb[0].mxu0
  %1111 = vmatprep.mubr.bf16.mxu0 %v585
  %1112 = vmatmul.mubr.bf16.gmra.mrb[0].mxu0 %v584
  %v1113 = vpop.f32.mrb[0].mxu0
  %v1114 = vadd.f32 %v184, %v1113
  %v1115 = vpop.f32.mrb[0].mxu0
  %v1116 = vpop.f32.mrb[0].mxu0
  %v1117 = vadd.f32 %v184, %v1116
  %v1118 = vpop.f32.mrb[0].mxu0
  %1119 = vmatprep.mubr.bf16.mxu0 %v588
  %1120 = vmatmul.mubr.bf16.gmra.mrb[0].mxu0 %v587
  %v1121 = vpop.f32.mrb[0].mxu0
  %v1122 = vadd.f32 %v184, %v1121
  %v1123 = vpop.f32.mrb[0].mxu0
  %v1124 = vpop.f32.mrb[0].mxu0
  %v1125 = vadd.f32 %v184, %v1124
  %v1126 = vpop.f32.mrb[0].mxu0
  %1127 = vmatprep.mubr.bf16.mxu0 %v591
  %1128 = vmatmul.mubr.bf16.gmra.mrb[0].mxu0 %v590
  %v1129 = vpop.f32.mrb[0].mxu0
  %v1130 = vadd.f32 %v184, %v1129
  %v1131 = vpop.f32.mrb[0].mxu0
  %v1132 = vpop.f32.mrb[0].mxu0
  %v1133 = vadd.f32 %v184, %v1132
  %v1134 = vpop.f32.mrb[0].mxu0
  %1135 = vmatprep.mubr.bf16.mxu0 %v594
  %1136 = vmatmul.mubr.bf16.gmra.mrb[0].mxu0 %v593
  %v1137 = vpop.f32.mrb[0].mxu0
  %v1138 = vadd.f32 %v184, %v1137
  %v1139 = vpop.f32.mrb[0].mxu0
  %v1140 = vpop.f32.mrb[0].mxu0
  %v1141 = vadd.f32 %v184, %v1140
  %v1142 = vpop.f32.mrb[0].mxu0
  %1143 = vmatprep.mubr.bf16.mxu0 %v597
  %1144 = vmatmul.mubr.bf16.gmra.mrb[0].mxu0 %v596
  %v1145 = vpop.f32.mrb[0].mxu0
  %v1146 = vadd.f32 %v184, %v1145
  %v1147 = vpop.f32.mrb[0].mxu0
  %v1148 = vpop.f32.mrb[0].mxu0
  %v1149 = vadd.f32 %v184, %v1148
  %v1150 = vpop.f32.mrb[0].mxu0
  %1151 = vmatprep.mubr.bf16.mxu0 %v600
  %1152 = vmatmul.mubr.bf16.gmra.mrb[0].mxu0 %v599
  %v1153 = vpop.f32.mrb[0].mxu0
  %v1154 = vadd.f32 %v184, %v1153
  %v1155 = vpop.f32.mrb[0].mxu0
  %v1156 = vpop.f32.mrb[0].mxu0
  %v1157 = vadd.f32 %v184, %v1156
  %v1158 = vpop.f32.mrb[0].mxu0
  %1159 = vdwg.mxu0
  %1160 = vmatprep.subr.bf16.mxu0 0
  %1161 = vmatpush1.bf16.msra.mxu0 %v754
  %1162 = vmatprep.subr.bf16.mxu0 0
  %1163 = vmatpush1.bf16.msra.mxu0 %v755
  %1164 = vmatprep.subr.bf16.mxu0 0
  %1165 = vmatpush1.bf16.msra.mxu0 0
  %1166 = vmatprep.subr.bf16.mxu0 0
  %1167 = vmatpush1.bf16.msra.mxu0 0
  %1168 = vmatprep.subr.bf16.mxu0 0
  %1169 = vmatpush1.bf16.msra.mxu0 0
  %1170 = vmatprep.subr.bf16.mxu0 0
  %1171 = vmatpush1.bf16.msra.mxu0 0
  %1172 = vmatprep.subr.bf16.mxu0 0
  %1173 = vmatpush1.bf16.msra.mxu0 0
  %1174 = vmatprep.subr.bf16.mxu0 0
  %1175 = vmatpush1.bf16.msra.mxu0 0
  %1176 = vmatprep.subr.bf16.mxu0 0
  %1177 = vmatpush1.bf16.msra.mxu0 0
  %1178 = vmatprep.subr.bf16.mxu0 0
  %1179 = vmatpush1.bf16.msra.mxu0 0
  %1180 = vmatprep.subr.bf16.mxu0 0
  %1181 = vmatpush1.bf16.msra.mxu0 0
  %1182 = vmatprep.subr.bf16.mxu0 0
  %1183 = vmatpush1.bf16.msra.mxu0 0
  %1184 = vmatprep.subr.bf16.mxu0 0
  %1185 = vmatpush1.bf16.msra.mxu0 0
  %1186 = vmatprep.subr.bf16.mxu0 0
  %1187 = vmatpush1.bf16.msra.mxu0 0
  %1188 = vmatprep.subr.bf16.mxu0 0
  %1189 = vmatpush1.bf16.msra.mxu0 0
  %1190 = vmatprep.subr.bf16.mxu0 0
  %1191 = vmatpush1.bf16.msra.mxu0 0
  %1192 = vmatprep.mubr.bf16.mxu0 0
  %1193 = vmatmul.mubr.bf16.gmra.mrb[0].mxu0 %v776
  %v1194 = vpop.f32.mrb[0].mxu0
  %v1195 = vadd.f32 %v906, %v1194
  %v1196 = vpop.f32.mrb[0].mxu0
  %v1197 = vpop.f32.mrb[0].mxu0
  %v1198 = vadd.f32 %v909, %v1197
  %v1199 = vpop.f32.mrb[0].mxu0
  %1200 = vmatprep.mubr.bf16.mxu0 0
  %1201 = vmatmul.mubr.bf16.gmra.mrb[0].mxu0 %v779
  %v1202 = vpop.f32.mrb[0].mxu0
  %v1203 = vadd.f32 %v914, %v1202
  %v1204 = vpop.f32.mrb[0].mxu0
  %v1205 = vpop.f32.mrb[0].mxu0
  %v1206 = vadd.f32 %v917, %v1205
  %v1207 = vpop.f32.mrb[0].mxu0
  %1208 = vmatprep.mubr.bf16.mxu0 0
  %1209 = vmatmul.mubr.bf16.gmra.mrb[0].mxu0 %v782
  %v1210 = vpop.f32.mrb[0].mxu0
  %v1211 = vadd.f32 %v922, %v1210
  %v1212 = vpop.f32.mrb[0].mxu0
  %v1213 = vpop.f32.mrb[0].mxu0
  %v1214 = vadd.f32 %v925, %v1213
  %v1215 = vpop.f32.mrb[0].mxu0
  %1216 = vmatprep.mubr.bf16.mxu0 0
  %1217 = vmatmul.mubr.bf16.gmra.mrb[0].mxu0 %v785
  %v1218 = vpop.f32.mrb[0].mxu0
  %v1219 = vadd.f32 %v930, %v1218
  %v1220 = vpop.f32.mrb[0].mxu0
  %v1221 = vpop.f32.mrb[0].mxu0
  %v1222 = vadd.f32 %v933, %v1221
  %v1223 = vpop.f32.mrb[0].mxu0
  %1224 = vmatprep.mubr.bf16.mxu0 0
  %1225 = vmatmul.mubr.bf16.gmra.mrb[0].mxu0 %v788
  %v1226 = vpop.f32.mrb[0].mxu0
  %v1227 = vadd.f32 %v938, %v1226
  %v1228 = vpop.f32.mrb[0].mxu0
  %v1229 = vpop.f32.mrb[0].mxu0
  %v1230 = vadd.f32 %v941, %v1229
  %v1231 = vpop.f32.mrb[0].mxu0
  %1232 = vmatprep.mubr.bf16.mxu0 0
  %1233 = vmatmul.mubr.bf16.gmra.mrb[0].mxu0 %v791
  %v1234 = vpop.f32.mrb[0].mxu0
  %v1235 = vadd.f32 %v946, %v1234
  %v1236 = vpop.f32.mrb[0].mxu0
  %v1237 = vpop.f32.mrb[0].mxu0
  %v1238 = vadd.f32 %v949, %v1237
  %v1239 = vpop.f32.mrb[0].mxu0
  %1240 = vmatprep.mubr.bf16.mxu0 0
  %1241 = vmatmul.mubr.bf16.gmra.mrb[0].mxu0 %v794
  %v1242 = vpop.f32.mrb[0].mxu0
  %v1243 = vadd.f32 %v954, %v1242
  %v1244 = vpop.f32.mrb[0].mxu0
  %v1245 = vpop.f32.mrb[0].mxu0
  %v1246 = vadd.f32 %v957, %v1245
  %v1247 = vpop.f32.mrb[0].mxu0
  %1248 = vmatprep.mubr.bf16.mxu0 0
  %1249 = vmatmul.mubr.bf16.gmra.mrb[0].mxu0 %v797
  %v1250 = vpop.f32.mrb[0].mxu0
  %v1251 = vadd.f32 %v962, %v1250
  %v1252 = vpop.f32.mrb[0].mxu0
  %v1253 = vpop.f32.mrb[0].mxu0
  %v1254 = vadd.f32 %v965, %v1253
  %v1255 = vpop.f32.mrb[0].mxu0
  %1256 = vmatprep.mubr.bf16.mxu0 0
  %1257 = vmatmul.mubr.bf16.gmra.mrb[0].mxu0 %v800
  %v1258 = vpop.f32.mrb[0].mxu0
  %v1259 = vadd.f32 %v970, %v1258
  %v1260 = vpop.f32.mrb[0].mxu0
  %v1261 = vpop.f32.mrb[0].mxu0
  %v1262 = vadd.f32 %v973, %v1261
  %v1263 = vpop.f32.mrb[0].mxu0
  %1264 = vmatprep.mubr.bf16.mxu0 0
  %1265 = vmatmul.mubr.bf16.gmra.mrb[0].mxu0 %v803
  %v1266 = vpop.f32.mrb[0].mxu0
  %v1267 = vadd.f32 %v978, %v1266
  %v1268 = vpop.f32.mrb[0].mxu0
  %v1269 = vpop.f32.mrb[0].mxu0
  %v1270 = vadd.f32 %v981, %v1269
  %v1271 = vpop.f32.mrb[0].mxu0
  %1272 = vmatprep.mubr.bf16.mxu0 0
  %1273 = vmatmul.mubr.bf16.gmra.mrb[0].mxu0 %v806
  %v1274 = vpop.f32.mrb[0].mxu0
  %v1275 = vadd.f32 %v986, %v1274
  %v1276 = vpop.f32.mrb[0].mxu0
  %v1277 = vpop.f32.mrb[0].mxu0
  %v1278 = vadd.f32 %v989, %v1277
  %v1279 = vpop.f32.mrb[0].mxu0
  %1280 = vmatprep.mubr.bf16.mxu0 0
  %1281 = vmatmul.mubr.bf16.gmra.mrb[0].mxu0 %v809
  %v1282 = vpop.f32.mrb[0].mxu0
  %v1283 = vadd.f32 %v994, %v1282
  %v1284 = vpop.f32.mrb[0].mxu0
  %v1285 = vpop.f32.mrb[0].mxu0
  %v1286 = vadd.f32 %v997, %v1285
  %v1287 = vpop.f32.mrb[0].mxu0
  %1288 = vmatprep.mubr.bf16.mxu0 0
  %1289 = vmatmul.mubr.bf16.gmra.mrb[0].mxu0 %v812
  %v1290 = vpop.f32.mrb[0].mxu0
  %v1291 = vadd.f32 %v1002, %v1290
  %v1292 = vpop.f32.mrb[0].mxu0
  %v1293 = vpop.f32.mrb[0].mxu0
  %v1294 = vadd.f32 %v1005, %v1293
  %v1295 = vpop.f32.mrb[0].mxu0
  %1296 = vmatprep.mubr.bf16.mxu0 0
  %1297 = vmatmul.mubr.bf16.gmra.mrb[0].mxu0 %v815
  %v1298 = vpop.f32.mrb[0].mxu0
  %v1299 = vadd.f32 %v1010, %v1298
  %v1300 = vpop.f32.mrb[0].mxu0
  %v1301 = vpop.f32.mrb[0].mxu0
  %v1302 = vadd.f32 %v1013, %v1301
  %v1303 = vpop.f32.mrb[0].mxu0
  %1304 = vmatprep.mubr.bf16.mxu0 0
  %1305 = vmatmul.mubr.bf16.gmra.mrb[0].mxu0 %v818
  %v1306 = vpop.f32.mrb[0].mxu0
  %v1307 = vadd.f32 %v1018, %v1306
  %v1308 = vpop.f32.mrb[0].mxu0
  %v1309 = vpop.f32.mrb[0].mxu0
  %v1310 = vadd.f32 %v1021, %v1309
  %v1311 = vpop.f32.mrb[0].mxu0
  %1312 = vmatprep.mubr.bf16.mxu0 0
  %1313 = vmatmul.mubr.bf16.gmra.mrb[0].mxu0 %v821
  %v1314 = vpop.f32.mrb[0].mxu0
  %v1315 = vadd.f32 %v1026, %v1314
  %v1316 = vpop.f32.mrb[0].mxu0
  %v1317 = vpop.f32.mrb[0].mxu0
  %v1318 = vadd.f32 %v1029, %v1317
  %v1319 = vpop.f32.mrb[0].mxu0
  %1320 = vmatprep.mubr.bf16.mxu0 0
  %1321 = vmatmul.mubr.bf16.gmra.mrb[0].mxu0 %v824
  %v1322 = vpop.f32.mrb[0].mxu0
  %v1323 = vadd.f32 %v1034, %v1322
  %v1324 = vpop.f32.mrb[0].mxu0
  %v1325 = vpop.f32.mrb[0].mxu0
  %v1326 = vadd.f32 %v1037, %v1325
  %v1327 = vpop.f32.mrb[0].mxu0
  %1328 = vmatprep.mubr.bf16.mxu0 0
  %1329 = vmatmul.mubr.bf16.gmra.mrb[0].mxu0 %v827
  %v1330 = vpop.f32.mrb[0].mxu0
  %v1331 = vadd.f32 %v1042, %v1330
  %v1332 = vpop.f32.mrb[0].mxu0
  %v1333 = vpop.f32.mrb[0].mxu0
  %v1334 = vadd.f32 %v1045, %v1333
  %v1335 = vpop.f32.mrb[0].mxu0
  %1336 = vmatprep.mubr.bf16.mxu0 0
  %1337 = vmatmul.mubr.bf16.gmra.mrb[0].mxu0 %v830
  %v1338 = vpop.f32.mrb[0].mxu0
  %v1339 = vadd.f32 %v1050, %v1338
  %v1340 = vpop.f32.mrb[0].mxu0
  %v1341 = vpop.f32.mrb[0].mxu0
  %v1342 = vadd.f32 %v1053, %v1341
  %v1343 = vpop.f32.mrb[0].mxu0
  %1344 = vmatprep.mubr.bf16.mxu0 0
  %1345 = vmatmul.mubr.bf16.gmra.mrb[0].mxu0 %v833
  %v1346 = vpop.f32.mrb[0].mxu0
  %v1347 = vadd.f32 %v1058, %v1346
  %v1348 = vpop.f32.mrb[0].mxu0
  %v1349 = vpop.f32.mrb[0].mxu0
  %v1350 = vadd.f32 %v1061, %v1349
  %v1351 = vpop.f32.mrb[0].mxu0
  %1352 = vmatprep.mubr.bf16.mxu0 0
  %1353 = vmatmul.mubr.bf16.gmra.mrb[0].mxu0 %v836
  %v1354 = vpop.f32.mrb[0].mxu0
  %v1355 = vadd.f32 %v1066, %v1354
  %v1356 = vpop.f32.mrb[0].mxu0
  %v1357 = vpop.f32.mrb[0].mxu0
  %v1358 = vadd.f32 %v1069, %v1357
  %v1359 = vpop.f32.mrb[0].mxu0
  %1360 = vmatprep.mubr.bf16.mxu0 0
  %1361 = vmatmul.mubr.bf16.gmra.mrb[0].mxu0 %v839
  %v1362 = vpop.f32.mrb[0].mxu0
  %v1363 = vadd.f32 %v1074, %v1362
  %v1364 = vpop.f32.mrb[0].mxu0
  %v1365 = vpop.f32.mrb[0].mxu0
  %v1366 = vadd.f32 %v1077, %v1365
  %v1367 = vpop.f32.mrb[0].mxu0
  %1368 = vmatprep.mubr.bf16.mxu0 0
  %1369 = vmatmul.mubr.bf16.gmra.mrb[0].mxu0 %v842
  %v1370 = vpop.f32.mrb[0].mxu0
  %v1371 = vadd.f32 %v1082, %v1370
  %v1372 = vpop.f32.mrb[0].mxu0
  %v1373 = vpop.f32.mrb[0].mxu0
  %v1374 = vadd.f32 %v1085, %v1373
  %v1375 = vpop.f32.mrb[0].mxu0
  %1376 = vmatprep.mubr.bf16.mxu0 0
  %1377 = vmatmul.mubr.bf16.gmra.mrb[0].mxu0 %v845
  %v1378 = vpop.f32.mrb[0].mxu0
  %v1379 = vadd.f32 %v1090, %v1378
  %v1380 = vpop.f32.mrb[0].mxu0
  %v1381 = vpop.f32.mrb[0].mxu0
  %v1382 = vadd.f32 %v1093, %v1381
  %v1383 = vpop.f32.mrb[0].mxu0
  %1384 = vmatprep.mubr.bf16.mxu0 0
  %1385 = vmatmul.mubr.bf16.gmra.mrb[0].mxu0 %v848
  %v1386 = vpop.f32.mrb[0].mxu0
  %v1387 = vadd.f32 %v1098, %v1386
  %v1388 = vpop.f32.mrb[0].mxu0
  %v1389 = vpop.f32.mrb[0].mxu0
  %v1390 = vadd.f32 %v1101, %v1389
  %v1391 = vpop.f32.mrb[0].mxu0
  %1392 = vmatprep.mubr.bf16.mxu0 0
  %1393 = vmatmul.mubr.bf16.gmra.mrb[0].mxu0 %v851
  %v1394 = vpop.f32.mrb[0].mxu0
  %v1395 = vadd.f32 %v1106, %v1394
  %v1396 = vpop.f32.mrb[0].mxu0
  %v1397 = vpop.f32.mrb[0].mxu0
  %v1398 = vadd.f32 %v1109, %v1397
  %v1399 = vpop.f32.mrb[0].mxu0
  %1400 = vmatprep.mubr.bf16.mxu0 0
  %1401 = vmatmul.mubr.bf16.gmra.mrb[0].mxu0 %v854
  %v1402 = vpop.f32.mrb[0].mxu0
  %v1403 = vadd.f32 %v1114, %v1402
  %v1404 = vpop.f32.mrb[0].mxu0
  %v1405 = vpop.f32.mrb[0].mxu0
  %v1406 = vadd.f32 %v1117, %v1405
  %v1407 = vpop.f32.mrb[0].mxu0
  %1408 = vmatprep.mubr.bf16.mxu0 0
  %1409 = vmatmul.mubr.bf16.gmra.mrb[0].mxu0 %v857
  %v1410 = vpop.f32.mrb[0].mxu0
  %v1411 = vadd.f32 %v1122, %v1410
  %v1412 = vpop.f32.mrb[0].mxu0
  %v1413 = vpop.f32.mrb[0].mxu0
  %v1414 = vadd.f32 %v1125, %v1413
  %v1415 = vpop.f32.mrb[0].mxu0
  %1416 = vmatprep.mubr.bf16.mxu0 0
  %1417 = vmatmul.mubr.bf16.gmra.mrb[0].mxu0 %v860
  %v1418 = vpop.f32.mrb[0].mxu0
  %v1419 = vadd.f32 %v1130, %v1418
  %v1420 = vpop.f32.mrb[0].mxu0
  %v1421 = vpop.f32.mrb[0].mxu0
  %v1422 = vadd.f32 %v1133, %v1421
  %v1423 = vpop.f32.mrb[0].mxu0
  %1424 = vmatprep.mubr.bf16.mxu0 0
  %1425 = vmatmul.mubr.bf16.gmra.mrb[0].mxu0 %v863
  %v1426 = vpop.f32.mrb[0].mxu0
  %v1427 = vadd.f32 %v1138, %v1426
  %v1428 = vpop.f32.mrb[0].mxu0
  %v1429 = vpop.f32.mrb[0].mxu0
  %v1430 = vadd.f32 %v1141, %v1429
  %v1431 = vpop.f32.mrb[0].mxu0
  %1432 = vmatprep.mubr.bf16.mxu0 0
  %1433 = vmatmul.mubr.bf16.gmra.mrb[0].mxu0 %v866
  %v1434 = vpop.f32.mrb[0].mxu0
  %v1435 = vadd.f32 %v1146, %v1434
  %v1436 = vpop.f32.mrb[0].mxu0
  %v1437 = vpop.f32.mrb[0].mxu0
  %v1438 = vadd.f32 %v1149, %v1437
  %v1439 = vpop.f32.mrb[0].mxu0
  %1440 = vmatprep.mubr.bf16.mxu0 0
  %1441 = vmatmul.mubr.bf16.gmra.mrb[0].mxu0 %v869
  %v1442 = vpop.f32.mrb[0].mxu0
  %v1443 = vadd.f32 %v1154, %v1442
  %v1444 = vpop.f32.mrb[0].mxu0
  %v1445 = vpop.f32.mrb[0].mxu0
  %v1446 = vadd.f32 %v1157, %v1445
  %v1447 = vpop.f32.mrb[0].mxu0
  %1448 = vdwg.mxu0
  %1449 = vst [vmem:[%s3] sm:$0xff] %v1195
  %1450 = vst [vmem:[%s3 + $0x8] sm:$0xff] %v1198
  %1451 = vst [vmem:[%s3 + $0x10] sm:$0xff] %v1203
  %1452 = vst [vmem:[%s3 + $0x18] sm:$0xff] %v1206
  %1453 = vst [vmem:[%s3 + $0x20] sm:$0xff] %v1211
  %1454 = vst [vmem:[%s3 + $0x28] sm:$0xff] %v1214
  %1455 = vst [vmem:[%s3 + $0x30] sm:$0xff] %v1219
  %1456 = vst [vmem:[%s3 + $0x38] sm:$0xff] %v1222
  %1457 = vst [vmem:[%s3 + $0x40] sm:$0xff] %v1227
  %1458 = vst [vmem:[%s3 + $0x48] sm:$0xff] %v1230
  %1459 = vst [vmem:[%s3 + $0x50] sm:$0xff] %v1235
  %1460 = vst [vmem:[%s3 + $0x58] sm:$0xff] %v1238
  %1461 = vst [vmem:[%s3 + $0x60] sm:$0xff] %v1243
  %1462 = vst [vmem:[%s3 + $0x68] sm:$0xff] %v1246
  %1463 = vst [vmem:[%s3 + $0x70] sm:$0xff] %v1251
  %1464 = vst [vmem:[%s3 + $0x78] sm:$0xff] %v1254
  %1465 = vst [vmem:[%s3 + $0x80] sm:$0xff] %v1259
  %1466 = vst [vmem:[%s3 + $0x88] sm:$0xff] %v1262
  %1467 = vst [vmem:[%s3 + $0x90] sm:$0xff] %v1267
  %1468 = vst [vmem:[%s3 + $0x98] sm:$0xff] %v1270
  %1469 = vst [vmem:[%s3 + $0xa0] sm:$0xff] %v1275
  %1470 = vst [vmem:[%s3 + $0xa8] sm:$0xff] %v1278
  %1471 = vst [vmem:[%s3 + $0xb0] sm:$0xff] %v1283
  %1472 = vst [vmem:[%s3 + $0xb8] sm:$0xff] %v1286
  %1473 = vst [vmem:[%s3 + $0xc0] sm:$0xff] %v1291
  %1474 = vst [vmem:[%s3 + $0xc8] sm:$0xff] %v1294
  %1475 = vst [vmem:[%s3 + $0xd0] sm:$0xff] %v1299
  %1476 = vst [vmem:[%s3 + $0xd8] sm:$0xff] %v1302
  %1477 = vst [vmem:[%s3 + $0xe0] sm:$0xff] %v1307
  %1478 = vst [vmem:[%s3 + $0xe8] sm:$0xff] %v1310
  %1479 = vst [vmem:[%s3 + $0xf0] sm:$0xff] %v1315
  %1480 = vst [vmem:[%s3 + $0xf8] sm:$0xff] %v1318
  %1481 = vst [vmem:[%s3 + $0x100] sm:$0xff] %v1323
  %1482 = vst [vmem:[%s3 + $0x108] sm:$0xff] %v1326
  %1483 = vst [vmem:[%s3 + $0x110] sm:$0xff] %v1331
  %1484 = vst [vmem:[%s3 + $0x118] sm:$0xff] %v1334
  %1485 = vst [vmem:[%s3 + $0x120] sm:$0xff] %v1339
  %1486 = vst [vmem:[%s3 + $0x128] sm:$0xff] %v1342
  %1487 = vst [vmem:[%s3 + $0x130] sm:$0xff] %v1347
  %1488 = vst [vmem:[%s3 + $0x138] sm:$0xff] %v1350
  %1489 = vst [vmem:[%s3 + $0x140] sm:$0xff] %v1355
  %1490 = vst [vmem:[%s3 + $0x148] sm:$0xff] %v1358
  %1491 = vst [vmem:[%s3 + $0x150] sm:$0xff] %v1363
  %1492 = vst [vmem:[%s3 + $0x158] sm:$0xff] %v1366
  %1493 = vst [vmem:[%s3 + $0x160] sm:$0xff] %v1371
  %1494 = vst [vmem:[%s3 + $0x168] sm:$0xff] %v1374
  %1495 = vst [vmem:[%s3 + $0x170] sm:$0xff] %v1379
  %1496 = vst [vmem:[%s3 + $0x178] sm:$0xff] %v1382
  %1497 = vst [vmem:[%s3 + $0x180] sm:$0xff] %v1387
  %1498 = vst [vmem:[%s3 + $0x188] sm:$0xff] %v1390
  %1499 = vst [vmem:[%s3 + $0x190] sm:$0xff] %v1395
  %1500 = vst [vmem:[%s3 + $0x198] sm:$0xff] %v1398
  %1501 = vst [vmem:[%s3 + $0x1a0] sm:$0xff] %v1403
  %1502 = vst [vmem:[%s3 + $0x1a8] sm:$0xff] %v1406
  %1503 = vst [vmem:[%s3 + $0x1b0] sm:$0xff] %v1411
  %1504 = vst [vmem:[%s3 + $0x1b8] sm:$0xff] %v1414
  %1505 = vst [vmem:[%s3 + $0x1c0] sm:$0xff] %v1419
  %1506 = vst [vmem:[%s3 + $0x1c8] sm:$0xff] %v1422
  %1507 = vst [vmem:[%s3 + $0x1d0] sm:$0xff] %v1427
  %1508 = vst [vmem:[%s3 + $0x1d8] sm:$0xff] %v1430
  %1509 = vst [vmem:[%s3 + $0x1e0] sm:$0xff] %v1435
  %1510 = vst [vmem:[%s3 + $0x1e8] sm:$0xff] %v1438
  %1511 = vst [vmem:[%s3 + $0x1f0] sm:$0xff] %v1443
  %1512 = vst [vmem:[%s3 + $0x1f8] sm:$0xff] %v1446
  // Predicated region
  $region14: #{_lambda_.22} parent=0 // pred_check
    _
  $region15: #{_lambda_.22} parent=0 // pred_check_branch
    %1514 = sbr.rel (0) target = $region17
  $region16: #{_lambda_.22} parent=0 // pred_region
    _
  $region17: #{_lambda_.22} parent=0 // pred_fallthru
    _
  // Predicated region
  $region18: #{_lambda_.22} parent=0 // pred_check
    _
  $region19: #{_lambda_.22} parent=0 // pred_check_branch
    %1516 = sbr.rel (0) target = $region21
  $region20: #{_lambda_.22} parent=0 // pred_region
    _
  $region21: #{_lambda_.22} parent=0 // pred_fallthru
    _

</llo_original>
